<compile_context>
chip_gen: v7x
topology: tpu7x:2x2x1
jax: 0.10.0
libtpu: 0.0.40
codegen_flags: <defaults>
</compile_context>

<pallas_src>
import jax
import jax.numpy as jnp
from jax import lax
from jax.experimental import pallas as pl
from jax.experimental.pallas import tpu as pltpu


def _make_kernel(T, W, Cin, Cmid, d, wl, pad_dtype):
    """T = tile_h rows per band; wl = sublane-aligned left W-halo of the scratch."""
    ROWS = T * W

    def kernel(xb_ref, xh_ref, w1_ref, b1_ref, w2_ref, b2_ref, w3_ref, b3_ref,
               o_ref, pad_ref):
        b = pl.program_id(1)

        # (1) zero the left/right W-column halo of the padded-y1 scratch.
        #     Re-done every step (not program_id()==0 guarded): with megacore sharding
        #     each TensorCore has its own, initially uninitialized, scratch.
        pad_ref[:, 0:wl, :] = jnp.zeros((T + 2 * d, wl, Cmid), pad_dtype)
        pad_ref[:, wl + W:wl + W + d, :] = jnp.zeros((T + 2 * d, d, Cmid), pad_dtype)

        # (2) conv1 (1x1 reduce; BN scale pre-folded into the weights) on this band.
        xb = xb_ref[...]                                              # (1,T,W,Cin) f32
        y1 = jnp.dot(xb.reshape(ROWS, Cin).astype(pad_dtype), w1_ref[...],
                     preferred_element_type=jnp.float32)
        y1 = jnp.maximum(y1 + b1_ref[...], 0.0)
        pad_ref[d:d + T, wl:wl + W, :] = y1.astype(pad_dtype).reshape(T, W, Cmid)

        # (3) conv1 on the 2d halo rows gathered by the wrapper (top d rows, bottom d rows).
        xh = xh_ref[...].reshape(2 * d * W, Cin).astype(pad_dtype)
        y1h = jnp.dot(xh, w1_ref[...], preferred_element_type=jnp.float32)
        y1h = jnp.maximum(y1h + b1_ref[...], 0.0).astype(pad_dtype).reshape(2 * d, W, Cmid)
        pad_ref[0:d, wl:wl + W, :] = y1h[0:d]
        pad_ref[d + T:d + T + d, wl:wl + W, :] = y1h[d:2 * d]

        # (4) conv2's zero padding pads *y1* (not conv1 of zero-padded x) at the image
        #     boundary: overwrite the boundary halo rows with zeros.
        @pl.when(b == 0)
        def _():
            pad_ref[0:d, wl:wl + W, :] = jnp.zeros((d, W, Cmid), pad_dtype)

        @pl.when(b == pl.num_programs(1) - 1)
        def _():
            pad_ref[d + T:d + T + d, wl:wl + W, :] = jnp.zeros((d, W, Cmid), pad_dtype)

        # (5) conv2: 3x3 dilated conv as 9 accumulated matmuls over shifted bf16 windows
        #     of the padded scratch (no im2col materialization, f32 accumulation).
        acc = None
        for ki in range(3):
            for kj in range(3):
                c0 = wl - d + kj * d
                tap = pad_ref[ki * d:ki * d + T, c0:c0 + W, :]        # (T,W,Cmid) pad_dtype
                contrib = jnp.dot(tap.reshape(ROWS, Cmid), w2_ref[ki * 3 + kj],
                                  preferred_element_type=jnp.float32)
                acc = contrib if acc is None else acc + contrib
        y2 = jnp.maximum(acc + b2_ref[...], 0.0)                      # (ROWS, Cmid) f32

        # (6) conv3 (1x1 increase) + bias + ReLU (Conv2D_BN_ReLU always applies ReLU).
        y3 = jnp.dot(y2.astype(pad_dtype), w3_ref[...],
                     preferred_element_type=jnp.float32)
        y3 = jnp.maximum(y3 + b3_ref[...], 0.0)                       # (ROWS, Cin) f32

        # (7) identity residual + final ReLU, as in the module's forward.
        o_ref[...] = jnp.maximum(y3.reshape(1, T, W, Cin) + xb, 0.0)

    return kernel


def _pick_vmem_limit():
    """~3/4 of the chip's VMEM (capped at 100 MiB); conservative 48 MiB fallback."""
    try:
        cap = int(pltpu.get_tpu_info().vmem_capacity_bytes)
        if cap <= 0:
            raise ValueError
        return min((cap * 3) // 4, 100 * 1024 * 1024)
    except Exception:
        return 48 * 1024 * 1024


def _choose_tile_h(H, W, Cin, Cmid, d, vmem_limit, itemsize):
    """Largest divisor of H whose per-band footprint fits ~60% of the VMEM budget."""
    budget = max(int(vmem_limit * 0.6), 1)
    best = H
    for T in range(H, 0, -1):
        if H % T or T < d:
            continue
        est = (4 * T * W * Cin * 4                              # x band + out band, 2x buffered
               + 4 * d * W * Cin * 4                            # halo band, 2x buffered
               + (T + 2 * d) * (W + 2 * d + 16) * Cmid * itemsize   # padded y1 scratch
               + T * W * (2 * Cmid + Cin) * 4                   # f32 intermediates
               + 2 * (Cin * Cmid + 9 * Cmid * Cmid + Cmid * Cin) * itemsize)  # weights
        best = T
        if est <= budget:
            return T
    return best


def bottleneck_identity_psp_nhwc(x_nhwc, params, dilation, *, tile_h=None,
                                 matmul_dtype=jnp.bfloat16):
    """NHWC entry point (preferred: no layout transposes around the kernel)."""
    N, H, W, Cin = x_nhwc.shape
    Cmid = params["w1"].shape[1]
    d = max(1, dilation)                      # module applies dilation = max(1, dilation)
    itemsize = jnp.dtype(matmul_dtype).itemsize

    vmem_limit = _pick_vmem_limit()
    if tile_h is None:
        tile_h = _choose_tile_h(H, W, Cin, Cmid, d, vmem_limit, itemsize)
    T = tile_h
    assert H % T == 0, "tile_h must divide H"
    assert T >= d, "tile_h must be >= dilation"
    nB = H // T

    # Sublane-aligned left W-halo of the scratch (16 for bf16 packing, 8 for f32).
    align = 8 if itemsize == 4 else 16
    wl = ((d + align - 1) // align) * align

    # Fold BN scale into the weight output-channels in f32, THEN cast to the MXU dtype.
    w1 = (params["w1"] * params["s1"]).astype(matmul_dtype)                       # (Cin,Cmid)
    w2 = (params["w2"] * params["s2"].reshape(1, 1, 1, Cmid)) \
        .reshape(9, Cmid, Cmid).astype(matmul_dtype)                              # (9,Cmid,Cmid)
    w3 = (params["w3"] * params["s3"]).astype(matmul_dtype)                       # (Cmid,Cin)
    b1 = params["b1"].astype(jnp.float32)
    b2 = params["b2"].astype(jnp.float32)
    b3 = params["b3"].astype(jnp.float32)

    # Wrapper-side gather of the d-row halos of every band (zeros at image boundaries),
    # so the kernel gets them through a regular auto-pipelined BlockSpec.
    xp = jnp.pad(x_nhwc, ((0, 0), (d, d), (0, 0), (0, 0)))
    top = xp[:, :H].reshape(N, nB, T, W, Cin)[:, :, :d]            # rows [b*T-d, b*T)
    bot = xp[:, 2 * d:2 * d + H].reshape(N, nB, T, W, Cin)[:, :, T - d:]  # rows [(b+1)*T, +d)
    x_halo = jnp.concatenate([top, bot], axis=2).reshape(N * nB, 2 * d, W, Cin)

    kernel = _make_kernel(T, W, Cin, Cmid, d, wl, matmul_dtype)

    def const_spec(arr):
        nd = arr.ndim
        return pl.BlockSpec(arr.shape, lambda n, b, _nd=nd: (0,) * _nd)

    grid_spec = pltpu.PrefetchScalarGridSpec(
        num_scalar_prefetch=0,
        grid=(N, nB),
        in_specs=[
            pl.BlockSpec((1, T, W, Cin), lambda n, b: (n, b, 0, 0)),          # x band
            pl.BlockSpec((1, 2 * d, W, Cin), lambda n, b: (n * nB + b, 0, 0, 0)),  # x halo rows
            const_spec(w1), const_spec(b1),
            const_spec(w2), const_spec(b2),
            const_spec(w3), const_spec(b3),
        ],
        out_specs=pl.BlockSpec((1, T, W, Cin), lambda n, b: (n, b, 0, 0)),
        scratch_shapes=[pltpu.VMEM((T + 2 * d, wl + W + d, Cmid), matmul_dtype)],
    )

    flops = (2 * N * H * W * (Cin * Cmid + 9 * Cmid * Cmid + Cmid * Cin)
             + 2 * N * nB * 2 * d * W * Cin * Cmid)            # halo conv1 recompute
    bytes_accessed = (2 * N * H * W * Cin * 4                  # x in + out (f32)
                      + N * nB * 2 * d * W * Cin * 4           # halo rows
                      + (w1.size + w2.size + w3.size) * itemsize
                      + (b1.size + b2.size + b3.size) * 4)
    cost = pl.CostEstimate(flops=int(flops), transcendentals=0,
                           bytes_accessed=int(bytes_accessed))

    return pl.pallas_call(
        kernel,
        out_shape=jax.ShapeDtypeStruct((N, H, W, Cin), jnp.float32),
        grid_spec=grid_spec,
        compiler_params=pltpu.CompilerParams(
            # batch items and row bands are independent -> megacore sharding on v7x
            dimension_semantics=("parallel", "parallel"),
            vmem_limit_bytes=vmem_limit,
        ),
        cost_estimate=cost,
    )(x_nhwc, x_halo, w1, b1, w2, b2, w3, b3)


def bottleneck_identity_psp_nchw(x_nchw, params, dilation, **kw):
    """Drop-in PyTorch (NCHW) adapter. Prefer the NHWC entry point: these two
    transposes are each a full HBM read+write pass over the tensor."""
    x_nhwc = jnp.transpose(x_nchw, (0, 2, 3, 1))
    out = bottleneck_identity_psp_nhwc(x_nhwc, params, dilation, **kw)
    return jnp.transpose(out, (0, 3, 1, 2))


def init_params(key, Cin, Cmid, eps=1e-5):
    """Deterministic synthetic params; eval-mode BN folded into scale/bias."""
    ks = jax.random.split(key, 15)

    def bn_fold(k0, k1, k2, k3, C):
        gamma = jax.random.uniform(k0, (C,), jnp.float32, 0.5, 1.5)
        beta = jax.random.normal(k1, (C,), jnp.float32) * 0.1
        mean = jax.random.normal(k2, (C,), jnp.float32) * 0.1
        var = jax.random.uniform(k3, (C,), jnp.float32, 0.5, 1.5)
        scale = gamma / jnp.sqrt(var + eps)
        bias = beta - mean * scale
        return scale.reshape(1, C), bias.reshape(1, C)

    w1 = jax.random.normal(ks[0], (Cin, Cmid), jnp.float32) * 0.1         # 1x1 reduce (IO)
    w2 = jax.random.normal(ks[1], (3, 3, Cmid, Cmid), jnp.float32) * 0.1  # 3x3 (HWIO)
    w3 = jax.random.normal(ks[2], (Cmid, Cin), jnp.float32) * 0.1         # 1x1 increase (IO)
    s1, b1 = bn_fold(ks[3], ks[4], ks[5], ks[6], Cmid)
    s2, b2 = bn_fold(ks[7], ks[8], ks[9], ks[10], Cmid)
    s3, b3 = bn_fold(ks[11], ks[12], ks[13], ks[14], Cin)
    return dict(w1=w1, s1=s1, b1=b1, w2=w2, s2=s2, b2=b2, w3=w3, s3=s3, b3=b3)


def reference_nhwc(x, params, dilation, matmul_dtype=jnp.bfloat16):
    """Pure-JAX reference with the SAME folded-scale weights and the same bf16
    rounding of every MXU input; accumulation in f32."""
    d = max(1, dilation)
    Cin = x.shape[-1]
    Cmid = params["w1"].shape[1]
    w1s = params["w1"] * params["s1"]
    w2s = params["w2"] * params["s2"].reshape(1, 1, 1, Cmid)
    w3s = params["w3"] * params["s3"]

    def q(a):  # mirror the kernel's bf16 MXU-input rounding
        return a.astype(matmul_dtype).astype(jnp.float32)

    dn = ("NHWC", "HWIO", "NHWC")

    def conv(inp, w, pad, dil):
        return lax.conv_general_dilated(q(inp), q(w), (1, 1), pad, rhs_dilation=dil,
                                        dimension_numbers=dn,
                                        precision=lax.Precision.HIGHEST)

    def bias_relu(y, b):
        return jnp.maximum(y + b.reshape(1, 1, 1, -1), 0.0)

    y = bias_relu(conv(x, w1s.reshape(1, 1, Cin, Cmid), "VALID", (1, 1)), params["b1"])
    y = bias_relu(conv(y, w2s, [(d, d), (d, d)], (d, d)), params["b2"])
    y = bias_relu(conv(y, w3s.reshape(1, 1, Cmid, Cin), "VALID", (1, 1)), params["b3"])
    return jnp.maximum(y + x, 0.0)


if __name__ == "__main__":
    # Small but lane-dense shapes (channels multiples of 128) so the demo exercises the
    # real code paths; tile_h=8 makes two row bands per image (halo path is exercised).
    N, Cin, Cmid, H, W = 2, 256, 128, 16, 16
    dilation = 2  # conv2 padding == dilation, as in the module

    key = jax.random.PRNGKey(0)
    kx, kp = jax.random.split(key)
    x_nhwc = jax.random.normal(kx, (N, H, W, Cin), jnp.float32)   # NHWC end-to-end
    params = init_params(kp, Cin, Cmid)

    out = bottleneck_identity_psp_nhwc(x_nhwc, params, dilation, tile_h=8)
    out = jax.block_until_ready(out)

    ref = reference_nhwc(x_nhwc, params, dilation)
    assert out.shape == x_nhwc.shape and out.dtype == jnp.float32
    max_err = float(jnp.max(jnp.abs(out - ref)))
    assert jnp.allclose(out, ref, rtol=2e-2, atol=2e-2), \
        f"mismatch vs reference (max abs err {max_err})"

    print("KERNEL_OK")
</pallas_src>

<mosaic_0001>
module attributes {stable_mosaic.version = 11 : i64} {
  func.func @kernel(%arg0: i32, %arg1: i32, %arg2: memref<1x8x16x256xf32, #tpu.memory_space<vmem>>, %arg3: memref<1x4x16x256xf32, #tpu.memory_space<vmem>>, %arg4: memref<256x128xbf16, #tpu.memory_space<vmem>>, %arg5: memref<1x128xf32, #tpu.memory_space<vmem>>, %arg6: memref<9x128x128xbf16, #tpu.memory_space<vmem>>, %arg7: memref<1x128xf32, #tpu.memory_space<vmem>>, %arg8: memref<128x256xbf16, #tpu.memory_space<vmem>>, %arg9: memref<1x256xf32, #tpu.memory_space<vmem>>, %arg10: memref<1x8x16x256xf32, #tpu.memory_space<vmem>>, %arg11: memref<12x34x128xbf16, #tpu.memory_space<vmem>>) attributes {dimension_semantics = [#tpu.dimension_semantics<parallel>, #tpu.dimension_semantics<parallel>], iteration_bounds = array<i64: 2, 2>, scalar_prefetch = 0 : i64, scratch_operands = 1 : i64, tpu.core_type = #tpu.core_type<tc>, window_params = [{transform_indices = @transform_0, window_bounds = array<i64: 1, 8, 16, 256>}, {transform_indices = @transform_1, window_bounds = array<i64: 1, 4, 16, 256>}, {pipeline_mode = #tpu.pipeline_mode<synchronous>, transform_indices = @transform_2, window_bounds = array<i64: 256, 128>}, {pipeline_mode = #tpu.pipeline_mode<synchronous>, transform_indices = @transform_3, window_bounds = array<i64: 1, 128>}, {pipeline_mode = #tpu.pipeline_mode<synchronous>, transform_indices = @transform_4, window_bounds = array<i64: 9, 128, 128>}, {pipeline_mode = #tpu.pipeline_mode<synchronous>, transform_indices = @transform_5, window_bounds = array<i64: 1, 128>}, {pipeline_mode = #tpu.pipeline_mode<synchronous>, transform_indices = @transform_6, window_bounds = array<i64: 128, 256>}, {pipeline_mode = #tpu.pipeline_mode<synchronous>, transform_indices = @transform_7, window_bounds = array<i64: 1, 256>}, {transform_indices = @transform_8, window_bounds = array<i64: 1, 8, 16, 256>}]} {
    %cst = arith.constant 0.000000e+00 : bf16
    %0 = vector.broadcast %cst : bf16 to vector<12x16x128xbf16>
    %c0 = arith.constant 0 : index
    %c0_0 = arith.constant 0 : index
    %c0_1 = arith.constant 0 : index
    %1 = vector.load %arg11[%c0, %c0_0, %c0_1] : memref<12x34x128xbf16, #tpu.memory_space<vmem>>, vector<12x16x128xbf16>
    tpu.vector_store %arg11[%c0, %c0_0, %c0_1], %0 {strides = array<i32>} : memref<12x34x128xbf16, #tpu.memory_space<vmem>>, vector<12x16x128xbf16>,
    %cst_2 = arith.constant 0.000000e+00 : bf16
    %2 = vector.broadcast %cst_2 : bf16 to vector<12x2x128xbf16>
    %c0_3 = arith.constant 0 : index
    %c32 = arith.constant 32 : index
    %c0_4 = arith.constant 0 : index
    %3 = vector.load %arg11[%c0_3, %c32, %c0_4] : memref<12x34x128xbf16, #tpu.memory_space<vmem>>, vector<12x2x128xbf16>
    tpu.vector_store %arg11[%c0_3, %c32, %c0_4], %2 {strides = array<i32>} : memref<12x34x128xbf16, #tpu.memory_space<vmem>>, vector<12x2x128xbf16>,
    %c0_5 = arith.constant 0 : index
    %c0_6 = arith.constant 0 : index
    %c0_7 = arith.constant 0 : index
    %c0_8 = arith.constant 0 : index
    %4 = vector.load %arg2[%c0_5, %c0_6, %c0_7, %c0_8] : memref<1x8x16x256xf32, #tpu.memory_space<vmem>>, vector<1x8x16x256xf32>
    %5 = vector.shape_cast %4 : vector<1x8x16x256xf32> to vector<128x256xf32>
    %6 = arith.truncf %5 : vector<128x256xf32> to vector<128x256xbf16>
    %c0_9 = arith.constant 0 : index
    %c0_10 = arith.constant 0 : index
    %7 = vector.load %arg4[%c0_9, %c0_10] : memref<256x128xbf16, #tpu.memory_space<vmem>>, vector<256x128xbf16>
    %cst_11 = arith.constant dense<0.000000e+00> : vector<128x128xf32>
    %8 = tpu.matmul %6, %7, %cst_11 {dimension_numbers = #tpu.dot_dimension_numbers<[1], [0], [0], [1], [0, 0, 1, 1], [], []>} : vector<128x256xbf16>, vector<256x128xbf16>, vector<128x128xf32> -> vector<128x128xf32>
    %c0_12 = arith.constant 0 : index
    %c0_13 = arith.constant 0 : index
    %9 = vector.load %arg5[%c0_12, %c0_13] : memref<1x128xf32, #tpu.memory_space<vmem>>, vector<1x128xf32>
    %10 = vector.broadcast %9 : vector<1x128xf32> to vector<128x128xf32>
    %11 = arith.addf %8, %10 : vector<128x128xf32>
    %cst_14 = arith.constant 0.000000e+00 : f32
    %12 = vector.broadcast %cst_14 : f32 to vector<128x128xf32>
    %13 = arith.maximumf %11, %12 : vector<128x128xf32>
    %14 = arith.truncf %13 : vector<128x128xf32> to vector<128x128xbf16>
    %15 = vector.shape_cast %14 : vector<128x128xbf16> to vector<8x16x128xbf16>
    %c2 = arith.constant 2 : index
    %c16 = arith.constant 16 : index
    %c0_15 = arith.constant 0 : index
    %16 = vector.load %arg11[%c2, %c16, %c0_15] : memref<12x34x128xbf16, #tpu.memory_space<vmem>>, vector<8x16x128xbf16>
    tpu.vector_store %arg11[%c2, %c16, %c0_15], %15 {strides = array<i32>} : memref<12x34x128xbf16, #tpu.memory_space<vmem>>, vector<8x16x128xbf16>,
    %c0_16 = arith.constant 0 : index
    %c0_17 = arith.constant 0 : index
    %c0_18 = arith.constant 0 : index
    %c0_19 = arith.constant 0 : index
    %17 = vector.load %arg3[%c0_16, %c0_17, %c0_18, %c0_19] : memref<1x4x16x256xf32, #tpu.memory_space<vmem>>, vector<1x4x16x256xf32>
    %18 = vector.shape_cast %17 : vector<1x4x16x256xf32> to vector<64x256xf32>
    %19 = arith.truncf %18 : vector<64x256xf32> to vector<64x256xbf16>
    %c0_20 = arith.constant 0 : index
    %c0_21 = arith.constant 0 : index
    %20 = vector.load %arg4[%c0_20, %c0_21] : memref<256x128xbf16, #tpu.memory_space<vmem>>, vector<256x128xbf16>
    %cst_22 = arith.constant dense<0.000000e+00> : vector<64x128xf32>
    %21 = tpu.matmul %19, %20, %cst_22 {dimension_numbers = #tpu.dot_dimension_numbers<[1], [0], [0], [1], [0, 0, 1, 1], [], []>} : vector<64x256xbf16>, vector<256x128xbf16>, vector<64x128xf32> -> vector<64x128xf32>
    %c0_23 = arith.constant 0 : index
    %c0_24 = arith.constant 0 : index
    %22 = vector.load %arg5[%c0_23, %c0_24] : memref<1x128xf32, #tpu.memory_space<vmem>>, vector<1x128xf32>
    %23 = vector.broadcast %22 : vector<1x128xf32> to vector<64x128xf32>
    %24 = arith.addf %21, %23 : vector<64x128xf32>
    %cst_25 = arith.constant 0.000000e+00 : f32
    %25 = vector.broadcast %cst_25 : f32 to vector<64x128xf32>
    %26 = arith.maximumf %24, %25 : vector<64x128xf32>
    %27 = arith.truncf %26 : vector<64x128xf32> to vector<64x128xbf16>
    %28 = vector.shape_cast %27 : vector<64x128xbf16> to vector<4x16x128xbf16>
    %29 = vector.extract_strided_slice %28 {offsets = [0, 0, 0], sizes = [2, 16, 128], strides = [1, 1, 1]} : vector<4x16x128xbf16> to vector<2x16x128xbf16>
    %c0_26 = arith.constant 0 : index
    %c16_27 = arith.constant 16 : index
    %c0_28 = arith.constant 0 : index
    %30 = vector.load %arg11[%c0_26, %c16_27, %c0_28] : memref<12x34x128xbf16, #tpu.memory_space<vmem>>, vector<2x16x128xbf16>
    tpu.vector_store %arg11[%c0_26, %c16_27, %c0_28], %29 {strides = array<i32>} : memref<12x34x128xbf16, #tpu.memory_space<vmem>>, vector<2x16x128xbf16>,
    %31 = vector.extract_strided_slice %28 {offsets = [2, 0, 0], sizes = [2, 16, 128], strides = [1, 1, 1]} : vector<4x16x128xbf16> to vector<2x16x128xbf16>
    %c10 = arith.constant 10 : index
    %c16_29 = arith.constant 16 : index
    %c0_30 = arith.constant 0 : index
    %32 = vector.load %arg11[%c10, %c16_29, %c0_30] : memref<12x34x128xbf16, #tpu.memory_space<vmem>>, vector<2x16x128xbf16>
    tpu.vector_store %arg11[%c10, %c16_29, %c0_30], %31 {strides = array<i32>} : memref<12x34x128xbf16, #tpu.memory_space<vmem>>, vector<2x16x128xbf16>,
    %c0_i32 = arith.constant 0 : i32
    %33 = arith.cmpi eq, %arg1, %c0_i32 : i32
    %34 = arith.extui %33 : i1 to i32
    %c0_i32_31 = arith.constant 0 : i32
    %35 = arith.cmpi ne, %34, %c0_i32_31 : i32
    scf.if %35 {
      %cst_101 = arith.constant 0.000000e+00 : bf16
      %110 = vector.broadcast %cst_101 : bf16 to vector<2x16x128xbf16>
      %c0_102 = arith.constant 0 : index
      %c16_103 = arith.constant 16 : index
      %c0_104 = arith.constant 0 : index
      %111 = vector.load %arg11[%c0_102, %c16_103, %c0_104] : memref<12x34x128xbf16, #tpu.memory_space<vmem>>, vector<2x16x128xbf16>
      tpu.vector_store %arg11[%c0_102, %c16_103, %c0_104], %110 {strides = array<i32>} : memref<12x34x128xbf16, #tpu.memory_space<vmem>>, vector<2x16x128xbf16>,
    } else {
    }
    %c1_i32 = arith.constant 1 : i32
    %36 = arith.cmpi eq, %arg1, %c1_i32 : i32
    %37 = arith.extui %36 : i1 to i32
    %c0_i32_32 = arith.constant 0 : i32
    %38 = arith.cmpi ne, %37, %c0_i32_32 : i32
    scf.if %38 {
      %cst_101 = arith.constant 0.000000e+00 : bf16
      %110 = vector.broadcast %cst_101 : bf16 to vector<2x16x128xbf16>
      %c10_102 = arith.constant 10 : index
      %c16_103 = arith.constant 16 : index
      %c0_104 = arith.constant 0 : index
      %111 = vector.load %arg11[%c10_102, %c16_103, %c0_104] : memref<12x34x128xbf16, #tpu.memory_space<vmem>>, vector<2x16x128xbf16>
      tpu.vector_store %arg11[%c10_102, %c16_103, %c0_104], %110 {strides = array<i32>} : memref<12x34x128xbf16, #tpu.memory_space<vmem>>, vector<2x16x128xbf16>,
    } else {
    }
    %c0_33 = arith.constant 0 : index
    %c14 = arith.constant 14 : index
    %c0_34 = arith.constant 0 : index
    %39 = vector.load %arg11[%c0_33, %c14, %c0_34] : memref<12x34x128xbf16, #tpu.memory_space<vmem>>, vector<8x16x128xbf16>
    %40 = vector.shape_cast %39 : vector<8x16x128xbf16> to vector<128x128xbf16>
    %c0_35 = arith.constant 0 : index
    %c0_36 = arith.constant 0 : index
    %c0_37 = arith.constant 0 : index
    %41 = vector.load %arg6[%c0_35, %c0_36, %c0_37] : memref<9x128x128xbf16, #tpu.memory_space<vmem>>, vector<1x128x128xbf16>
    %42 = vector.shape_cast %41 : vector<1x128x128xbf16> to vector<128x128xbf16>
    %cst_38 = arith.constant dense<0.000000e+00> : vector<128x128xf32>
    %43 = tpu.matmul %40, %42, %cst_38 {dimension_numbers = #tpu.dot_dimension_numbers<[1], [0], [0], [1], [0, 0, 1, 1], [], []>} : vector<128x128xbf16>, vector<128x128xbf16>, vector<128x128xf32> -> vector<128x128xf32>
    %c0_39 = arith.constant 0 : index
    %c16_40 = arith.constant 16 : index
    %c0_41 = arith.constant 0 : index
    %44 = vector.load %arg11[%c0_39, %c16_40, %c0_41] : memref<12x34x128xbf16, #tpu.memory_space<vmem>>, vector<8x16x128xbf16>
    %45 = vector.shape_cast %44 : vector<8x16x128xbf16> to vector<128x128xbf16>
    %c1 = arith.constant 1 : index
    %c0_42 = arith.constant 0 : index
    %c0_43 = arith.constant 0 : index
    %46 = vector.load %arg6[%c1, %c0_42, %c0_43] : memref<9x128x128xbf16, #tpu.memory_space<vmem>>, vector<1x128x128xbf16>
    %47 = vector.shape_cast %46 : vector<1x128x128xbf16> to vector<128x128xbf16>
    %cst_44 = arith.constant dense<0.000000e+00> : vector<128x128xf32>
    %48 = tpu.matmul %45, %47, %cst_44 {dimension_numbers = #tpu.dot_dimension_numbers<[1], [0], [0], [1], [0, 0, 1, 1], [], []>} : vector<128x128xbf16>, vector<128x128xbf16>, vector<128x128xf32> -> vector<128x128xf32>
    %49 = arith.addf %43, %48 : vector<128x128xf32>
    %c0_45 = arith.constant 0 : index
    %c18 = arith.constant 18 : index
    %c0_46 = arith.constant 0 : index
    %50 = vector.load %arg11[%c0_45, %c18, %c0_46] : memref<12x34x128xbf16, #tpu.memory_space<vmem>>, vector<8x16x128xbf16>
    %51 = vector.shape_cast %50 : vector<8x16x128xbf16> to vector<128x128xbf16>
    %c2_47 = arith.constant 2 : index
    %c0_48 = arith.constant 0 : index
    %c0_49 = arith.constant 0 : index
    %52 = vector.load %arg6[%c2_47, %c0_48, %c0_49] : memref<9x128x128xbf16, #tpu.memory_space<vmem>>, vector<1x128x128xbf16>
    %53 = vector.shape_cast %52 : vector<1x128x128xbf16> to vector<128x128xbf16>
    %cst_50 = arith.constant dense<0.000000e+00> : vector<128x128xf32>
    %54 = tpu.matmul %51, %53, %cst_50 {dimension_numbers = #tpu.dot_dimension_numbers<[1], [0], [0], [1], [0, 0, 1, 1], [], []>} : vector<128x128xbf16>, vector<128x128xbf16>, vector<128x128xf32> -> vector<128x128xf32>
    %55 = arith.addf %49, %54 : vector<128x128xf32>
    %c2_51 = arith.constant 2 : index
    %c14_52 = arith.constant 14 : index
    %c0_53 = arith.constant 0 : index
    %56 = vector.load %arg11[%c2_51, %c14_52, %c0_53] : memref<12x34x128xbf16, #tpu.memory_space<vmem>>, vector<8x16x128xbf16>
    %57 = vector.shape_cast %56 : vector<8x16x128xbf16> to vector<128x128xbf16>
    %c3 = arith.constant 3 : index
    %c0_54 = arith.constant 0 : index
    %c0_55 = arith.constant 0 : index
    %58 = vector.load %arg6[%c3, %c0_54, %c0_55] : memref<9x128x128xbf16, #tpu.memory_space<vmem>>, vector<1x128x128xbf16>
    %59 = vector.shape_cast %58 : vector<1x128x128xbf16> to vector<128x128xbf16>
    %cst_56 = arith.constant dense<0.000000e+00> : vector<128x128xf32>
    %60 = tpu.matmul %57, %59, %cst_56 {dimension_numbers = #tpu.dot_dimension_numbers<[1], [0], [0], [1], [0, 0, 1, 1], [], []>} : vector<128x128xbf16>, vector<128x128xbf16>, vector<128x128xf32> -> vector<128x128xf32>
    %61 = arith.addf %55, %60 : vector<128x128xf32>
    %c2_57 = arith.constant 2 : index
    %c16_58 = arith.constant 16 : index
    %c0_59 = arith.constant 0 : index
    %62 = vector.load %arg11[%c2_57, %c16_58, %c0_59] : memref<12x34x128xbf16, #tpu.memory_space<vmem>>, vector<8x16x128xbf16>
    %63 = vector.shape_cast %62 : vector<8x16x128xbf16> to vector<128x128xbf16>
    %c4 = arith.constant 4 : index
    %c0_60 = arith.constant 0 : index
    %c0_61 = arith.constant 0 : index
    %64 = vector.load %arg6[%c4, %c0_60, %c0_61] : memref<9x128x128xbf16, #tpu.memory_space<vmem>>, vector<1x128x128xbf16>
    %65 = vector.shape_cast %64 : vector<1x128x128xbf16> to vector<128x128xbf16>
    %cst_62 = arith.constant dense<0.000000e+00> : vector<128x128xf32>
    %66 = tpu.matmul %63, %65, %cst_62 {dimension_numbers = #tpu.dot_dimension_numbers<[1], [0], [0], [1], [0, 0, 1, 1], [], []>} : vector<128x128xbf16>, vector<128x128xbf16>, vector<128x128xf32> -> vector<128x128xf32>
    %67 = arith.addf %61, %66 : vector<128x128xf32>
    %c2_63 = arith.constant 2 : index
    %c18_64 = arith.constant 18 : index
    %c0_65 = arith.constant 0 : index
    %68 = vector.load %arg11[%c2_63, %c18_64, %c0_65] : memref<12x34x128xbf16, #tpu.memory_space<vmem>>, vector<8x16x128xbf16>
    %69 = vector.shape_cast %68 : vector<8x16x128xbf16> to vector<128x128xbf16>
    %c5 = arith.constant 5 : index
    %c0_66 = arith.constant 0 : index
    %c0_67 = arith.constant 0 : index
    %70 = vector.load %arg6[%c5, %c0_66, %c0_67] : memref<9x128x128xbf16, #tpu.memory_space<vmem>>, vector<1x128x128xbf16>
    %71 = vector.shape_cast %70 : vector<1x128x128xbf16> to vector<128x128xbf16>
    %cst_68 = arith.constant dense<0.000000e+00> : vector<128x128xf32>
    %72 = tpu.matmul %69, %71, %cst_68 {dimension_numbers = #tpu.dot_dimension_numbers<[1], [0], [0], [1], [0, 0, 1, 1], [], []>} : vector<128x128xbf16>, vector<128x128xbf16>, vector<128x128xf32> -> vector<128x128xf32>
    %73 = arith.addf %67, %72 : vector<128x128xf32>
    %c4_69 = arith.constant 4 : index
    %c14_70 = arith.constant 14 : index
    %c0_71 = arith.constant 0 : index
    %74 = vector.load %arg11[%c4_69, %c14_70, %c0_71] : memref<12x34x128xbf16, #tpu.memory_space<vmem>>, vector<8x16x128xbf16>
    %75 = vector.shape_cast %74 : vector<8x16x128xbf16> to vector<128x128xbf16>
    %c6 = arith.constant 6 : index
    %c0_72 = arith.constant 0 : index
    %c0_73 = arith.constant 0 : index
    %76 = vector.load %arg6[%c6, %c0_72, %c0_73] : memref<9x128x128xbf16, #tpu.memory_space<vmem>>, vector<1x128x128xbf16>
    %77 = vector.shape_cast %76 : vector<1x128x128xbf16> to vector<128x128xbf16>
    %cst_74 = arith.constant dense<0.000000e+00> : vector<128x128xf32>
    %78 = tpu.matmul %75, %77, %cst_74 {dimension_numbers = #tpu.dot_dimension_numbers<[1], [0], [0], [1], [0, 0, 1, 1], [], []>} : vector<128x128xbf16>, vector<128x128xbf16>, vector<128x128xf32> -> vector<128x128xf32>
    %79 = arith.addf %73, %78 : vector<128x128xf32>
    %c4_75 = arith.constant 4 : index
    %c16_76 = arith.constant 16 : index
    %c0_77 = arith.constant 0 : index
    %80 = vector.load %arg11[%c4_75, %c16_76, %c0_77] : memref<12x34x128xbf16, #tpu.memory_space<vmem>>, vector<8x16x128xbf16>
    %81 = vector.shape_cast %80 : vector<8x16x128xbf16> to vector<128x128xbf16>
    %c7 = arith.constant 7 : index
    %c0_78 = arith.constant 0 : index
    %c0_79 = arith.constant 0 : index
    %82 = vector.load %arg6[%c7, %c0_78, %c0_79] : memref<9x128x128xbf16, #tpu.memory_space<vmem>>, vector<1x128x128xbf16>
    %83 = vector.shape_cast %82 : vector<1x128x128xbf16> to vector<128x128xbf16>
    %cst_80 = arith.constant dense<0.000000e+00> : vector<128x128xf32>
    %84 = tpu.matmul %81, %83, %cst_80 {dimension_numbers = #tpu.dot_dimension_numbers<[1], [0], [0], [1], [0, 0, 1, 1], [], []>} : vector<128x128xbf16>, vector<128x128xbf16>, vector<128x128xf32> -> vector<128x128xf32>
    %85 = arith.addf %79, %84 : vector<128x128xf32>
    %c4_81 = arith.constant 4 : index
    %c18_82 = arith.constant 18 : index
    %c0_83 = arith.constant 0 : index
    %86 = vector.load %arg11[%c4_81, %c18_82, %c0_83] : memref<12x34x128xbf16, #tpu.memory_space<vmem>>, vector<8x16x128xbf16>
    %87 = vector.shape_cast %86 : vector<8x16x128xbf16> to vector<128x128xbf16>
    %c8 = arith.constant 8 : index
    %c0_84 = arith.constant 0 : index
    %c0_85 = arith.constant 0 : index
    %88 = vector.load %arg6[%c8, %c0_84, %c0_85] : memref<9x128x128xbf16, #tpu.memory_space<vmem>>, vector<1x128x128xbf16>
    %89 = vector.shape_cast %88 : vector<1x128x128xbf16> to vector<128x128xbf16>
    %cst_86 = arith.constant dense<0.000000e+00> : vector<128x128xf32>
    %90 = tpu.matmul %87, %89, %cst_86 {dimension_numbers = #tpu.dot_dimension_numbers<[1], [0], [0], [1], [0, 0, 1, 1], [], []>} : vector<128x128xbf16>, vector<128x128xbf16>, vector<128x128xf32> -> vector<128x128xf32>
    %91 = arith.addf %85, %90 : vector<128x128xf32>
    %c0_87 = arith.constant 0 : index
    %c0_88 = arith.constant 0 : index
    %92 = vector.load %arg7[%c0_87, %c0_88] : memref<1x128xf32, #tpu.memory_space<vmem>>, vector<1x128xf32>
    %93 = vector.broadcast %92 : vector<1x128xf32> to vector<128x128xf32>
    %94 = arith.addf %91, %93 : vector<128x128xf32>
    %cst_89 = arith.constant 0.000000e+00 : f32
    %95 = vector.broadcast %cst_89 : f32 to vector<128x128xf32>
    %96 = arith.maximumf %94, %95 : vector<128x128xf32>
    %97 = arith.truncf %96 : vector<128x128xf32> to vector<128x128xbf16>
    %c0_90 = arith.constant 0 : index
    %c0_91 = arith.constant 0 : index
    %98 = vector.load %arg8[%c0_90, %c0_91] : memref<128x256xbf16, #tpu.memory_space<vmem>>, vector<128x256xbf16>
    %cst_92 = arith.constant dense<0.000000e+00> : vector<128x256xf32>
    %99 = tpu.matmul %97, %98, %cst_92 {dimension_numbers = #tpu.dot_dimension_numbers<[1], [0], [0], [1], [0, 0, 1, 1], [], []>} : vector<128x128xbf16>, vector<128x256xbf16>, vector<128x256xf32> -> vector<128x256xf32>
    %c0_93 = arith.constant 0 : index
    %c0_94 = arith.constant 0 : index
    %100 = vector.load %arg9[%c0_93, %c0_94] : memref<1x256xf32, #tpu.memory_space<vmem>>, vector<1x256xf32>
    %101 = vector.broadcast %100 : vector<1x256xf32> to vector<128x256xf32>
    %102 = arith.addf %99, %101 : vector<128x256xf32>
    %cst_95 = arith.constant 0.000000e+00 : f32
    %103 = vector.broadcast %cst_95 : f32 to vector<128x256xf32>
    %104 = arith.maximumf %102, %103 : vector<128x256xf32>
    %105 = vector.shape_cast %104 : vector<128x256xf32> to vector<1x8x16x256xf32>
    %106 = arith.addf %105, %4 : vector<1x8x16x256xf32>
    %cst_96 = arith.constant 0.000000e+00 : f32
    %107 = vector.broadcast %cst_96 : f32 to vector<1x8x16x256xf32>
    %108 = arith.maximumf %106, %107 : vector<1x8x16x256xf32>
    %c0_97 = arith.constant 0 : index
    %c0_98 = arith.constant 0 : index
    %c0_99 = arith.constant 0 : index
    %c0_100 = arith.constant 0 : index
    %109 = vector.load %arg10[%c0_97, %c0_98, %c0_99, %c0_100] : memref<1x8x16x256xf32, #tpu.memory_space<vmem>>, vector<1x8x16x256xf32>
    tpu.vector_store %arg10[%c0_97, %c0_98, %c0_99, %c0_100], %108 {strides = array<i32>} : memref<1x8x16x256xf32, #tpu.memory_space<vmem>>, vector<1x8x16x256xf32>,
    return
  }
  func.func @transform_0(%arg0: i32, %arg1: i32) -> (i32, i32, i32, i32) {
    %c0_i32 = arith.constant 0 : i32
    %c0_i32_0 = arith.constant 0 : i32
    %c0_i32_1 = arith.constant 0 : i32
    return %arg0, %arg1, %c0_i32, %c0_i32_0 : i32, i32, i32, i32
  }
  func.func @transform_1(%arg0: i32, %arg1: i32) -> (i32, i32, i32, i32) {
    %c2_i32 = arith.constant 2 : i32
    %0 = arith.muli %arg0, %c2_i32 : i32
    %1 = arith.addi %0, %arg1 : i32
    %c0_i32 = arith.constant 0 : i32
    %c0_i32_0 = arith.constant 0 : i32
    %c0_i32_1 = arith.constant 0 : i32
    %c0_i32_2 = arith.constant 0 : i32
    return %1, %c0_i32, %c0_i32_0, %c0_i32_1 : i32, i32, i32, i32
  }
  func.func @transform_2(%arg0: i32, %arg1: i32) -> (i32, i32) {
    %c0_i32 = arith.constant 0 : i32
    %c0_i32_0 = arith.constant 0 : i32
    %c0_i32_1 = arith.constant 0 : i32
    return %c0_i32, %c0_i32_0 : i32, i32
  }
  func.func @transform_3(%arg0: i32, %arg1: i32) -> (i32, i32) {
    %c0_i32 = arith.constant 0 : i32
    %c0_i32_0 = arith.constant 0 : i32
    %c0_i32_1 = arith.constant 0 : i32
    return %c0_i32, %c0_i32_0 : i32, i32
  }
  func.func @transform_4(%arg0: i32, %arg1: i32) -> (i32, i32, i32) {
    %c0_i32 = arith.constant 0 : i32
    %c0_i32_0 = arith.constant 0 : i32
    %c0_i32_1 = arith.constant 0 : i32
    %c0_i32_2 = arith.constant 0 : i32
    return %c0_i32, %c0_i32_0, %c0_i32_1 : i32, i32, i32
  }
  func.func @transform_5(%arg0: i32, %arg1: i32) -> (i32, i32) {
    %c0_i32 = arith.constant 0 : i32
    %c0_i32_0 = arith.constant 0 : i32
    %c0_i32_1 = arith.constant 0 : i32
    return %c0_i32, %c0_i32_0 : i32, i32
  }
  func.func @transform_6(%arg0: i32, %arg1: i32) -> (i32, i32) {
    %c0_i32 = arith.constant 0 : i32
    %c0_i32_0 = arith.constant 0 : i32
    %c0_i32_1 = arith.constant 0 : i32
    return %c0_i32, %c0_i32_0 : i32, i32
  }
  func.func @transform_7(%arg0: i32, %arg1: i32) -> (i32, i32) {
    %c0_i32 = arith.constant 0 : i32
    %c0_i32_0 = arith.constant 0 : i32
    %c0_i32_1 = arith.constant 0 : i32
    return %c0_i32, %c0_i32_0 : i32, i32
  }
  func.func @transform_8(%arg0: i32, %arg1: i32) -> (i32, i32, i32, i32) {
    %c0_i32 = arith.constant 0 : i32
    %c0_i32_0 = arith.constant 0 : i32
    %c0_i32_1 = arith.constant 0 : i32
    return %arg0, %arg1, %c0_i32, %c0_i32_0 : i32, i32, i32, i32
  }
}

</mosaic_0001>

<llo_original>
// kernel: tpu_custom_call.1
$region0: #{tpu_custom_call.1}
  #allocation0 [shape = 'u32[]', space=smem, size = 0x4, offset = 0x4, fixed_abs, tag = 'smem constant byte address 0x4 - core index']
  #allocation1 [shape = 'u32[144,128]{1,0:T(1,128)}', space=vmem, size = 0x12000, scoped, tag = 'internal scratch']
  #allocation2 [shape = 'bf16[12,34,128]{2,1,0:T(8,128)(2,1)}', space=vmem, size = 0x1e000, scoped, tag = 'scratch operand']
  %s0 = inlined_call_operand.hbm [shape: f32[2,16,16,256], index: 0, kind: input, shape index: {}]
  %s1 = inlined_call_operand.hbm [shape: f32[4,4,16,256], index: 1, kind: input, shape index: {}]
  %s2 = inlined_call_operand.hbm [shape: bf16[256,128], index: 2, kind: input, shape index: {}]
  %s3 = inlined_call_operand.vmem [shape: f32[1,128], index: 3, kind: input, shape index: {}]
  %s4 = inlined_call_operand.hbm [shape: bf16[9,128,128], index: 4, kind: input, shape index: {}]
  %s5 = inlined_call_operand.vmem [shape: f32[1,128], index: 5, kind: input, shape index: {}]
  %s6 = inlined_call_operand.hbm [shape: bf16[128,256], index: 6, kind: input, shape index: {}]
  %s7 = inlined_call_operand.vmem [shape: f32[1,256], index: 7, kind: input, shape index: {}]
  %s8 = inlined_call_operand.hbm [shape: f32[2,16,16,256], index: 8, kind: output, shape index: {}]
  %s9 = sld [smem:[#allocation0]]
  $region93: #{tpu_custom_call.1} parent=0
    _
  %s11 = ssub.s32 1, %s9
  %s12 = scalar_select 0, %s11, %s9
  $region1: #{tpu_custom_call.1} parent=0
    #allocation3 [shape = 'u8[262144]{0}', space=vmem, size = 0x40000, scoped, tag = 'input window, operand 0']
    #allocation4 [shape = 's32[2]{0}', space=sflag, size = 0x8, scoped, tag = 'scoped memory for tpu_custom_call.1']
    #allocation5 [shape = 's32[2]{0}', space=sflag, size = 0x8, scoped, tag = 'scoped memory for tpu_custom_call.1']
    #allocation6 [shape = 'u8[131072]{0}', space=vmem, size = 0x20000, scoped, tag = 'input window, operand 1']
    #allocation7 [shape = 's32[2]{0}', space=sflag, size = 0x8, scoped, tag = 'scoped memory for tpu_custom_call.1']
    #allocation8 [shape = 'u8[65536]{0}', space=vmem, size = 0x10000, scoped, tag = 'input window, operand 2, single buffered']
    #allocation9 [shape = 'u8[294912]{0}', space=vmem, size = 0x48000, scoped, tag = 'input window, operand 4, single buffered']
    #allocation10 [shape = 's32[1]{0}', space=sflag, size = 0x4, scoped, tag = 'scoped memory for tpu_custom_call.1']
    #allocation11 [shape = 'u8[65536]{0}', space=vmem, size = 0x10000, scoped, tag = 'input window, operand 6, single buffered']
    #allocation12 [shape = 'u8[262144]{0}', space=vmem, size = 0x40000, scoped, tag = 'output window, operand 0']
    %13 = vsyncpa [#allocation4], 0
    %s14 = scalar_lea.sflag [#allocation4], 1
    %15 = vsyncpa %s14, 0
    %16 = vsyncpa [#allocation7], 0
    %s17 = scalar_lea.sflag [#allocation7], 1
    %18 = vsyncpa %s17, 0
    %19 = vsyncpa [#allocation10], 0
    %20 = vsyncpa [#allocation5], 0
    %s21 = scalar_lea.sflag [#allocation5], 1
    %22 = vsyncpa %s21, 0
    loop: start=0, step=1, limit=6
    $region2: #{tpu_custom_call.1} parent=1 // loop_pre_header
      _
    $region3: #{tpu_custom_call.1} parent=1 // loop_header
      %s24 = sphi 0, %s28
      %p25 = scmp.ge.s32.totalorder %s24, 6
      %s31 = sphi 0, %s43
      %s32 = sphi 0, %s39
      %s33 = sphi 0, %s31
      %s34 = sphi 0, %s32
      %s35 = sphi 0, %s33
      %s36 = sphi 0, %s34
      %s48 = sphi 0, %s50
      %s51 = sphi 0, %s48
      %s52 = sphi 0, %s51
      %s68 = sphi 0, %s52
      %s78 = sphi 0, %s80
      %s81 = sphi 0, %s78
      %s82 = sphi 0, %s81
      %s98 = sphi 0, %s82
      %s102 = sphi 0, %s102
      %s104 = sphi 0, %s102
      %s105 = sphi 0, %s104
      %s119 = sphi 0, %s105
      %s123 = sphi 0, %s123
      %s125 = sphi 0, %s123
      %s126 = sphi 0, %s125
      %s140 = sphi 0, %s126
      %s144 = sphi 0, %s144
      %s146 = sphi 0, %s144
      %s147 = sphi 0, %s146
      %s161 = sphi 0, %s147
      %s165 = sphi 0, %s165
      %s167 = sphi 0, %s165
      %s168 = sphi 0, %s167
      %s182 = sphi 0, %s168
      %s186 = sphi 0, %s186
      %s188 = sphi 0, %s186
      %s189 = sphi 0, %s188
      %s203 = sphi 0, %s189
      %s207 = sphi 0, %s207
      %s209 = sphi 0, %s207
      %s210 = sphi 0, %s209
      %s224 = sphi 0, %s210
      %s232 = sphi 0, %s234
      %s235 = sphi 0, %s232
      %s236 = sphi 0, %s235
      %s252 = sphi 0, %s236
    $region4: #{tpu_custom_call.1} parent=1 // loop_header_branch
      %27 = sbr.rel (%p25) target = $region8
    $region5: #{tpu_custom_call.1} parent=1 // loop_body
      %s29 = ssub.s32 %s24, 1
      %s30 = ssub.s32 %s24, 2
      %s37 = sadd.s32 1, %s32
      %p38 = scmp.ge.s32.totalorder %s37, 2
      %s39 = scalar_select %p38, 0, %s37
      %s40 = sadd.s32 1, %s31
      %s41 = scalar_select %p38, %s40, %s31
      %p42 = scmp.ge.s32.totalorder %s41, 2
      %s43 = scalar_select %p42, 0, %s41
      %s44 = ssub.s32 %s31, %s43
      %s45 = ssub.s32 %s32, %s39
      %s46 = sor.u32 %s44, %s45
      %p47 = scmp.eq.s32.totalorder %s46, 0
      %s49 = sadd.s32 %s48, 1
      %s50 = scalar_select %p47, %s48, %s49
      %p53 = pneg %p47
      %p54 = scmp.eq.s32.totalorder %s24, 3
      %p55 = por %p53, %p54
      %p56 = scmp.ne.s32.totalorder %s48, %s51
      %p57 = scmp.eq.s32.totalorder %s24, 0
      %p58 = por %p56, %p57
      %p59 = scmp.ne.s32.totalorder %s48, %s51
      %p60 = scmp.eq.s32.totalorder %s29, 3
      %p61 = por %p59, %p60
      %p62 = scmp.ne.s32.totalorder %s51, %s52
      %p63 = scmp.eq.s32.totalorder %s29, 0
      %p64 = por %p62, %p63
      %p65 = scmp.ne.s32.totalorder %s51, %s52
      %p66 = scmp.eq.s32.totalorder %s30, 3
      %p67 = por %p65, %p66
      %p69 = scmp.ne.s32.totalorder %s52, %s68
      %p70 = scmp.eq.s32.totalorder %s30, 0
      %p71 = por %p69, %p70
      %s72 = smul.u32 %s31, 2
      %s73 = sadd.s32 %s72, %s32
      %s74 = smul.u32 %s43, 2
      %s75 = sadd.s32 %s74, %s39
      %s76 = ssub.s32 %s73, %s75
      %p77 = scmp.eq.s32.totalorder %s76, 0
      %s79 = sadd.s32 %s78, 1
      %s80 = scalar_select %p77, %s78, %s79
      %p83 = pneg %p77
      %p84 = scmp.eq.s32.totalorder %s24, 3
      %p85 = por %p83, %p84
      %p86 = scmp.ne.s32.totalorder %s78, %s81
      %p87 = scmp.eq.s32.totalorder %s24, 0
      %p88 = por %p86, %p87
      %p89 = scmp.ne.s32.totalorder %s78, %s81
      %p90 = scmp.eq.s32.totalorder %s29, 3
      %p91 = por %p89, %p90
      %p92 = scmp.ne.s32.totalorder %s81, %s82
      %p93 = scmp.eq.s32.totalorder %s29, 0
      %p94 = por %p92, %p93
      %p95 = scmp.ne.s32.totalorder %s81, %s82
      %p96 = scmp.eq.s32.totalorder %s30, 3
      %p97 = por %p95, %p96
      %p99 = scmp.ne.s32.totalorder %s82, %s98
      %p100 = scmp.eq.s32.totalorder %s30, 0
      %p101 = por %p99, %p100
      %s103 = sadd.s32 %s102, 1
      %p106 = scmp.eq.s32.totalorder %s24, 3
      %p107 = scmp.ne.s32.totalorder %s102, %s104
      %p108 = scmp.eq.s32.totalorder %s24, 0
      %p109 = por %p107, %p108
      %p110 = scmp.ne.s32.totalorder %s102, %s104
      %p111 = scmp.eq.s32.totalorder %s29, 3
      %p112 = por %p110, %p111
      %p113 = scmp.ne.s32.totalorder %s104, %s105
      %p114 = scmp.eq.s32.totalorder %s29, 0
      %p115 = por %p113, %p114
      %p116 = scmp.ne.s32.totalorder %s104, %s105
      %p117 = scmp.eq.s32.totalorder %s30, 3
      %p118 = por %p116, %p117
      %p120 = scmp.ne.s32.totalorder %s105, %s119
      %p121 = scmp.eq.s32.totalorder %s30, 0
      %p122 = por %p120, %p121
      %s124 = sadd.s32 %s123, 1
      %p127 = scmp.eq.s32.totalorder %s24, 3
      %p128 = scmp.ne.s32.totalorder %s123, %s125
      %p129 = scmp.eq.s32.totalorder %s24, 0
      %p130 = por %p128, %p129
      %p131 = scmp.ne.s32.totalorder %s123, %s125
      %p132 = scmp.eq.s32.totalorder %s29, 3
      %p133 = por %p131, %p132
      %p134 = scmp.ne.s32.totalorder %s125, %s126
      %p135 = scmp.eq.s32.totalorder %s29, 0
      %p136 = por %p134, %p135
      %p137 = scmp.ne.s32.totalorder %s125, %s126
      %p138 = scmp.eq.s32.totalorder %s30, 3
      %p139 = por %p137, %p138
      %p141 = scmp.ne.s32.totalorder %s126, %s140
      %p142 = scmp.eq.s32.totalorder %s30, 0
      %p143 = por %p141, %p142
      %s145 = sadd.s32 %s144, 1
      %p148 = scmp.eq.s32.totalorder %s24, 3
      %p149 = scmp.ne.s32.totalorder %s144, %s146
      %p150 = scmp.eq.s32.totalorder %s24, 0
      %p151 = por %p149, %p150
      %p152 = scmp.ne.s32.totalorder %s144, %s146
      %p153 = scmp.eq.s32.totalorder %s29, 3
      %p154 = por %p152, %p153
      %p155 = scmp.ne.s32.totalorder %s146, %s147
      %p156 = scmp.eq.s32.totalorder %s29, 0
      %p157 = por %p155, %p156
      %p158 = scmp.ne.s32.totalorder %s146, %s147
      %p159 = scmp.eq.s32.totalorder %s30, 3
      %p160 = por %p158, %p159
      %p162 = scmp.ne.s32.totalorder %s147, %s161
      %p163 = scmp.eq.s32.totalorder %s30, 0
      %p164 = por %p162, %p163
      %s166 = sadd.s32 %s165, 1
      %p169 = scmp.eq.s32.totalorder %s24, 3
      %p170 = scmp.ne.s32.totalorder %s165, %s167
      %p171 = scmp.eq.s32.totalorder %s24, 0
      %p172 = por %p170, %p171
      %p173 = scmp.ne.s32.totalorder %s165, %s167
      %p174 = scmp.eq.s32.totalorder %s29, 3
      %p175 = por %p173, %p174
      %p176 = scmp.ne.s32.totalorder %s167, %s168
      %p177 = scmp.eq.s32.totalorder %s29, 0
      %p178 = por %p176, %p177
      %p179 = scmp.ne.s32.totalorder %s167, %s168
      %p180 = scmp.eq.s32.totalorder %s30, 3
      %p181 = por %p179, %p180
      %p183 = scmp.ne.s32.totalorder %s168, %s182
      %p184 = scmp.eq.s32.totalorder %s30, 0
      %p185 = por %p183, %p184
      %s187 = sadd.s32 %s186, 1
      %p190 = scmp.eq.s32.totalorder %s24, 3
      %p191 = scmp.ne.s32.totalorder %s186, %s188
      %p192 = scmp.eq.s32.totalorder %s24, 0
      %p193 = por %p191, %p192
      %p194 = scmp.ne.s32.totalorder %s186, %s188
      %p195 = scmp.eq.s32.totalorder %s29, 3
      %p196 = por %p194, %p195
      %p197 = scmp.ne.s32.totalorder %s188, %s189
      %p198 = scmp.eq.s32.totalorder %s29, 0
      %p199 = por %p197, %p198
      %p200 = scmp.ne.s32.totalorder %s188, %s189
      %p201 = scmp.eq.s32.totalorder %s30, 3
      %p202 = por %p200, %p201
      %p204 = scmp.ne.s32.totalorder %s189, %s203
      %p205 = scmp.eq.s32.totalorder %s30, 0
      %p206 = por %p204, %p205
      %s208 = sadd.s32 %s207, 1
      %p211 = scmp.eq.s32.totalorder %s24, 3
      %p212 = scmp.ne.s32.totalorder %s207, %s209
      %p213 = scmp.eq.s32.totalorder %s24, 0
      %p214 = por %p212, %p213
      %p215 = scmp.ne.s32.totalorder %s207, %s209
      %p216 = scmp.eq.s32.totalorder %s29, 3
      %p217 = por %p215, %p216
      %p218 = scmp.ne.s32.totalorder %s209, %s210
      %p219 = scmp.eq.s32.totalorder %s29, 0
      %p220 = por %p218, %p219
      %p221 = scmp.ne.s32.totalorder %s209, %s210
      %p222 = scmp.eq.s32.totalorder %s30, 3
      %p223 = por %p221, %p222
      %p225 = scmp.ne.s32.totalorder %s210, %s224
      %p226 = scmp.eq.s32.totalorder %s30, 0
      %p227 = por %p225, %p226
      %s228 = ssub.s32 %s31, %s43
      %s229 = ssub.s32 %s32, %s39
      %s230 = sor.u32 %s228, %s229
      %p231 = scmp.eq.s32.totalorder %s230, 0
      %s233 = sadd.s32 %s232, 1
      %s234 = scalar_select %p231, %s232, %s233
      %p237 = pneg %p231
      %p238 = scmp.eq.s32.totalorder %s24, 3
      %p239 = por %p237, %p238
      %p240 = scmp.ne.s32.totalorder %s232, %s235
      %p241 = scmp.eq.s32.totalorder %s24, 0
      %p242 = por %p240, %p241
      %p243 = scmp.ne.s32.totalorder %s232, %s235
      %p244 = scmp.eq.s32.totalorder %s29, 3
      %p245 = por %p243, %p244
      %p246 = scmp.ne.s32.totalorder %s235, %s236
      %p247 = scmp.eq.s32.totalorder %s29, 0
      %p248 = por %p246, %p247
      %p249 = scmp.ne.s32.totalorder %s235, %s236
      %p250 = scmp.eq.s32.totalorder %s30, 3
      %p251 = por %p249, %p250
      %p253 = scmp.ne.s32.totalorder %s236, %s252
      %p254 = scmp.eq.s32.totalorder %s30, 0
      %p255 = por %p253, %p254
      %p256 = scmp.le.s32.totalorder 1, %s24
      %p257 = scmp.lt.s32.totalorder %s24, 5
      %p258 = pnand %p256, %p257
      %p259 = pneg %p258
      // Predicated region
      $region9: #{tpu_custom_call.1} parent=5 // pred_check
        _
      $region10: #{tpu_custom_call.1} parent=5 // pred_check_branch
        %261 = sbr.rel (%p258) target = $region12
      $region11: #{tpu_custom_call.1} parent=5 // pred_region
        %s262 = ssub.s32 %s24, 1
        // Predicated region
        $region13: #{tpu_custom_call.1} parent=11 // pred_check
          %p263 = pneg %p115
        $region14: #{tpu_custom_call.1} parent=11 // pred_check_branch
          %265 = sbr.rel (%p263) target = $region16
        $region15: #{tpu_custom_call.1} parent=11 // pred_region
          %s267 = ssub.s32 2048, 2048
          %268 = vsyncadd [#allocation7], %s267
          %s269 = sshll.u32 [#allocation8], 4
          %s270 = int_to_ptr.vmem [resolvable:$true] %s269
          %275 = dma.hbm_to_vmem [thread:$0]  %s2, 2048, %s270, [#allocation7], 64, 64, 4
        $region16: #{tpu_custom_call.1} parent=11 // pred_fallthru
          _
        // Predicated region
        $region17: #{tpu_custom_call.1} parent=11 // pred_check
          %p276 = pneg %p136
        $region18: #{tpu_custom_call.1} parent=11 // pred_check_branch
          %278 = sbr.rel (%p276) target = $region20
        $region19: #{tpu_custom_call.1} parent=11 // pred_region
          _
        $region20: #{tpu_custom_call.1} parent=11 // pred_fallthru
          _
        // Predicated region
        $region21: #{tpu_custom_call.1} parent=11 // pred_check
          %p279 = pneg %p157
        $region22: #{tpu_custom_call.1} parent=11 // pred_check_branch
          %281 = sbr.rel (%p279) target = $region24
        $region23: #{tpu_custom_call.1} parent=11 // pred_region
          %s283 = ssub.s32 9216, 9216
          %284 = vsyncadd [#allocation10], %s283
          %s285 = sshll.u32 [#allocation9], 4
          %s286 = int_to_ptr.vmem [resolvable:$true] %s285
          %291 = dma.hbm_to_vmem [thread:$0]  %s4, 9216, %s286, [#allocation10], 64, 64, 4
        $region24: #{tpu_custom_call.1} parent=11 // pred_fallthru
          _
        // Predicated region
        $region25: #{tpu_custom_call.1} parent=11 // pred_check
          %p292 = pneg %p178
        $region26: #{tpu_custom_call.1} parent=11 // pred_check_branch
          %294 = sbr.rel (%p292) target = $region28
        $region27: #{tpu_custom_call.1} parent=11 // pred_region
          _
        $region28: #{tpu_custom_call.1} parent=11 // pred_fallthru
          _
        // Predicated region
        $region29: #{tpu_custom_call.1} parent=11 // pred_check
          %p295 = pneg %p199
        $region30: #{tpu_custom_call.1} parent=11 // pred_check_branch
          %297 = sbr.rel (%p295) target = $region32
        $region31: #{tpu_custom_call.1} parent=11 // pred_region
          %s299 = ssub.s32 2048, 2048
          %300 = vsyncadd [#allocation10], %s299
          %s301 = sshll.u32 [#allocation11], 4
          %s302 = int_to_ptr.vmem [resolvable:$true] %s301
          %307 = dma.hbm_to_vmem [thread:$0]  %s6, 2048, %s302, [#allocation10], 128, 128, 8
        $region32: #{tpu_custom_call.1} parent=11 // pred_fallthru
          _
        // Predicated region
        $region33: #{tpu_custom_call.1} parent=11 // pred_check
          %p308 = pneg %p220
        $region34: #{tpu_custom_call.1} parent=11 // pred_check_branch
          %310 = sbr.rel (%p308) target = $region36
        $region35: #{tpu_custom_call.1} parent=11 // pred_region
          _
        $region36: #{tpu_custom_call.1} parent=11 // pred_fallthru
          _
      $region12: #{tpu_custom_call.1} parent=5 // pred_fallthru
        _
      %p311 = scmp.lt.s32.totalorder %s24, 4
      // Predicated region
      $region37: #{tpu_custom_call.1} parent=5 // pred_check
        %p312 = pneg %p311
      $region38: #{tpu_custom_call.1} parent=5 // pred_check_branch
        %314 = sbr.rel (%p312) target = $region40
      $region39: #{tpu_custom_call.1} parent=5 // pred_region
        // Predicated region
        $region41: #{tpu_custom_call.1} parent=39 // pred_check
          %p315 = pneg %p58
        $region42: #{tpu_custom_call.1} parent=39 // pred_check_branch
          %317 = sbr.rel (%p315) target = $region44
        $region43: #{tpu_custom_call.1} parent=39 // pred_region
          %s318 = sand.u32 %s48, 1
          %s319 = scalar_lea.sflag [#allocation4], %s318
          %s320 = sand.u32 %s48, 1
          %s321 = smul.addr %s320, 256
          %s322 = scalar_lea.vmem [#allocation3], %s321
          %s323 = smul.u32 8, %s32
          %s325 = ssub.s32 4096, 4096
          %326 = vsyncadd %s319, %s325
          %s327 = smul.addr %s323, 4
          %s328 = smul.addr %s31, 64
          %s329 = sadd.s32 %s327, %s328
          %s330 = smul.addr %s329, 128
          %s331 = scalar_lea.hbm %s0, %s330
          %s332 = sshll.u32 %s322, 4
          %s333 = int_to_ptr.vmem [resolvable:$true] %s332
          %338 = dma.hbm_to_vmem [thread:$0]  %s331, 4096, %s333, %s319, 256, 256, 16
        $region44: #{tpu_custom_call.1} parent=39 // pred_fallthru
          _
        // Predicated region
        $region45: #{tpu_custom_call.1} parent=39 // pred_check
          %p339 = pneg %p88
        $region46: #{tpu_custom_call.1} parent=39 // pred_check_branch
          %341 = sbr.rel (%p339) target = $region48
        $region47: #{tpu_custom_call.1} parent=39 // pred_region
          %s342 = sand.u32 %s24, 1
          %s343 = scalar_lea.sflag [#allocation7], %s342
          %s344 = sand.u32 %s78, 1
          %s345 = smul.addr %s344, 128
          %s346 = scalar_lea.vmem [#allocation6], %s345
          %s347 = smul.u32 %s31, 2
          %s348 = sadd.s32 %s347, %s32
          %s350 = ssub.s32 2048, 2048
          %351 = vsyncadd %s343, %s350
          %s352 = smul.addr %s348, 16
          %s353 = smul.addr %s352, 128
          %s354 = scalar_lea.hbm %s1, %s353
          %s355 = sshll.u32 %s346, 4
          %s356 = int_to_ptr.vmem [resolvable:$true] %s355
          %361 = dma.hbm_to_vmem [thread:$0]  %s354, 2048, %s356, %s343, 256, 256, 16
        $region48: #{tpu_custom_call.1} parent=39 // pred_fallthru
          _
      $region40: #{tpu_custom_call.1} parent=5 // pred_fallthru
        _
      %p362 = scmp.le.s32.totalorder 1, %s24
      %p363 = scmp.lt.s32.totalorder %s24, 5
      %p364 = pnand %p362, %p363
      %p365 = pneg %p364
      // Predicated region
      $region49: #{tpu_custom_call.1} parent=5 // pred_check
        _
      $region50: #{tpu_custom_call.1} parent=5 // pred_check_branch
        %367 = sbr.rel (%p364) target = $region52
      $region51: #{tpu_custom_call.1} parent=5 // pred_region
        %s368 = ssub.s32 %s24, 1
        %s369 = sand.u32 %s51, 1
        %s370 = scalar_lea.sflag [#allocation4], %s369
        %s371 = sand.u32 %s51, 1
        %s372 = smul.addr %s371, 256
        %s373 = scalar_lea.vmem [#allocation3], %s372
        // Predicated region
        $region53: #{tpu_custom_call.1} parent=51 // pred_check
          %p374 = pneg %p64
        $region54: #{tpu_custom_call.1} parent=51 // pred_check_branch
          %376 = sbr.rel (%p374) target = $region56
        $region55: #{tpu_custom_call.1} parent=51 // pred_region
          %377 = dma.done %s370, 4096
        $region56: #{tpu_custom_call.1} parent=51 // pred_fallthru
          _
        %s378 = sand.u32 %s29, 1
        %s379 = scalar_lea.sflag [#allocation7], %s378
        %s380 = sand.u32 %s81, 1
        %s381 = smul.addr %s380, 128
        %s382 = scalar_lea.vmem [#allocation6], %s381
        // Predicated region
        $region57: #{tpu_custom_call.1} parent=51 // pred_check
          %p383 = pneg %p94
        $region58: #{tpu_custom_call.1} parent=51 // pred_check_branch
          %385 = sbr.rel (%p383) target = $region60
        $region59: #{tpu_custom_call.1} parent=51 // pred_region
          %386 = dma.done %s379, 2048
        $region60: #{tpu_custom_call.1} parent=51 // pred_fallthru
          _
        // Predicated region
        $region61: #{tpu_custom_call.1} parent=51 // pred_check
          %p387 = pneg %p115
        $region62: #{tpu_custom_call.1} parent=51 // pred_check_branch
          %389 = sbr.rel (%p387) target = $region64
        $region63: #{tpu_custom_call.1} parent=51 // pred_region
          %390 = dma.done [#allocation7], 2048
        $region64: #{tpu_custom_call.1} parent=51 // pred_fallthru
          _
        // Predicated region
        $region65: #{tpu_custom_call.1} parent=51 // pred_check
          %p391 = pneg %p157
        $region66: #{tpu_custom_call.1} parent=51 // pred_check_branch
          %393 = sbr.rel (%p391) target = $region68
        $region67: #{tpu_custom_call.1} parent=51 // pred_region
          %394 = dma.done [#allocation10], 9216
        $region68: #{tpu_custom_call.1} parent=51 // pred_fallthru
          _
        // Predicated region
        $region69: #{tpu_custom_call.1} parent=51 // pred_check
          %p395 = pneg %p199
        $region70: #{tpu_custom_call.1} parent=51 // pred_check_branch
          %397 = sbr.rel (%p395) target = $region72
        $region71: #{tpu_custom_call.1} parent=51 // pred_region
          %398 = dma.done [#allocation10], 2048
        $region72: #{tpu_custom_call.1} parent=51 // pred_fallthru
          _
        %s399 = sand.u32 %s51, 1
        %s400 = scalar_lea.sflag [#allocation4], %s399
        %s401 = sand.u32 %s51, 1
        %s402 = smul.addr %s401, 256
        %s403 = scalar_lea.vmem [#allocation3], %s402
        %p404 = pneg %p64
        %p405 = pneg %p61
        %s406 = sand.u32 %s29, 1
        %s407 = scalar_lea.sflag [#allocation7], %s406
        %s408 = sand.u32 %s81, 1
        %s409 = smul.addr %s408, 128
        %s410 = scalar_lea.vmem [#allocation6], %s409
        %p411 = pneg %p94
        %p412 = pneg %p91
        %p413 = pneg %p115
        %p414 = pneg %p112
        %p415 = pneg %p136
        %p416 = pneg %p133
        %p417 = pneg %p157
        %p418 = pneg %p154
        %p419 = pneg %p178
        %p420 = pneg %p175
        %p421 = pneg %p199
        %p422 = pneg %p196
        %p423 = pneg %p220
        %p424 = pneg %p217
        %p425 = pneg %p248
        %p426 = pneg %p245
        %s427 = sand.u32 %s235, 1
        %s428 = scalar_lea.sflag [#allocation5], %s427
        %s429 = sand.u32 %s235, 1
        %s430 = smul.addr %s429, 256
        %s431 = scalar_lea.vmem [#allocation12], %s430
        %s432 = smul.u32 8, %s34
        %s433 = smul.u32 %s33, 2
        %s434 = sadd.s32 %s433, %s34
        %s435 = smul.u32 8, %s34
        %437 = vst [vmem:[#allocation2] sm:$0xf] 0
        %438 = vst [vmem:[#allocation2 + $0x4] sm:$0xf] 0
        %439 = vst [vmem:[#allocation2 + $0x14] sm:$0xf] 0
        %440 = vst [vmem:[#allocation2 + $0x18] sm:$0xf] 0
        %441 = vst [vmem:[#allocation2 + $0x28] sm:$0xf] 0
        %442 = vst [vmem:[#allocation2 + $0x2c] sm:$0xf] 0
        %443 = vst [vmem:[#allocation2 + $0x3c] sm:$0xf] 0
        %444 = vst [vmem:[#allocation2 + $0x40] sm:$0xf] 0
        %445 = vst [vmem:[#allocation2 + $0x50] sm:$0xf] 0
        %446 = vst [vmem:[#allocation2 + $0x54] sm:$0xf] 0
        %447 = vst [vmem:[#allocation2 + $0x64] sm:$0xf] 0
        %448 = vst [vmem:[#allocation2 + $0x68] sm:$0xf] 0
        %449 = vst [vmem:[#allocation2 + $0x78] sm:$0xf] 0
        %450 = vst [vmem:[#allocation2 + $0x7c] sm:$0xf] 0
        %451 = vst [vmem:[#allocation2 + $0x8c] sm:$0xf] 0
        %452 = vst [vmem:[#allocation2 + $0x90] sm:$0xf] 0
        %453 = vst [vmem:[#allocation2 + $0xa0] sm:$0xf] 0
        %454 = vst [vmem:[#allocation2 + $0xa4] sm:$0xf] 0
        %455 = vst [vmem:[#allocation2 + $0xb4] sm:$0xf] 0
        %456 = vst [vmem:[#allocation2 + $0xb8] sm:$0xf] 0
        %457 = vst [vmem:[#allocation2 + $0xc8] sm:$0xf] 0
        %458 = vst [vmem:[#allocation2 + $0xcc] sm:$0xf] 0
        %459 = vst [vmem:[#allocation2 + $0xdc] sm:$0xf] 0
        %460 = vst [vmem:[#allocation2 + $0xe0] sm:$0xf] 0
        %461 = vst [vmem:[#allocation2 + $0x10] sm:$0x1] 0
        %462 = vst [vmem:[#allocation2 + $0x24] sm:$0x1] 0
        %463 = vst [vmem:[#allocation2 + $0x38] sm:$0x1] 0
        %464 = vst [vmem:[#allocation2 + $0x4c] sm:$0x1] 0
        %465 = vst [vmem:[#allocation2 + $0x60] sm:$0x1] 0
        %466 = vst [vmem:[#allocation2 + $0x74] sm:$0x1] 0
        %467 = vst [vmem:[#allocation2 + $0x88] sm:$0x1] 0
        %468 = vst [vmem:[#allocation2 + $0x9c] sm:$0x1] 0
        %469 = vst [vmem:[#allocation2 + $0xb0] sm:$0x1] 0
        %470 = vst [vmem:[#allocation2 + $0xc4] sm:$0x1] 0
        %471 = vst [vmem:[#allocation2 + $0xd8] sm:$0x1] 0
        %472 = vst [vmem:[#allocation2 + $0xec] sm:$0x1] 0
        %v473 = vld [vmem:[%s373] sm:$0xff]
        %v474 = vld [vmem:[%s373 + $0x8] sm:$0xff]
        %v475 = vld [vmem:[%s373 + $0x10] sm:$0xff]
        %v476 = vld [vmem:[%s373 + $0x18] sm:$0xff]
        %v477 = vld [vmem:[%s373 + $0x20] sm:$0xff]
        %v478 = vld [vmem:[%s373 + $0x28] sm:$0xff]
        %v479 = vld [vmem:[%s373 + $0x30] sm:$0xff]
        %v480 = vld [vmem:[%s373 + $0x38] sm:$0xff]
        %v481 = vld [vmem:[%s373 + $0x40] sm:$0xff]
        %v482 = vld [vmem:[%s373 + $0x48] sm:$0xff]
        %v483 = vld [vmem:[%s373 + $0x50] sm:$0xff]
        %v484 = vld [vmem:[%s373 + $0x58] sm:$0xff]
        %v485 = vld [vmem:[%s373 + $0x60] sm:$0xff]
        %v486 = vld [vmem:[%s373 + $0x68] sm:$0xff]
        %v487 = vld [vmem:[%s373 + $0x70] sm:$0xff]
        %v488 = vld [vmem:[%s373 + $0x78] sm:$0xff]
        %v489 = vld [vmem:[%s373 + $0x80] sm:$0xff]
        %v490 = vld [vmem:[%s373 + $0x88] sm:$0xff]
        %v491 = vld [vmem:[%s373 + $0x90] sm:$0xff]
        %v492 = vld [vmem:[%s373 + $0x98] sm:$0xff]
        %v493 = vld [vmem:[%s373 + $0xa0] sm:$0xff]
        %v494 = vld [vmem:[%s373 + $0xa8] sm:$0xff]
        %v495 = vld [vmem:[%s373 + $0xb0] sm:$0xff]
        %v496 = vld [vmem:[%s373 + $0xb8] sm:$0xff]
        %v497 = vld [vmem:[%s373 + $0xc0] sm:$0xff]
        %v498 = vld [vmem:[%s373 + $0xc8] sm:$0xff]
        %v499 = vld [vmem:[%s373 + $0xd0] sm:$0xff]
        %v500 = vld [vmem:[%s373 + $0xd8] sm:$0xff]
        %v501 = vld [vmem:[%s373 + $0xe0] sm:$0xff]
        %v502 = vld [vmem:[%s373 + $0xe8] sm:$0xff]
        %v503 = vld [vmem:[%s373 + $0xf0] sm:$0xff]
        %v504 = vld [vmem:[%s373 + $0xf8] sm:$0xff]
        %v505 = vpack.c.bf16 %v475, %v473
        %v506 = vpack.c.bf16 %v476, %v474
        %v507 = vpack.c.bf16 %v479, %v477
        %v508 = vpack.c.bf16 %v480, %v478
        %v509 = vpack.c.bf16 %v483, %v481
        %v510 = vpack.c.bf16 %v484, %v482
        %v511 = vpack.c.bf16 %v487, %v485
        %v512 = vpack.c.bf16 %v488, %v486
        %v513 = vpack.c.bf16 %v491, %v489
        %v514 = vpack.c.bf16 %v492, %v490
        %v515 = vpack.c.bf16 %v495, %v493
        %v516 = vpack.c.bf16 %v496, %v494
        %v517 = vpack.c.bf16 %v499, %v497
        %v518 = vpack.c.bf16 %v500, %v498
        %v519 = vpack.c.bf16 %v503, %v501
        %v520 = vpack.c.bf16 %v504, %v502
        %v521 = vld [vmem:[#allocation8] sm:$0xf]
        %v522 = vld [vmem:[#allocation8 + $0x4] sm:$0xf]
        %v523 = vld [vmem:[#allocation8 + $0x8] sm:$0xf]
        %v524 = vld [vmem:[#allocation8 + $0xc] sm:$0xf]
        %v525 = vld [vmem:[#allocation8 + $0x10] sm:$0xf]
        %v526 = vld [vmem:[#allocation8 + $0x14] sm:$0xf]
        %v527 = vld [vmem:[#allocation8 + $0x18] sm:$0xf]
        %v528 = vld [vmem:[#allocation8 + $0x1c] sm:$0xf]
        %v529 = vld [vmem:[#allocation8 + $0x20] sm:$0xf]
        %v530 = vld [vmem:[#allocation8 + $0x24] sm:$0xf]
        %v531 = vld [vmem:[#allocation8 + $0x28] sm:$0xf]
        %v532 = vld [vmem:[#allocation8 + $0x2c] sm:$0xf]
        %v533 = vld [vmem:[#allocation8 + $0x30] sm:$0xf]
        %v534 = vld [vmem:[#allocation8 + $0x34] sm:$0xf]
        %v535 = vld [vmem:[#allocation8 + $0x38] sm:$0xf]
        %v536 = vld [vmem:[#allocation8 + $0x3c] sm:$0xf]
        %v537 = vld [vmem:[#allocation8 + $0x40] sm:$0xf]
        %v538 = vld [vmem:[#allocation8 + $0x44] sm:$0xf]
        %v539 = vld [vmem:[#allocation8 + $0x48] sm:$0xf]
        %v540 = vld [vmem:[#allocation8 + $0x4c] sm:$0xf]
        %v541 = vld [vmem:[#allocation8 + $0x50] sm:$0xf]
        %v542 = vld [vmem:[#allocation8 + $0x54] sm:$0xf]
        %v543 = vld [vmem:[#allocation8 + $0x58] sm:$0xf]
        %v544 = vld [vmem:[#allocation8 + $0x5c] sm:$0xf]
        %v545 = vld [vmem:[#allocation8 + $0x60] sm:$0xf]
        %v546 = vld [vmem:[#allocation8 + $0x64] sm:$0xf]
        %v547 = vld [vmem:[#allocation8 + $0x68] sm:$0xf]
        %v548 = vld [vmem:[#allocation8 + $0x6c] sm:$0xf]
        %v549 = vld [vmem:[#allocation8 + $0x70] sm:$0xf]
        %v550 = vld [vmem:[#allocation8 + $0x74] sm:$0xf]
        %v551 = vld [vmem:[#allocation8 + $0x78] sm:$0xf]
        %v552 = vld [vmem:[#allocation8 + $0x7c] sm:$0xf]
        %v553 = vld [vmem:[%s3] sm:$0x1]
        %v555 = vlaneseq
        %v556 = vshrl.u32 %v555, 7
        %v557 = vsub.s32 0, %v556
        %v558 = vrot.slane %v553, %v557
        %v592 = vunpack.c.l.b16 %v521
        %v593 = vunpack.c.l.b16 %v522
        %v594 = vunpack.c.l.b16 %v523
        %v595 = vunpack.c.l.b16 %v524
        %v596 = vunpack.c.l.b16 %v525
        %v597 = vunpack.c.l.b16 %v526
        %v598 = vunpack.c.l.b16 %v527
        %v599 = vunpack.c.l.b16 %v528
        %v600 = vunpack.c.l.b16 %v529
        %v601 = vunpack.c.l.b16 %v530
        %v602 = vunpack.c.l.b16 %v531
        %v603 = vunpack.c.l.b16 %v532
        %v604 = vunpack.c.l.b16 %v533
        %v605 = vunpack.c.l.b16 %v534
        %v606 = vunpack.c.l.b16 %v535
        %v607 = vunpack.c.l.b16 %v536
        %v608 = vunpack.c.l.b16 %v537
        %v609 = vunpack.c.l.b16 %v538
        %v610 = vunpack.c.l.b16 %v539
        %v611 = vunpack.c.l.b16 %v540
        %v612 = vunpack.c.l.b16 %v541
        %v613 = vunpack.c.l.b16 %v542
        %v614 = vunpack.c.l.b16 %v543
        %v615 = vunpack.c.l.b16 %v544
        %v616 = vunpack.c.l.b16 %v545
        %v617 = vunpack.c.l.b16 %v546
        %v618 = vunpack.c.l.b16 %v547
        %v619 = vunpack.c.l.b16 %v548
        %v620 = vunpack.c.l.b16 %v549
        %v621 = vunpack.c.l.b16 %v550
        %v622 = vunpack.c.l.b16 %v551
        %v623 = vunpack.c.l.b16 %v552
        %v624 = vpack.c.b16 %v593, %v592
        %v625 = vpack.c.b16 %v595, %v594
        %v626 = vpack.c.b16 %v597, %v596
        %v627 = vpack.c.b16 %v599, %v598
        %v628 = vpack.c.b16 %v601, %v600
        %v629 = vpack.c.b16 %v603, %v602
        %v630 = vpack.c.b16 %v605, %v604
        %v631 = vpack.c.b16 %v607, %v606
        %v632 = vpack.c.b16 %v609, %v608
        %v633 = vpack.c.b16 %v611, %v610
        %v634 = vpack.c.b16 %v613, %v612
        %v635 = vpack.c.b16 %v615, %v614
        %v636 = vpack.c.b16 %v617, %v616
        %v637 = vpack.c.b16 %v619, %v618
        %v638 = vpack.c.b16 %v621, %v620
        %v639 = vpack.c.b16 %v623, %v622
        %656 = vmatprep.subr.bf16.mxu0 0
        %657 = vmatpush1.bf16.msra.mxu0 %v624
        %658 = vmatprep.subr.bf16.mxu0 0
        %659 = vmatpush1.bf16.msra.mxu0 %v625
        %660 = vmatprep.subr.bf16.mxu0 0
        %661 = vmatpush1.bf16.msra.mxu0 %v626
        %662 = vmatprep.subr.bf16.mxu0 0
        %663 = vmatpush1.bf16.msra.mxu0 %v627
        %664 = vmatprep.subr.bf16.mxu0 0
        %665 = vmatpush1.bf16.msra.mxu0 %v628
        %666 = vmatprep.subr.bf16.mxu0 0
        %667 = vmatpush1.bf16.msra.mxu0 %v629
        %668 = vmatprep.subr.bf16.mxu0 0
        %669 = vmatpush1.bf16.msra.mxu0 %v630
        %670 = vmatprep.subr.bf16.mxu0 0
        %671 = vmatpush1.bf16.msra.mxu0 %v631
        %672 = vmatprep.subr.bf16.mxu0 0
        %673 = vmatpush1.bf16.msra.mxu0 %v632
        %674 = vmatprep.subr.bf16.mxu0 0
        %675 = vmatpush1.bf16.msra.mxu0 %v633
        %676 = vmatprep.subr.bf16.mxu0 0
        %677 = vmatpush1.bf16.msra.mxu0 %v634
        %678 = vmatprep.subr.bf16.mxu0 0
        %679 = vmatpush1.bf16.msra.mxu0 %v635
        %680 = vmatprep.subr.bf16.mxu0 0
        %681 = vmatpush1.bf16.msra.mxu0 %v636
        %682 = vmatprep.subr.bf16.mxu0 0
        %683 = vmatpush1.bf16.msra.mxu0 %v637
        %684 = vmatprep.subr.bf16.mxu0 0
        %685 = vmatpush1.bf16.msra.mxu0 %v638
        %686 = vmatprep.subr.bf16.mxu0 0
        %687 = vmatpush1.bf16.msra.mxu0 %v639
        %688 = vmatprep.mubr.bf16.mxu0 %v506
        %689 = vmatmul.mubr.bf16.gmra.mrb[0].mxu0 %v505
        %v690 = vpop.f32.mrb[0].mxu0
        %v691 = vadd.f32 %v558, %v690
        %v692 = vpop.f32.mrb[0].mxu0
        %v693 = vpop.f32.mrb[0].mxu0
        %v694 = vadd.f32 %v558, %v693
        %v695 = vpop.f32.mrb[0].mxu0
        %696 = vmatprep.mubr.bf16.mxu0 %v508
        %697 = vmatmul.mubr.bf16.gmra.mrb[0].mxu0 %v507
        %v698 = vpop.f32.mrb[0].mxu0
        %v699 = vadd.f32 %v558, %v698
        %v700 = vpop.f32.mrb[0].mxu0
        %v701 = vpop.f32.mrb[0].mxu0
        %v702 = vadd.f32 %v558, %v701
        %v703 = vpop.f32.mrb[0].mxu0
        %704 = vmatprep.mubr.bf16.mxu0 %v510
        %705 = vmatmul.mubr.bf16.gmra.mrb[0].mxu0 %v509
        %v706 = vpop.f32.mrb[0].mxu0
        %v707 = vadd.f32 %v558, %v706
        %v708 = vpop.f32.mrb[0].mxu0
        %v709 = vpop.f32.mrb[0].mxu0
        %v710 = vadd.f32 %v558, %v709
        %v711 = vpop.f32.mrb[0].mxu0
        %712 = vmatprep.mubr.bf16.mxu0 %v512
        %713 = vmatmul.mubr.bf16.gmra.mrb[0].mxu0 %v511
        %v714 = vpop.f32.mrb[0].mxu0
        %v715 = vadd.f32 %v558, %v714
        %v716 = vpop.f32.mrb[0].mxu0
        %v717 = vpop.f32.mrb[0].mxu0
        %v718 = vadd.f32 %v558, %v717
        %v719 = vpop.f32.mrb[0].mxu0
        %720 = vmatprep.mubr.bf16.mxu0 %v514
        %721 = vmatmul.mubr.bf16.gmra.mrb[0].mxu0 %v513
        %v722 = vpop.f32.mrb[0].mxu0
        %v723 = vadd.f32 %v558, %v722
        %v724 = vpop.f32.mrb[0].mxu0
        %v725 = vpop.f32.mrb[0].mxu0
        %v726 = vadd.f32 %v558, %v725
        %v727 = vpop.f32.mrb[0].mxu0
        %728 = vmatprep.mubr.bf16.mxu0 %v516
        %729 = vmatmul.mubr.bf16.gmra.mrb[0].mxu0 %v515
        %v730 = vpop.f32.mrb[0].mxu0
        %v731 = vadd.f32 %v558, %v730
        %v732 = vpop.f32.mrb[0].mxu0
        %v733 = vpop.f32.mrb[0].mxu0
        %v734 = vadd.f32 %v558, %v733
        %v735 = vpop.f32.mrb[0].mxu0
        %736 = vmatprep.mubr.bf16.mxu0 %v518
        %737 = vmatmul.mubr.bf16.gmra.mrb[0].mxu0 %v517
        %v738 = vpop.f32.mrb[0].mxu0
        %v739 = vadd.f32 %v558, %v738
        %v740 = vpop.f32.mrb[0].mxu0
        %v741 = vpop.f32.mrb[0].mxu0
        %v742 = vadd.f32 %v558, %v741
        %v743 = vpop.f32.mrb[0].mxu0
        %744 = vmatprep.mubr.bf16.mxu0 %v520
        %745 = vmatmul.mubr.bf16.gmra.mrb[0].mxu0 %v519
        %v746 = vpop.f32.mrb[0].mxu0
        %v747 = vadd.f32 %v558, %v746
        %v748 = vpop.f32.mrb[0].mxu0
        %v749 = vpop.f32.mrb[0].mxu0
        %v750 = vadd.f32 %v558, %v749
        %v751 = vpop.f32.mrb[0].mxu0
        %752 = vdwg.mxu0
        %v753 = vmax.f32 %v691, 0.0
        %v754 = vmax.f32 %v694, 0.0
        %v755 = vmax.f32 %v699, 0.0
        %v756 = vmax.f32 %v702, 0.0
        %v757 = vmax.f32 %v707, 0.0
        %v758 = vmax.f32 %v710, 0.0
        %v759 = vmax.f32 %v715, 0.0
        %v760 = vmax.f32 %v718, 0.0
        %v761 = vmax.f32 %v723, 0.0
        %v762 = vmax.f32 %v726, 0.0
        %v763 = vmax.f32 %v731, 0.0
        %v764 = vmax.f32 %v734, 0.0
        %v765 = vmax.f32 %v739, 0.0
        %v766 = vmax.f32 %v742, 0.0
        %v767 = vmax.f32 %v747, 0.0
        %v768 = vmax.f32 %v750, 0.0
        %v769 = vpack.c.bf16 %v754, %v753
        %v770 = vpack.c.bf16 %v756, %v755
        %v771 = vpack.c.bf16 %v758, %v757
        %v772 = vpack.c.bf16 %v760, %v759
        %v773 = vpack.c.bf16 %v762, %v761
        %v774 = vpack.c.bf16 %v764, %v763
        %v775 = vpack.c.bf16 %v766, %v765
        %v776 = vpack.c.bf16 %v768, %v767
        %v785 = vunpack.c.l.b16 %v769
        %v786 = vunpack.c.h.b16 %v769
        %v787 = vunpack.c.l.b16 %v770
        %v788 = vunpack.c.h.b16 %v770
        %v789 = vunpack.c.l.b16 %v771
        %v790 = vunpack.c.h.b16 %v771
        %v791 = vunpack.c.l.b16 %v772
        %v792 = vunpack.c.h.b16 %v772
        %v793 = vunpack.c.l.b16 %v773
        %v794 = vunpack.c.h.b16 %v773
        %v795 = vunpack.c.l.b16 %v774
        %v796 = vunpack.c.h.b16 %v774
        %v797 = vunpack.c.l.b16 %v775
        %v798 = vunpack.c.h.b16 %v775
        %v799 = vunpack.c.l.b16 %v776
        %v800 = vunpack.c.h.b16 %v776
        %v801 = vpack.c.b16 %v785, %v785
        %v802 = vpack.c.b16 %v786, %v786
        %v803 = vpack.c.b16 %v787, %v787
        %v804 = vpack.c.b16 %v788, %v788
        %v805 = vpack.c.b16 %v789, %v789
        %v806 = vpack.c.b16 %v790, %v790
        %v807 = vpack.c.b16 %v791, %v791
        %v808 = vpack.c.b16 %v792, %v792
        %v809 = vpack.c.b16 %v793, %v793
        %v810 = vpack.c.b16 %v794, %v794
        %v811 = vpack.c.b16 %v795, %v795
        %v812 = vpack.c.b16 %v796, %v796
        %v813 = vpack.c.b16 %v797, %v797
        %v814 = vpack.c.b16 %v798, %v798
        %v815 = vpack.c.b16 %v799, %v799
        %v816 = vpack.c.b16 %v800, %v800
        %s833 = scalar_lea.vmem [#allocation2], 40
        %834 = vst [vmem:[%s833 + $0x8] sm:$0xf] %v801
        %835 = vst [vmem:[%s833 + $0xc] sm:$0xf] %v802
        %836 = vst [vmem:[%s833 + $0x1c] sm:$0xf] %v803
        %837 = vst [vmem:[%s833 + $0x20] sm:$0xf] %v804
        %838 = vst [vmem:[%s833 + $0x30] sm:$0xf] %v805
        %839 = vst [vmem:[%s833 + $0x34] sm:$0xf] %v806
        %840 = vst [vmem:[%s833 + $0x44] sm:$0xf] %v807
        %841 = vst [vmem:[%s833 + $0x48] sm:$0xf] %v808
        %842 = vst [vmem:[%s833 + $0x58] sm:$0xf] %v809
        %843 = vst [vmem:[%s833 + $0x5c] sm:$0xf] %v810
        %844 = vst [vmem:[%s833 + $0x6c] sm:$0xf] %v811
        %845 = vst [vmem:[%s833 + $0x70] sm:$0xf] %v812
        %846 = vst [vmem:[%s833 + $0x80] sm:$0xf] %v813
        %847 = vst [vmem:[%s833 + $0x84] sm:$0xf] %v814
        %848 = vst [vmem:[%s833 + $0x94] sm:$0xf] %v815
        %849 = vst [vmem:[%s833 + $0x98] sm:$0xf] %v816
        %v850 = vld [vmem:[%s382] sm:$0xff]
        %v851 = vld [vmem:[%s382 + $0x8] sm:$0xff]
        %v852 = vld [vmem:[%s382 + $0x10] sm:$0xff]
        %v853 = vld [vmem:[%s382 + $0x18] sm:$0xff]
        %v854 = vld [vmem:[%s382 + $0x20] sm:$0xff]
        %v855 = vld [vmem:[%s382 + $0x28] sm:$0xff]
        %v856 = vld [vmem:[%s382 + $0x30] sm:$0xff]
        %v857 = vld [vmem:[%s382 + $0x38] sm:$0xff]
        %v858 = vld [vmem:[%s382 + $0x40] sm:$0xff]
        %v859 = vld [vmem:[%s382 + $0x48] sm:$0xff]
        %v860 = vld [vmem:[%s382 + $0x50] sm:$0xff]
        %v861 = vld [vmem:[%s382 + $0x58] sm:$0xff]
        %v862 = vld [vmem:[%s382 + $0x60] sm:$0xff]
        %v863 = vld [vmem:[%s382 + $0x68] sm:$0xff]
        %v864 = vld [vmem:[%s382 + $0x70] sm:$0xff]
        %v865 = vld [vmem:[%s382 + $0x78] sm:$0xff]
        %v866 = vpack.c.bf16 %v852, %v850
        %v867 = vpack.c.bf16 %v853, %v851
        %v868 = vpack.c.bf16 %v856, %v854
        %v869 = vpack.c.bf16 %v857, %v855
        %v870 = vpack.c.bf16 %v860, %v858
        %v871 = vpack.c.bf16 %v861, %v859
        %v872 = vpack.c.bf16 %v864, %v862
        %v873 = vpack.c.bf16 %v865, %v863
        %v874 = vld [vmem:[#allocation8] sm:$0xf]
        %v875 = vld [vmem:[#allocation8 + $0x4] sm:$0xf]
        %v876 = vld [vmem:[#allocation8 + $0x8] sm:$0xf]
        %v877 = vld [vmem:[#allocation8 + $0xc] sm:$0xf]
        %v878 = vld [vmem:[#allocation8 + $0x10] sm:$0xf]
        %v879 = vld [vmem:[#allocation8 + $0x14] sm:$0xf]
        %v880 = vld [vmem:[#allocation8 + $0x18] sm:$0xf]
        %v881 = vld [vmem:[#allocation8 + $0x1c] sm:$0xf]
        %v882 = vld [vmem:[#allocation8 + $0x20] sm:$0xf]
        %v883 = vld [vmem:[#allocation8 + $0x24] sm:$0xf]
        %v884 = vld [vmem:[#allocation8 + $0x28] sm:$0xf]
        %v885 = vld [vmem:[#allocation8 + $0x2c] sm:$0xf]
        %v886 = vld [vmem:[#allocation8 + $0x30] sm:$0xf]
        %v887 = vld [vmem:[#allocation8 + $0x34] sm:$0xf]
        %v888 = vld [vmem:[#allocation8 + $0x38] sm:$0xf]
        %v889 = vld [vmem:[#allocation8 + $0x3c] sm:$0xf]
        %v890 = vld [vmem:[#allocation8 + $0x40] sm:$0xf]
        %v891 = vld [vmem:[#allocation8 + $0x44] sm:$0xf]
        %v892 = vld [vmem:[#allocation8 + $0x48] sm:$0xf]
        %v893 = vld [vmem:[#allocation8 + $0x4c] sm:$0xf]
        %v894 = vld [vmem:[#allocation8 + $0x50] sm:$0xf]
        %v895 = vld [vmem:[#allocation8 + $0x54] sm:$0xf]
        %v896 = vld [vmem:[#allocation8 + $0x58] sm:$0xf]
        %v897 = vld [vmem:[#allocation8 + $0x5c] sm:$0xf]
        %v898 = vld [vmem:[#allocation8 + $0x60] sm:$0xf]
        %v899 = vld [vmem:[#allocation8 + $0x64] sm:$0xf]
        %v900 = vld [vmem:[#allocation8 + $0x68] sm:$0xf]
        %v901 = vld [vmem:[#allocation8 + $0x6c] sm:$0xf]
        %v902 = vld [vmem:[#allocation8 + $0x70] sm:$0xf]
        %v903 = vld [vmem:[#allocation8 + $0x74] sm:$0xf]
        %v904 = vld [vmem:[#allocation8 + $0x78] sm:$0xf]
        %v905 = vld [vmem:[#allocation8 + $0x7c] sm:$0xf]
        %v906 = vld [vmem:[%s3] sm:$0x1]
        %v908 = vlaneseq
        %v909 = vshrl.u32 %v908, 7
        %v910 = vsub.s32 0, %v909
        %v911 = vrot.slane %v906, %v910
        %v945 = vunpack.c.l.b16 %v874
        %v946 = vunpack.c.l.b16 %v875
        %v947 = vunpack.c.l.b16 %v876
        %v948 = vunpack.c.l.b16 %v877
        %v949 = vunpack.c.l.b16 %v878
        %v950 = vunpack.c.l.b16 %v879
        %v951 = vunpack.c.l.b16 %v880
        %v952 = vunpack.c.l.b16 %v881
        %v953 = vunpack.c.l.b16 %v882
        %v954 = vunpack.c.l.b16 %v883
        %v955 = vunpack.c.l.b16 %v884
        %v956 = vunpack.c.l.b16 %v885
        %v957 = vunpack.c.l.b16 %v886
        %v958 = vunpack.c.l.b16 %v887
        %v959 = vunpack.c.l.b16 %v888
        %v960 = vunpack.c.l.b16 %v889
        %v961 = vunpack.c.l.b16 %v890
        %v962 = vunpack.c.l.b16 %v891
        %v963 = vunpack.c.l.b16 %v892
        %v964 = vunpack.c.l.b16 %v893
        %v965 = vunpack.c.l.b16 %v894
        %v966 = vunpack.c.l.b16 %v895
        %v967 = vunpack.c.l.b16 %v896
        %v968 = vunpack.c.l.b16 %v897
        %v969 = vunpack.c.l.b16 %v898
        %v970 = vunpack.c.l.b16 %v899
        %v971 = vunpack.c.l.b16 %v900
        %v972 = vunpack.c.l.b16 %v901
        %v973 = vunpack.c.l.b16 %v902
        %v974 = vunpack.c.l.b16 %v903
        %v975 = vunpack.c.l.b16 %v904
        %v976 = vunpack.c.l.b16 %v905
        %v977 = vpack.c.b16 %v946, %v945
        %v978 = vpack.c.b16 %v948, %v947
        %v979 = vpack.c.b16 %v950, %v949
        %v980 = vpack.c.b16 %v952, %v951
        %v981 = vpack.c.b16 %v954, %v953
        %v982 = vpack.c.b16 %v956, %v955
        %v983 = vpack.c.b16 %v958, %v957
        %v984 = vpack.c.b16 %v960, %v959
        %v985 = vpack.c.b16 %v962, %v961
        %v986 = vpack.c.b16 %v964, %v963
        %v987 = vpack.c.b16 %v966, %v965
        %v988 = vpack.c.b16 %v968, %v967
        %v989 = vpack.c.b16 %v970, %v969
        %v990 = vpack.c.b16 %v972, %v971
        %v991 = vpack.c.b16 %v974, %v973
        %v992 = vpack.c.b16 %v976, %v975
        %1009 = vmatprep.subr.bf16.mxu0 0
        %1010 = vmatpush1.bf16.msra.mxu0 %v977
        %1011 = vmatprep.subr.bf16.mxu0 0
        %1012 = vmatpush1.bf16.msra.mxu0 %v978
        %1013 = vmatprep.subr.bf16.mxu0 0
        %1014 = vmatpush1.bf16.msra.mxu0 %v979
        %1015 = vmatprep.subr.bf16.mxu0 0
        %1016 = vmatpush1.bf16.msra.mxu0 %v980
        %1017 = vmatprep.subr.bf16.mxu0 0
        %1018 = vmatpush1.bf16.msra.mxu0 %v981
        %1019 = vmatprep.subr.bf16.mxu0 0
        %1020 = vmatpush1.bf16.msra.mxu0 %v982
        %1021 = vmatprep.subr.bf16.mxu0 0
        %1022 = vmatpush1.bf16.msra.mxu0 %v983
        %1023 = vmatprep.subr.bf16.mxu0 0
        %1024 = vmatpush1.bf16.msra.mxu0 %v984
        %1025 = vmatprep.subr.bf16.mxu0 0
        %1026 = vmatpush1.bf16.msra.mxu0 %v985
        %1027 = vmatprep.subr.bf16.mxu0 0
        %1028 = vmatpush1.bf16.msra.mxu0 %v986
        %1029 = vmatprep.subr.bf16.mxu0 0
        %1030 = vmatpush1.bf16.msra.mxu0 %v987
        %1031 = vmatprep.subr.bf16.mxu0 0
        %1032 = vmatpush1.bf16.msra.mxu0 %v988
        %1033 = vmatprep.subr.bf16.mxu0 0
        %1034 = vmatpush1.bf16.msra.mxu0 %v989
        %1035 = vmatprep.subr.bf16.mxu0 0
        %1036 = vmatpush1.bf16.msra.mxu0 %v990
        %1037 = vmatprep.subr.bf16.mxu0 0
        %1038 = vmatpush1.bf16.msra.mxu0 %v991
        %1039 = vmatprep.subr.bf16.mxu0 0
        %1040 = vmatpush1.bf16.msra.mxu0 %v992
        %1041 = vmatprep.mubr.bf16.mxu0 %v867
        %1042 = vmatmul.mubr.bf16.gmra.mrb[0].mxu0 %v866
        %v1043 = vpop.f32.mrb[0].mxu0
        %v1044 = vadd.f32 %v911, %v1043
        %v1045 = vpop.f32.mrb[0].mxu0
        %v1046 = vpop.f32.mrb[0].mxu0
        %v1047 = vadd.f32 %v911, %v1046
        %v1048 = vpop.f32.mrb[0].mxu0
        %1049 = vmatprep.mubr.bf16.mxu0 %v869
        %1050 = vmatmul.mubr.bf16.gmra.mrb[0].mxu0 %v868
        %v1051 = vpop.f32.mrb[0].mxu0
        %v1052 = vadd.f32 %v911, %v1051
        %v1053 = vpop.f32.mrb[0].mxu0
        %v1054 = vpop.f32.mrb[0].mxu0
        %v1055 = vadd.f32 %v911, %v1054
        %v1056 = vpop.f32.mrb[0].mxu0
        %1057 = vmatprep.mubr.bf16.mxu0 %v871
        %1058 = vmatmul.mubr.bf16.gmra.mrb[0].mxu0 %v870
        %v1059 = vpop.f32.mrb[0].mxu0
        %v1060 = vadd.f32 %v911, %v1059
        %v1061 = vpop.f32.mrb[0].mxu0
        %v1062 = vpop.f32.mrb[0].mxu0
        %v1063 = vadd.f32 %v911, %v1062
        %v1064 = vpop.f32.mrb[0].mxu0
        %1065 = vmatprep.mubr.bf16.mxu0 %v873
        %1066 = vmatmul.mubr.bf16.gmra.mrb[0].mxu0 %v872
        %v1067 = vpop.f32.mrb[0].mxu0
        %v1068 = vadd.f32 %v911, %v1067
        %v1069 = vpop.f32.mrb[0].mxu0
        %v1070 = vpop.f32.mrb[0].mxu0
        %v1071 = vadd.f32 %v911, %v1070
        %v1072 = vpop.f32.mrb[0].mxu0
        %1073 = vdwg.mxu0
        %v1074 = vmax.f32 %v1044, 0.0
        %v1075 = vmax.f32 %v1047, 0.0
        %v1076 = vmax.f32 %v1052, 0.0
        %v1077 = vmax.f32 %v1055, 0.0
        %v1078 = vmax.f32 %v1060, 0.0
        %v1079 = vmax.f32 %v1063, 0.0
        %v1080 = vmax.f32 %v1068, 0.0
        %v1081 = vmax.f32 %v1071, 0.0
        %v1082 = vpack.c.bf16 %v1075, %v1074
        %v1083 = vpack.c.bf16 %v1077, %v1076
        %v1084 = vpack.c.bf16 %v1079, %v1078
        %v1085 = vpack.c.bf16 %v1081, %v1080
        %v1088 = vunpack.c.l.b16 %v1082
        %v1089 = vunpack.c.h.b16 %v1082
        %v1090 = vunpack.c.l.b16 %v1083
        %v1091 = vunpack.c.h.b16 %v1083
        %v1092 = vpack.c.b16 %v1088, %v1088
        %v1093 = vpack.c.b16 %v1089, %v1089
        %v1094 = vpack.c.b16 %v1090, %v1090
        %v1095 = vpack.c.b16 %v1091, %v1091
        %1100 = vst [vmem:[#allocation2 + $0x8] sm:$0xf] %v1092
        %1101 = vst [vmem:[#allocation2 + $0xc] sm:$0xf] %v1093
        %1102 = vst [vmem:[#allocation2 + $0x1c] sm:$0xf] %v1094
        %1103 = vst [vmem:[#allocation2 + $0x20] sm:$0xf] %v1095
        %v1106 = vunpack.c.l.b16 %v1084
        %v1107 = vunpack.c.h.b16 %v1084
        %v1108 = vunpack.c.l.b16 %v1085
        %v1109 = vunpack.c.h.b16 %v1085
        %v1110 = vpack.c.b16 %v1106, %v1106
        %v1111 = vpack.c.b16 %v1107, %v1107
        %v1112 = vpack.c.b16 %v1108, %v1108
        %v1113 = vpack.c.b16 %v1109, %v1109
        %s1118 = scalar_lea.vmem [#allocation2], 200
        %1119 = vst [vmem:[%s1118 + $0x8] sm:$0xf] %v1110
        %1120 = vst [vmem:[%s1118 + $0xc] sm:$0xf] %v1111
        %1121 = vst [vmem:[%s1118 + $0x1c] sm:$0xf] %v1112
        %1122 = vst [vmem:[%s1118 + $0x20] sm:$0xf] %v1113
        %p1123 = scmp.eq.s32.totalorder %s34, 0
        // Predicated region
        $region73: #{tpu_custom_call.1} parent=51 // pred_check
          %p1124 = pneg %p1123
        $region74: #{tpu_custom_call.1} parent=51 // pred_check_branch
          %1126 = sbr.rel (%p1124) target = $region76
        $region75: #{tpu_custom_call.1} parent=51 // pred_region
          %1127 = vst [vmem:[#allocation2 + $0x8] sm:$0xf] 0
          %1128 = vst [vmem:[#allocation2 + $0xc] sm:$0xf] 0
          %1129 = vst [vmem:[#allocation2 + $0x1c] sm:$0xf] 0
          %1130 = vst [vmem:[#allocation2 + $0x20] sm:$0xf] 0
        $region76: #{tpu_custom_call.1} parent=51 // pred_fallthru
          _
        %p1131 = scmp.eq.s32.totalorder %s34, 1
        // Predicated region
        $region77: #{tpu_custom_call.1} parent=51 // pred_check
          %p1132 = pneg %p1131
        $region78: #{tpu_custom_call.1} parent=51 // pred_check_branch
          %1134 = sbr.rel (%p1132) target = $region80
        $region79: #{tpu_custom_call.1} parent=51 // pred_region
          %1135 = vst [vmem:[%s1118 + $0x8] sm:$0xf] 0
          %1136 = vst [vmem:[%s1118 + $0xc] sm:$0xf] 0
          %1137 = vst [vmem:[%s1118 + $0x1c] sm:$0xf] 0
          %1138 = vst [vmem:[%s1118 + $0x20] sm:$0xf] 0
        $region80: #{tpu_custom_call.1} parent=51 // pred_fallthru
          _
        %v1139 = vld [vmem:[#allocation2 + $0x4] sm:$0x8]
        %v1140 = vld [vmem:[#allocation2 + $0x8] sm:$0xf]
        %v1141 = vld [vmem:[#allocation2 + $0xc] sm:$0x7]
        %v1142 = vld [vmem:[#allocation2 + $0x18] sm:$0x8]
        %v1143 = vld [vmem:[#allocation2 + $0x1c] sm:$0xf]
        %v1144 = vld [vmem:[#allocation2 + $0x20] sm:$0x7]
        %v1145 = vld [vmem:[#allocation2 + $0x2c] sm:$0x8]
        %v1146 = vld [vmem:[#allocation2 + $0x30] sm:$0xf]
        %v1147 = vld [vmem:[#allocation2 + $0x34] sm:$0x7]
        %v1148 = vld [vmem:[#allocation2 + $0x40] sm:$0x8]
        %v1149 = vld [vmem:[#allocation2 + $0x44] sm:$0xf]
        %v1150 = vld [vmem:[#allocation2 + $0x48] sm:$0x7]
        %v1151 = vld [vmem:[#allocation2 + $0x54] sm:$0x8]
        %v1152 = vld [vmem:[#allocation2 + $0x58] sm:$0xf]
        %v1153 = vld [vmem:[#allocation2 + $0x5c] sm:$0x7]
        %v1154 = vld [vmem:[#allocation2 + $0x68] sm:$0x8]
        %v1155 = vld [vmem:[#allocation2 + $0x6c] sm:$0xf]
        %v1156 = vld [vmem:[#allocation2 + $0x70] sm:$0x7]
        %v1157 = vld [vmem:[#allocation2 + $0x7c] sm:$0x8]
        %v1158 = vld [vmem:[#allocation2 + $0x80] sm:$0xf]
        %v1159 = vld [vmem:[#allocation2 + $0x84] sm:$0x7]
        %v1160 = vld [vmem:[#allocation2 + $0x90] sm:$0x8]
        %v1161 = vld [vmem:[#allocation2 + $0x94] sm:$0xf]
        %v1162 = vld [vmem:[#allocation2 + $0x98] sm:$0x7]
        %vm1187 = vcmask 1040384
        %vm1188 = vcmask 1044484
        %vm1189 = vmor %vm1187, %vm1188
        %v1190 = vrot.slane %v1139, 7
        %v1191 = vrot.slane %v1190, 4
        %v1192 = vrot.slane %v1140, 7
        %v1193 = vsel %vm1189, %v1191, %v1192
        %v1194 = vrot.slane %v1192, 4
        %v1195 = vrot.slane %v1141, 7
        %v1196 = vsel %vm1189, %v1194, %v1195
        %v1197 = vrot.slane %v1142, 7
        %v1198 = vrot.slane %v1197, 4
        %v1199 = vrot.slane %v1143, 7
        %v1200 = vsel %vm1189, %v1198, %v1199
        %v1201 = vrot.slane %v1199, 4
        %v1202 = vrot.slane %v1144, 7
        %v1203 = vsel %vm1189, %v1201, %v1202
        %v1204 = vrot.slane %v1145, 7
        %v1205 = vrot.slane %v1204, 4
        %v1206 = vrot.slane %v1146, 7
        %v1207 = vsel %vm1189, %v1205, %v1206
        %v1208 = vrot.slane %v1206, 4
        %v1209 = vrot.slane %v1147, 7
        %v1210 = vsel %vm1189, %v1208, %v1209
        %v1211 = vrot.slane %v1148, 7
        %v1212 = vrot.slane %v1211, 4
        %v1213 = vrot.slane %v1149, 7
        %v1214 = vsel %vm1189, %v1212, %v1213
        %v1215 = vrot.slane %v1213, 4
        %v1216 = vrot.slane %v1150, 7
        %v1217 = vsel %vm1189, %v1215, %v1216
        %v1218 = vrot.slane %v1151, 7
        %v1219 = vrot.slane %v1218, 4
        %v1220 = vrot.slane %v1152, 7
        %v1221 = vsel %vm1189, %v1219, %v1220
        %v1222 = vrot.slane %v1220, 4
        %v1223 = vrot.slane %v1153, 7
        %v1224 = vsel %vm1189, %v1222, %v1223
        %v1225 = vrot.slane %v1154, 7
        %v1226 = vrot.slane %v1225, 4
        %v1227 = vrot.slane %v1155, 7
        %v1228 = vsel %vm1189, %v1226, %v1227
        %v1229 = vrot.slane %v1227, 4
        %v1230 = vrot.slane %v1156, 7
        %v1231 = vsel %vm1189, %v1229, %v1230
        %v1232 = vrot.slane %v1157, 7
        %v1233 = vrot.slane %v1232, 4
        %v1234 = vrot.slane %v1158, 7
        %v1235 = vsel %vm1189, %v1233, %v1234
        %v1236 = vrot.slane %v1234, 4
        %v1237 = vrot.slane %v1159, 7
        %v1238 = vsel %vm1189, %v1236, %v1237
        %v1239 = vrot.slane %v1160, 7
        %v1240 = vrot.slane %v1239, 4
        %v1241 = vrot.slane %v1161, 7
        %v1242 = vsel %vm1189, %v1240, %v1241
        %v1243 = vrot.slane %v1241, 4
        %v1244 = vrot.slane %v1162, 7
        %v1245 = vsel %vm1189, %v1243, %v1244
        %v1246 = vld [vmem:[#allocation9] sm:$0xf]
        %v1247 = vld [vmem:[#allocation9 + $0x4] sm:$0xf]
        %v1248 = vld [vmem:[#allocation9 + $0x8] sm:$0xf]
        %v1249 = vld [vmem:[#allocation9 + $0xc] sm:$0xf]
        %v1250 = vld [vmem:[#allocation9 + $0x10] sm:$0xf]
        %v1251 = vld [vmem:[#allocation9 + $0x14] sm:$0xf]
        %v1252 = vld [vmem:[#allocation9 + $0x18] sm:$0xf]
        %v1253 = vld [vmem:[#allocation9 + $0x1c] sm:$0xf]
        %v1254 = vld [vmem:[#allocation9 + $0x20] sm:$0xf]
        %v1255 = vld [vmem:[#allocation9 + $0x24] sm:$0xf]
        %v1256 = vld [vmem:[#allocation9 + $0x28] sm:$0xf]
        %v1257 = vld [vmem:[#allocation9 + $0x2c] sm:$0xf]
        %v1258 = vld [vmem:[#allocation9 + $0x30] sm:$0xf]
        %v1259 = vld [vmem:[#allocation9 + $0x34] sm:$0xf]
        %v1260 = vld [vmem:[#allocation9 + $0x38] sm:$0xf]
        %v1261 = vld [vmem:[#allocation9 + $0x3c] sm:$0xf]
        %v1262 = vld [vmem:[#allocation2 + $0xc] sm:$0xf]
        %v1263 = vld [vmem:[#allocation2 + $0x20] sm:$0xf]
        %v1264 = vld [vmem:[#allocation2 + $0x34] sm:$0xf]
        %v1265 = vld [vmem:[#allocation2 + $0x48] sm:$0xf]
        %v1266 = vld [vmem:[#allocation2 + $0x5c] sm:$0xf]
        %v1267 = vld [vmem:[#allocation2 + $0x70] sm:$0xf]
        %v1268 = vld [vmem:[#allocation2 + $0x84] sm:$0xf]
        %v1269 = vld [vmem:[#allocation2 + $0x98] sm:$0xf]
        %s1270 = scalar_lea.vmem [#allocation9], 64
        %v1271 = vld [vmem:[%s1270] sm:$0xf]
        %v1272 = vld [vmem:[%s1270 + $0x4] sm:$0xf]
        %v1273 = vld [vmem:[%s1270 + $0x8] sm:$0xf]
        %v1274 = vld [vmem:[%s1270 + $0xc] sm:$0xf]
        %v1275 = vld [vmem:[%s1270 + $0x10] sm:$0xf]
        %v1276 = vld [vmem:[%s1270 + $0x14] sm:$0xf]
        %v1277 = vld [vmem:[%s1270 + $0x18] sm:$0xf]
        %v1278 = vld [vmem:[%s1270 + $0x1c] sm:$0xf]
        %v1279 = vld [vmem:[%s1270 + $0x20] sm:$0xf]
        %v1280 = vld [vmem:[%s1270 + $0x24] sm:$0xf]
        %v1281 = vld [vmem:[%s1270 + $0x28] sm:$0xf]
        %v1282 = vld [vmem:[%s1270 + $0x2c] sm:$0xf]
        %v1283 = vld [vmem:[%s1270 + $0x30] sm:$0xf]
        %v1284 = vld [vmem:[%s1270 + $0x34] sm:$0xf]
        %v1285 = vld [vmem:[%s1270 + $0x38] sm:$0xf]
        %v1286 = vld [vmem:[%s1270 + $0x3c] sm:$0xf]
        %v1295 = vunpack.c.l.b16 %v1140
        %v1296 = vunpack.c.l.b16 %v1262
        %v1297 = vunpack.c.l.b16 %v1143
        %v1298 = vunpack.c.l.b16 %v1263
        %v1299 = vunpack.c.l.b16 %v1146
        %v1300 = vunpack.c.l.b16 %v1264
        %v1301 = vunpack.c.l.b16 %v1149
        %v1302 = vunpack.c.l.b16 %v1265
        %v1303 = vunpack.c.l.b16 %v1152
        %v1304 = vunpack.c.l.b16 %v1266
        %v1305 = vunpack.c.l.b16 %v1155
        %v1306 = vunpack.c.l.b16 %v1267
        %v1307 = vunpack.c.l.b16 %v1158
        %v1308 = vunpack.c.l.b16 %v1268
        %v1309 = vunpack.c.l.b16 %v1161
        %v1310 = vunpack.c.l.b16 %v1269
        %v1311 = vpack.c.b16 %v1296, %v1295
        %v1312 = vpack.c.b16 %v1298, %v1297
        %v1313 = vpack.c.b16 %v1300, %v1299
        %v1314 = vpack.c.b16 %v1302, %v1301
        %v1315 = vpack.c.b16 %v1304, %v1303
        %v1316 = vpack.c.b16 %v1306, %v1305
        %v1317 = vpack.c.b16 %v1308, %v1307
        %v1318 = vpack.c.b16 %v1310, %v1309
        %v1343 = vunpack.c.l.b16 %v1271
        %v1344 = vunpack.c.l.b16 %v1272
        %v1345 = vunpack.c.l.b16 %v1273
        %v1346 = vunpack.c.l.b16 %v1274
        %v1347 = vunpack.c.l.b16 %v1275
        %v1348 = vunpack.c.l.b16 %v1276
        %v1349 = vunpack.c.l.b16 %v1277
        %v1350 = vunpack.c.l.b16 %v1278
        %v1351 = vunpack.c.l.b16 %v1279
        %v1352 = vunpack.c.l.b16 %v1280
        %v1353 = vunpack.c.l.b16 %v1281
        %v1354 = vunpack.c.l.b16 %v1282
        %v1355 = vunpack.c.l.b16 %v1283
        %v1356 = vunpack.c.l.b16 %v1284
        %v1357 = vunpack.c.l.b16 %v1285
        %v1358 = vunpack.c.l.b16 %v1286
        %v1359 = vpack.c.b16 %v1344, %v1343
        %v1360 = vpack.c.b16 %v1346, %v1345
        %v1361 = vpack.c.b16 %v1348, %v1347
        %v1362 = vpack.c.b16 %v1350, %v1349
        %v1363 = vpack.c.b16 %v1352, %v1351
        %v1364 = vpack.c.b16 %v1354, %v1353
        %v1365 = vpack.c.b16 %v1356, %v1355
        %v1366 = vpack.c.b16 %v1358, %v1357
        %1375 = vmatprep.subr.bf16.mxu0 0
        %1376 = vmatpush1.bf16.msra.mxu0 %v1359
        %1377 = vmatprep.subr.bf16.mxu0 0
        %1378 = vmatpush1.bf16.msra.mxu0 %v1360
        %1379 = vmatprep.subr.bf16.mxu0 0
        %1380 = vmatpush1.bf16.msra.mxu0 %v1361
        %1381 = vmatprep.subr.bf16.mxu0 0
        %1382 = vmatpush1.bf16.msra.mxu0 %v1362
        %1383 = vmatprep.subr.bf16.mxu0 0
        %1384 = vmatpush1.bf16.msra.mxu0 %v1363
        %1385 = vmatprep.subr.bf16.mxu0 0
        %1386 = vmatpush1.bf16.msra.mxu0 %v1364
        %1387 = vmatprep.subr.bf16.mxu0 0
        %1388 = vmatpush1.bf16.msra.mxu0 %v1365
        %1389 = vmatprep.subr.bf16.mxu0 0
        %1390 = vmatpush1.bf16.msra.mxu0 %v1366
        %1391 = vmatprep.subr.bf16.mxu0 0
        %1392 = vmatpush1.bf16.msra.mxu0 0
        %1393 = vmatprep.subr.bf16.mxu0 0
        %1394 = vmatpush1.bf16.msra.mxu0 0
        %1395 = vmatprep.subr.bf16.mxu0 0
        %1396 = vmatpush1.bf16.msra.mxu0 0
        %1397 = vmatprep.subr.bf16.mxu0 0
        %1398 = vmatpush1.bf16.msra.mxu0 0
        %1399 = vmatprep.subr.bf16.mxu0 0
        %1400 = vmatpush1.bf16.msra.mxu0 0
        %1401 = vmatprep.subr.bf16.mxu0 0
        %1402 = vmatpush1.bf16.msra.mxu0 0
        %1403 = vmatprep.subr.bf16.mxu0 0
        %1404 = vmatpush1.bf16.msra.mxu0 0
        %1405 = vmatprep.subr.bf16.mxu0 0
        %1406 = vmatpush1.bf16.msra.mxu0 0
        %1407 = vmatprep.mubr.bf16.mxu0 0
        %1408 = vmatmul.mubr.bf16.gmra.mrb[0].mxu0 %v1311
        %v1409 = vpop.f32.mrb[0].mxu0
        %v1410 = vadd.f32 0.0, %v1409
        %v1411 = vpop.f32.mrb[0].mxu0
        %v1412 = vpop.f32.mrb[0].mxu0
        %v1413 = vadd.f32 0.0, %v1412
        %v1414 = vpop.f32.mrb[0].mxu0
        %1415 = vmatprep.mubr.bf16.mxu0 0
        %1416 = vmatmul.mubr.bf16.gmra.mrb[0].mxu0 %v1312
        %v1417 = vpop.f32.mrb[0].mxu0
        %v1418 = vadd.f32 0.0, %v1417
        %v1419 = vpop.f32.mrb[0].mxu0
        %v1420 = vpop.f32.mrb[0].mxu0
        %v1421 = vadd.f32 0.0, %v1420
        %v1422 = vpop.f32.mrb[0].mxu0
        %1423 = vmatprep.mubr.bf16.mxu0 0
        %1424 = vmatmul.mubr.bf16.gmra.mrb[0].mxu0 %v1313
        %v1425 = vpop.f32.mrb[0].mxu0
        %v1426 = vadd.f32 0.0, %v1425
        %v1427 = vpop.f32.mrb[0].mxu0
        %v1428 = vpop.f32.mrb[0].mxu0
        %v1429 = vadd.f32 0.0, %v1428
        %v1430 = vpop.f32.mrb[0].mxu0
        %1431 = vmatprep.mubr.bf16.mxu0 0
        %1432 = vmatmul.mubr.bf16.gmra.mrb[0].mxu0 %v1314
        %v1433 = vpop.f32.mrb[0].mxu0
        %v1434 = vadd.f32 0.0, %v1433
        %v1435 = vpop.f32.mrb[0].mxu0
        %v1436 = vpop.f32.mrb[0].mxu0
        %v1437 = vadd.f32 0.0, %v1436
        %v1438 = vpop.f32.mrb[0].mxu0
        %1439 = vmatprep.mubr.bf16.mxu0 0
        %1440 = vmatmul.mubr.bf16.gmra.mrb[0].mxu0 %v1315
        %v1441 = vpop.f32.mrb[0].mxu0
        %v1442 = vadd.f32 0.0, %v1441
        %v1443 = vpop.f32.mrb[0].mxu0
        %v1444 = vpop.f32.mrb[0].mxu0
        %v1445 = vadd.f32 0.0, %v1444
        %v1446 = vpop.f32.mrb[0].mxu0
        %1447 = vmatprep.mubr.bf16.mxu0 0
        %1448 = vmatmul.mubr.bf16.gmra.mrb[0].mxu0 %v1316
        %v1449 = vpop.f32.mrb[0].mxu0
        %v1450 = vadd.f32 0.0, %v1449
        %v1451 = vpop.f32.mrb[0].mxu0
        %v1452 = vpop.f32.mrb[0].mxu0
        %v1453 = vadd.f32 0.0, %v1452
        %v1454 = vpop.f32.mrb[0].mxu0
        %1455 = vmatprep.mubr.bf16.mxu0 0
        %1456 = vmatmul.mubr.bf16.gmra.mrb[0].mxu0 %v1317
        %v1457 = vpop.f32.mrb[0].mxu0
        %v1458 = vadd.f32 0.0, %v1457
        %v1459 = vpop.f32.mrb[0].mxu0
        %v1460 = vpop.f32.mrb[0].mxu0
        %v1461 = vadd.f32 0.0, %v1460
        %v1462 = vpop.f32.mrb[0].mxu0
        %1463 = vmatprep.mubr.bf16.mxu0 0
        %1464 = vmatmul.mubr.bf16.gmra.mrb[0].mxu0 %v1318
        %v1465 = vpop.f32.mrb[0].mxu0
        %v1466 = vadd.f32 0.0, %v1465
        %v1467 = vpop.f32.mrb[0].mxu0
        %v1468 = vpop.f32.mrb[0].mxu0
        %v1469 = vadd.f32 0.0, %v1468
        %v1470 = vpop.f32.mrb[0].mxu0
        %1471 = vdwg.mxu0
        %v1472 = vunpack.c.l.b16 %v1193
        %v1473 = vunpack.c.l.b16 %v1196
        %v1474 = vunpack.c.l.b16 %v1200
        %v1475 = vunpack.c.l.b16 %v1203
        %v1476 = vunpack.c.l.b16 %v1207
        %v1477 = vunpack.c.l.b16 %v1210
        %v1478 = vunpack.c.l.b16 %v1214
        %v1479 = vunpack.c.l.b16 %v1217
        %v1480 = vunpack.c.l.b16 %v1221
        %v1481 = vunpack.c.l.b16 %v1224
        %v1482 = vunpack.c.l.b16 %v1228
        %v1483 = vunpack.c.l.b16 %v1231
        %v1484 = vunpack.c.l.b16 %v1235
        %v1485 = vunpack.c.l.b16 %v1238
        %v1486 = vunpack.c.l.b16 %v1242
        %v1487 = vunpack.c.l.b16 %v1245
        %v1488 = vpack.c.b16 %v1473, %v1472
        %v1489 = vpack.c.b16 %v1475, %v1474
        %v1490 = vpack.c.b16 %v1477, %v1476
        %v1491 = vpack.c.b16 %v1479, %v1478
        %v1492 = vpack.c.b16 %v1481, %v1480
        %v1493 = vpack.c.b16 %v1483, %v1482
        %v1494 = vpack.c.b16 %v1485, %v1484
        %v1495 = vpack.c.b16 %v1487, %v1486
        %v1520 = vunpack.c.l.b16 %v1246
        %v1521 = vunpack.c.l.b16 %v1247
        %v1522 = vunpack.c.l.b16 %v1248
        %v1523 = vunpack.c.l.b16 %v1249
        %v1524 = vunpack.c.l.b16 %v1250
        %v1525 = vunpack.c.l.b16 %v1251
        %v1526 = vunpack.c.l.b16 %v1252
        %v1527 = vunpack.c.l.b16 %v1253
        %v1528 = vunpack.c.l.b16 %v1254
        %v1529 = vunpack.c.l.b16 %v1255
        %v1530 = vunpack.c.l.b16 %v1256
        %v1531 = vunpack.c.l.b16 %v1257
        %v1532 = vunpack.c.l.b16 %v1258
        %v1533 = vunpack.c.l.b16 %v1259
        %v1534 = vunpack.c.l.b16 %v1260
        %v1535 = vunpack.c.l.b16 %v1261
        %v1536 = vpack.c.b16 %v1521, %v1520
        %v1537 = vpack.c.b16 %v1523, %v1522
        %v1538 = vpack.c.b16 %v1525, %v1524
        %v1539 = vpack.c.b16 %v1527, %v1526
        %v1540 = vpack.c.b16 %v1529, %v1528
        %v1541 = vpack.c.b16 %v1531, %v1530
        %v1542 = vpack.c.b16 %v1533, %v1532
        %v1543 = vpack.c.b16 %v1535, %v1534
        %1552 = vmatprep.subr.bf16.mxu0 0
        %1553 = vmatpush1.bf16.msra.mxu0 %v1536
        %1554 = vmatprep.subr.bf16.mxu0 0
        %1555 = vmatpush1.bf16.msra.mxu0 %v1537
        %1556 = vmatprep.subr.bf16.mxu0 0
        %1557 = vmatpush1.bf16.msra.mxu0 %v1538
        %1558 = vmatprep.subr.bf16.mxu0 0
        %1559 = vmatpush1.bf16.msra.mxu0 %v1539
        %1560 = vmatprep.subr.bf16.mxu0 0
        %1561 = vmatpush1.bf16.msra.mxu0 %v1540
        %1562 = vmatprep.subr.bf16.mxu0 0
        %1563 = vmatpush1.bf16.msra.mxu0 %v1541
        %1564 = vmatprep.subr.bf16.mxu0 0
        %1565 = vmatpush1.bf16.msra.mxu0 %v1542
        %1566 = vmatprep.subr.bf16.mxu0 0
        %1567 = vmatpush1.bf16.msra.mxu0 %v1543
        %1568 = vmatprep.subr.bf16.mxu0 0
        %1569 = vmatpush1.bf16.msra.mxu0 0
        %1570 = vmatprep.subr.bf16.mxu0 0
        %1571 = vmatpush1.bf16.msra.mxu0 0
        %1572 = vmatprep.subr.bf16.mxu0 0
        %1573 = vmatpush1.bf16.msra.mxu0 0
        %1574 = vmatprep.subr.bf16.mxu0 0
        %1575 = vmatpush1.bf16.msra.mxu0 0
        %1576 = vmatprep.subr.bf16.mxu0 0
        %1577 = vmatpush1.bf16.msra.mxu0 0
        %1578 = vmatprep.subr.bf16.mxu0 0
        %1579 = vmatpush1.bf16.msra.mxu0 0
        %1580 = vmatprep.subr.bf16.mxu0 0
        %1581 = vmatpush1.bf16.msra.mxu0 0
        %1582 = vmatprep.subr.bf16.mxu0 0
        %1583 = vmatpush1.bf16.msra.mxu0 0
        %1584 = vmatprep.mubr.bf16.mxu0 0
        %1585 = vmatmul.mubr.bf16.gmra.mrb[0].mxu0 %v1488
        %v1586 = vpop.f32.mrb[0].mxu0
        %v1587 = vadd.f32 %v1410, %v1586
        %v1588 = vpop.f32.mrb[0].mxu0
        %v1589 = vpop.f32.mrb[0].mxu0
        %v1590 = vadd.f32 %v1413, %v1589
        %v1591 = vpop.f32.mrb[0].mxu0
        %1592 = vmatprep.mubr.bf16.mxu0 0
        %1593 = vmatmul.mubr.bf16.gmra.mrb[0].mxu0 %v1489
        %v1594 = vpop.f32.mrb[0].mxu0
        %v1595 = vadd.f32 %v1418, %v1594
        %v1596 = vpop.f32.mrb[0].mxu0
        %v1597 = vpop.f32.mrb[0].mxu0
        %v1598 = vadd.f32 %v1421, %v1597
        %v1599 = vpop.f32.mrb[0].mxu0
        %1600 = vmatprep.mubr.bf16.mxu0 0
        %1601 = vmatmul.mubr.bf16.gmra.mrb[0].mxu0 %v1490
        %v1602 = vpop.f32.mrb[0].mxu0
        %v1603 = vadd.f32 %v1426, %v1602
        %v1604 = vpop.f32.mrb[0].mxu0
        %v1605 = vpop.f32.mrb[0].mxu0
        %v1606 = vadd.f32 %v1429, %v1605
        %v1607 = vpop.f32.mrb[0].mxu0
        %1608 = vmatprep.mubr.bf16.mxu0 0
        %1609 = vmatmul.mubr.bf16.gmra.mrb[0].mxu0 %v1491
        %v1610 = vpop.f32.mrb[0].mxu0
        %v1611 = vadd.f32 %v1434, %v1610
        %v1612 = vpop.f32.mrb[0].mxu0
        %v1613 = vpop.f32.mrb[0].mxu0
        %v1614 = vadd.f32 %v1437, %v1613
        %v1615 = vpop.f32.mrb[0].mxu0
        %1616 = vmatprep.mubr.bf16.mxu0 0
        %1617 = vmatmul.mubr.bf16.gmra.mrb[0].mxu0 %v1492
        %v1618 = vpop.f32.mrb[0].mxu0
        %v1619 = vadd.f32 %v1442, %v1618
        %v1620 = vpop.f32.mrb[0].mxu0
        %v1621 = vpop.f32.mrb[0].mxu0
        %v1622 = vadd.f32 %v1445, %v1621
        %v1623 = vpop.f32.mrb[0].mxu0
        %1624 = vmatprep.mubr.bf16.mxu0 0
        %1625 = vmatmul.mubr.bf16.gmra.mrb[0].mxu0 %v1493
        %v1626 = vpop.f32.mrb[0].mxu0
        %v1627 = vadd.f32 %v1450, %v1626
        %v1628 = vpop.f32.mrb[0].mxu0
        %v1629 = vpop.f32.mrb[0].mxu0
        %v1630 = vadd.f32 %v1453, %v1629
        %v1631 = vpop.f32.mrb[0].mxu0
        %1632 = vmatprep.mubr.bf16.mxu0 0
        %1633 = vmatmul.mubr.bf16.gmra.mrb[0].mxu0 %v1494
        %v1634 = vpop.f32.mrb[0].mxu0
        %v1635 = vadd.f32 %v1458, %v1634
        %v1636 = vpop.f32.mrb[0].mxu0
        %v1637 = vpop.f32.mrb[0].mxu0
        %v1638 = vadd.f32 %v1461, %v1637
        %v1639 = vpop.f32.mrb[0].mxu0
        %1640 = vmatprep.mubr.bf16.mxu0 0
        %1641 = vmatmul.mubr.bf16.gmra.mrb[0].mxu0 %v1495
        %v1642 = vpop.f32.mrb[0].mxu0
        %v1643 = vadd.f32 %v1466, %v1642
        %v1644 = vpop.f32.mrb[0].mxu0
        %v1645 = vpop.f32.mrb[0].mxu0
        %v1646 = vadd.f32 %v1469, %v1645
        %v1647 = vpop.f32.mrb[0].mxu0
        %1648 = vdwg.mxu0
        %v1649 = vld [vmem:[#allocation2 + $0x8] sm:$0xe]
        %v1650 = vld [vmem:[#allocation2 + $0xc] sm:$0xf]
        %v1651 = vld [vmem:[#allocation2 + $0x10] sm:$0x1]
        %v1652 = vld [vmem:[#allocation2 + $0x1c] sm:$0xe]
        %v1653 = vld [vmem:[#allocation2 + $0x20] sm:$0xf]
        %v1654 = vld [vmem:[#allocation2 + $0x24] sm:$0x1]
        %v1655 = vld [vmem:[#allocation2 + $0x30] sm:$0xe]
        %v1656 = vld [vmem:[#allocation2 + $0x34] sm:$0xf]
        %v1657 = vld [vmem:[#allocation2 + $0x38] sm:$0x1]
        %v1658 = vld [vmem:[#allocation2 + $0x44] sm:$0xe]
        %v1659 = vld [vmem:[#allocation2 + $0x48] sm:$0xf]
        %v1660 = vld [vmem:[#allocation2 + $0x4c] sm:$0x1]
        %v1661 = vld [vmem:[#allocation2 + $0x58] sm:$0xe]
        %v1662 = vld [vmem:[#allocation2 + $0x5c] sm:$0xf]
        %v1663 = vld [vmem:[#allocation2 + $0x60] sm:$0x1]
        %v1664 = vld [vmem:[#allocation2 + $0x6c] sm:$0xe]
        %v1665 = vld [vmem:[#allocation2 + $0x70] sm:$0xf]
        %v1666 = vld [vmem:[#allocation2 + $0x74] sm:$0x1]
        %v1667 = vld [vmem:[#allocation2 + $0x80] sm:$0xe]
        %v1668 = vld [vmem:[#allocation2 + $0x84] sm:$0xf]
        %v1669 = vld [vmem:[#allocation2 + $0x88] sm:$0x1]
        %v1670 = vld [vmem:[#allocation2 + $0x94] sm:$0xe]
        %v1671 = vld [vmem:[#allocation2 + $0x98] sm:$0xf]
        %v1672 = vld [vmem:[#allocation2 + $0x9c] sm:$0x1]
        %vm1697 = vcmask 1042432
        %vm1698 = vcmask 1046532
        %vm1699 = vmor %vm1697, %vm1698
        %v1700 = vrot.slane %v1649, 5
        %v1701 = vrot.slane %v1700, 4
        %v1702 = vrot.slane %v1650, 5
        %v1703 = vsel %vm1699, %v1701, %v1702
        %v1704 = vrot.slane %v1702, 4
        %v1705 = vrot.slane %v1651, 5
        %v1706 = vsel %vm1699, %v1704, %v1705
        %v1707 = vrot.slane %v1652, 5
        %v1708 = vrot.slane %v1707, 4
        %v1709 = vrot.slane %v1653, 5
        %v1710 = vsel %vm1699, %v1708, %v1709
        %v1711 = vrot.slane %v1709, 4
        %v1712 = vrot.slane %v1654, 5
        %v1713 = vsel %vm1699, %v1711, %v1712
        %v1714 = vrot.slane %v1655, 5
        %v1715 = vrot.slane %v1714, 4
        %v1716 = vrot.slane %v1656, 5
        %v1717 = vsel %vm1699, %v1715, %v1716
        %v1718 = vrot.slane %v1716, 4
        %v1719 = vrot.slane %v1657, 5
        %v1720 = vsel %vm1699, %v1718, %v1719
        %v1721 = vrot.slane %v1658, 5
        %v1722 = vrot.slane %v1721, 4
        %v1723 = vrot.slane %v1659, 5
        %v1724 = vsel %vm1699, %v1722, %v1723
        %v1725 = vrot.slane %v1723, 4
        %v1726 = vrot.slane %v1660, 5
        %v1727 = vsel %vm1699, %v1725, %v1726
        %v1728 = vrot.slane %v1661, 5
        %v1729 = vrot.slane %v1728, 4
        %v1730 = vrot.slane %v1662, 5
        %v1731 = vsel %vm1699, %v1729, %v1730
        %v1732 = vrot.slane %v1730, 4
        %v1733 = vrot.slane %v1663, 5
        %v1734 = vsel %vm1699, %v1732, %v1733
        %v1735 = vrot.slane %v1664, 5
        %v1736 = vrot.slane %v1735, 4
        %v1737 = vrot.slane %v1665, 5
        %v1738 = vsel %vm1699, %v1736, %v1737
        %v1739 = vrot.slane %v1737, 4
        %v1740 = vrot.slane %v1666, 5
        %v1741 = vsel %vm1699, %v1739, %v1740
        %v1742 = vrot.slane %v1667, 5
        %v1743 = vrot.slane %v1742, 4
        %v1744 = vrot.slane %v1668, 5
        %v1745 = vsel %vm1699, %v1743, %v1744
        %v1746 = vrot.slane %v1744, 4
        %v1747 = vrot.slane %v1669, 5
        %v1748 = vsel %vm1699, %v1746, %v1747
        %v1749 = vrot.slane %v1670, 5
        %v1750 = vrot.slane %v1749, 4
        %v1751 = vrot.slane %v1671, 5
        %v1752 = vsel %vm1699, %v1750, %v1751
        %v1753 = vrot.slane %v1751, 4
        %v1754 = vrot.slane %v1672, 5
        %v1755 = vsel %vm1699, %v1753, %v1754
        %s1756 = scalar_lea.vmem [#allocation9], 128
        %v1757 = vld [vmem:[%s1756] sm:$0xf]
        %v1758 = vld [vmem:[%s1756 + $0x4] sm:$0xf]
        %v1759 = vld [vmem:[%s1756 + $0x8] sm:$0xf]
        %v1760 = vld [vmem:[%s1756 + $0xc] sm:$0xf]
        %v1761 = vld [vmem:[%s1756 + $0x10] sm:$0xf]
        %v1762 = vld [vmem:[%s1756 + $0x14] sm:$0xf]
        %v1763 = vld [vmem:[%s1756 + $0x18] sm:$0xf]
        %v1764 = vld [vmem:[%s1756 + $0x1c] sm:$0xf]
        %v1765 = vld [vmem:[%s1756 + $0x20] sm:$0xf]
        %v1766 = vld [vmem:[%s1756 + $0x24] sm:$0xf]
        %v1767 = vld [vmem:[%s1756 + $0x28] sm:$0xf]
        %v1768 = vld [vmem:[%s1756 + $0x2c] sm:$0xf]
        %v1769 = vld [vmem:[%s1756 + $0x30] sm:$0xf]
        %v1770 = vld [vmem:[%s1756 + $0x34] sm:$0xf]
        %v1771 = vld [vmem:[%s1756 + $0x38] sm:$0xf]
        %v1772 = vld [vmem:[%s1756 + $0x3c] sm:$0xf]
        %v1773 = vunpack.c.l.b16 %v1703
        %v1774 = vunpack.c.l.b16 %v1706
        %v1775 = vunpack.c.l.b16 %v1710
        %v1776 = vunpack.c.l.b16 %v1713
        %v1777 = vunpack.c.l.b16 %v1717
        %v1778 = vunpack.c.l.b16 %v1720
        %v1779 = vunpack.c.l.b16 %v1724
        %v1780 = vunpack.c.l.b16 %v1727
        %v1781 = vunpack.c.l.b16 %v1731
        %v1782 = vunpack.c.l.b16 %v1734
        %v1783 = vunpack.c.l.b16 %v1738
        %v1784 = vunpack.c.l.b16 %v1741
        %v1785 = vunpack.c.l.b16 %v1745
        %v1786 = vunpack.c.l.b16 %v1748
        %v1787 = vunpack.c.l.b16 %v1752
        %v1788 = vunpack.c.l.b16 %v1755
        %v1789 = vpack.c.b16 %v1774, %v1773
        %v1790 = vpack.c.b16 %v1776, %v1775
        %v1791 = vpack.c.b16 %v1778, %v1777
        %v1792 = vpack.c.b16 %v1780, %v1779
        %v1793 = vpack.c.b16 %v1782, %v1781
        %v1794 = vpack.c.b16 %v1784, %v1783
        %v1795 = vpack.c.b16 %v1786, %v1785
        %v1796 = vpack.c.b16 %v1788, %v1787
        %v1821 = vunpack.c.l.b16 %v1757
        %v1822 = vunpack.c.l.b16 %v1758
        %v1823 = vunpack.c.l.b16 %v1759
        %v1824 = vunpack.c.l.b16 %v1760
        %v1825 = vunpack.c.l.b16 %v1761
        %v1826 = vunpack.c.l.b16 %v1762
        %v1827 = vunpack.c.l.b16 %v1763
        %v1828 = vunpack.c.l.b16 %v1764
        %v1829 = vunpack.c.l.b16 %v1765
        %v1830 = vunpack.c.l.b16 %v1766
        %v1831 = vunpack.c.l.b16 %v1767
        %v1832 = vunpack.c.l.b16 %v1768
        %v1833 = vunpack.c.l.b16 %v1769
        %v1834 = vunpack.c.l.b16 %v1770
        %v1835 = vunpack.c.l.b16 %v1771
        %v1836 = vunpack.c.l.b16 %v1772
        %v1837 = vpack.c.b16 %v1822, %v1821
        %v1838 = vpack.c.b16 %v1824, %v1823
        %v1839 = vpack.c.b16 %v1826, %v1825
        %v1840 = vpack.c.b16 %v1828, %v1827
        %v1841 = vpack.c.b16 %v1830, %v1829
        %v1842 = vpack.c.b16 %v1832, %v1831
        %v1843 = vpack.c.b16 %v1834, %v1833
        %v1844 = vpack.c.b16 %v1836, %v1835
        %1853 = vmatprep.subr.bf16.mxu0 0
        %1854 = vmatpush1.bf16.msra.mxu0 %v1837
        %1855 = vmatprep.subr.bf16.mxu0 0
        %1856 = vmatpush1.bf16.msra.mxu0 %v1838
        %1857 = vmatprep.subr.bf16.mxu0 0
        %1858 = vmatpush1.bf16.msra.mxu0 %v1839
        %1859 = vmatprep.subr.bf16.mxu0 0
        %1860 = vmatpush1.bf16.msra.mxu0 %v1840
        %1861 = vmatprep.subr.bf16.mxu0 0
        %1862 = vmatpush1.bf16.msra.mxu0 %v1841
        %1863 = vmatprep.subr.bf16.mxu0 0
        %1864 = vmatpush1.bf16.msra.mxu0 %v1842
        %1865 = vmatprep.subr.bf16.mxu0 0
        %1866 = vmatpush1.bf16.msra.mxu0 %v1843
        %1867 = vmatprep.subr.bf16.mxu0 0
        %1868 = vmatpush1.bf16.msra.mxu0 %v1844
        %1869 = vmatprep.subr.bf16.mxu0 0
        %1870 = vmatpush1.bf16.msra.mxu0 0
        %1871 = vmatprep.subr.bf16.mxu0 0
        %1872 = vmatpush1.bf16.msra.mxu0 0
        %1873 = vmatprep.subr.bf16.mxu0 0
        %1874 = vmatpush1.bf16.msra.mxu0 0
        %1875 = vmatprep.subr.bf16.mxu0 0
        %1876 = vmatpush1.bf16.msra.mxu0 0
        %1877 = vmatprep.subr.bf16.mxu0 0
        %1878 = vmatpush1.bf16.msra.mxu0 0
        %1879 = vmatprep.subr.bf16.mxu0 0
        %1880 = vmatpush1.bf16.msra.mxu0 0
        %1881 = vmatprep.subr.bf16.mxu0 0
        %1882 = vmatpush1.bf16.msra.mxu0 0
        %1883 = vmatprep.subr.bf16.mxu0 0
        %1884 = vmatpush1.bf16.msra.mxu0 0
        %1885 = vmatprep.mubr.bf16.mxu0 0
        %1886 = vmatmul.mubr.bf16.gmra.mrb[0].mxu0 %v1789
        %v1887 = vpop.f32.mrb[0].mxu0
        %v1888 = vadd.f32 0.0, %v1887
        %v1889 = vpop.f32.mrb[0].mxu0
        %v1890 = vpop.f32.mrb[0].mxu0
        %v1891 = vadd.f32 0.0, %v1890
        %v1892 = vpop.f32.mrb[0].mxu0
        %1893 = vmatprep.mubr.bf16.mxu0 0
        %1894 = vmatmul.mubr.bf16.gmra.mrb[0].mxu0 %v1790
        %v1895 = vpop.f32.mrb[0].mxu0
        %v1896 = vadd.f32 0.0, %v1895
        %v1897 = vpop.f32.mrb[0].mxu0
        %v1898 = vpop.f32.mrb[0].mxu0
        %v1899 = vadd.f32 0.0, %v1898
        %v1900 = vpop.f32.mrb[0].mxu0
        %1901 = vmatprep.mubr.bf16.mxu0 0
        %1902 = vmatmul.mubr.bf16.gmra.mrb[0].mxu0 %v1791
        %v1903 = vpop.f32.mrb[0].mxu0
        %v1904 = vadd.f32 0.0, %v1903
        %v1905 = vpop.f32.mrb[0].mxu0
        %v1906 = vpop.f32.mrb[0].mxu0
        %v1907 = vadd.f32 0.0, %v1906
        %v1908 = vpop.f32.mrb[0].mxu0
        %1909 = vmatprep.mubr.bf16.mxu0 0
        %1910 = vmatmul.mubr.bf16.gmra.mrb[0].mxu0 %v1792
        %v1911 = vpop.f32.mrb[0].mxu0
        %v1912 = vadd.f32 0.0, %v1911
        %v1913 = vpop.f32.mrb[0].mxu0
        %v1914 = vpop.f32.mrb[0].mxu0
        %v1915 = vadd.f32 0.0, %v1914
        %v1916 = vpop.f32.mrb[0].mxu0
        %1917 = vmatprep.mubr.bf16.mxu0 0
        %1918 = vmatmul.mubr.bf16.gmra.mrb[0].mxu0 %v1793
        %v1919 = vpop.f32.mrb[0].mxu0
        %v1920 = vadd.f32 0.0, %v1919
        %v1921 = vpop.f32.mrb[0].mxu0
        %v1922 = vpop.f32.mrb[0].mxu0
        %v1923 = vadd.f32 0.0, %v1922
        %v1924 = vpop.f32.mrb[0].mxu0
        %1925 = vmatprep.mubr.bf16.mxu0 0
        %1926 = vmatmul.mubr.bf16.gmra.mrb[0].mxu0 %v1794
        %v1927 = vpop.f32.mrb[0].mxu0
        %v1928 = vadd.f32 0.0, %v1927
        %v1929 = vpop.f32.mrb[0].mxu0
        %v1930 = vpop.f32.mrb[0].mxu0
        %v1931 = vadd.f32 0.0, %v1930
        %v1932 = vpop.f32.mrb[0].mxu0
        %1933 = vmatprep.mubr.bf16.mxu0 0
        %1934 = vmatmul.mubr.bf16.gmra.mrb[0].mxu0 %v1795
        %v1935 = vpop.f32.mrb[0].mxu0
        %v1936 = vadd.f32 0.0, %v1935
        %v1937 = vpop.f32.mrb[0].mxu0
        %v1938 = vpop.f32.mrb[0].mxu0
        %v1939 = vadd.f32 0.0, %v1938
        %v1940 = vpop.f32.mrb[0].mxu0
        %1941 = vmatprep.mubr.bf16.mxu0 0
        %1942 = vmatmul.mubr.bf16.gmra.mrb[0].mxu0 %v1796
        %v1943 = vpop.f32.mrb[0].mxu0
        %v1944 = vadd.f32 0.0, %v1943
        %v1945 = vpop.f32.mrb[0].mxu0
        %v1946 = vpop.f32.mrb[0].mxu0
        %v1947 = vadd.f32 0.0, %v1946
        %v1948 = vpop.f32.mrb[0].mxu0
        %1949 = vdwg.mxu0
        %v1950 = vadd.f32 %v1587, %v1888
        %v1951 = vadd.f32 %v1590, %v1891
        %v1952 = vadd.f32 %v1595, %v1896
        %v1953 = vadd.f32 %v1598, %v1899
        %v1954 = vadd.f32 %v1603, %v1904
        %v1955 = vadd.f32 %v1606, %v1907
        %v1956 = vadd.f32 %v1611, %v1912
        %v1957 = vadd.f32 %v1614, %v1915
        %v1958 = vadd.f32 %v1619, %v1920
        %v1959 = vadd.f32 %v1622, %v1923
        %v1960 = vadd.f32 %v1627, %v1928
        %v1961 = vadd.f32 %v1630, %v1931
        %v1962 = vadd.f32 %v1635, %v1936
        %v1963 = vadd.f32 %v1638, %v1939
        %v1964 = vadd.f32 %v1643, %v1944
        %v1965 = vadd.f32 %v1646, %v1947
        %v1966 = vld [vmem:[%s833 + $0x4] sm:$0x8]
        %v1967 = vld [vmem:[%s833 + $0x8] sm:$0xf]
        %v1968 = vld [vmem:[%s833 + $0xc] sm:$0x7]
        %v1969 = vld [vmem:[%s833 + $0x18] sm:$0x8]
        %v1970 = vld [vmem:[%s833 + $0x1c] sm:$0xf]
        %v1971 = vld [vmem:[%s833 + $0x20] sm:$0x7]
        %v1972 = vld [vmem:[%s833 + $0x2c] sm:$0x8]
        %v1973 = vld [vmem:[%s833 + $0x30] sm:$0xf]
        %v1974 = vld [vmem:[%s833 + $0x34] sm:$0x7]
        %v1975 = vld [vmem:[%s833 + $0x40] sm:$0x8]
        %v1976 = vld [vmem:[%s833 + $0x44] sm:$0xf]
        %v1977 = vld [vmem:[%s833 + $0x48] sm:$0x7]
        %v1978 = vld [vmem:[%s833 + $0x54] sm:$0x8]
        %v1979 = vld [vmem:[%s833 + $0x58] sm:$0xf]
        %v1980 = vld [vmem:[%s833 + $0x5c] sm:$0x7]
        %v1981 = vld [vmem:[%s833 + $0x68] sm:$0x8]
        %v1982 = vld [vmem:[%s833 + $0x6c] sm:$0xf]
        %v1983 = vld [vmem:[%s833 + $0x70] sm:$0x7]
        %v1984 = vld [vmem:[%s833 + $0x7c] sm:$0x8]
        %v1985 = vld [vmem:[%s833 + $0x80] sm:$0xf]
        %v1986 = vld [vmem:[%s833 + $0x84] sm:$0x7]
        %v1987 = vld [vmem:[%s833 + $0x90] sm:$0x8]
        %v1988 = vld [vmem:[%s833 + $0x94] sm:$0xf]
        %v1989 = vld [vmem:[%s833 + $0x98] sm:$0x7]
        %v2014 = vrot.slane %v1966, 7
        %v2015 = vrot.slane %v2014, 4
        %v2016 = vrot.slane %v1967, 7
        %v2017 = vsel %vm1189, %v2015, %v2016
        %v2018 = vrot.slane %v2016, 4
        %v2019 = vrot.slane %v1968, 7
        %v2020 = vsel %vm1189, %v2018, %v2019
        %v2021 = vrot.slane %v1969, 7
        %v2022 = vrot.slane %v2021, 4
        %v2023 = vrot.slane %v1970, 7
        %v2024 = vsel %vm1189, %v2022, %v2023
        %v2025 = vrot.slane %v2023, 4
        %v2026 = vrot.slane %v1971, 7
        %v2027 = vsel %vm1189, %v2025, %v2026
        %v2028 = vrot.slane %v1972, 7
        %v2029 = vrot.slane %v2028, 4
        %v2030 = vrot.slane %v1973, 7
        %v2031 = vsel %vm1189, %v2029, %v2030
        %v2032 = vrot.slane %v2030, 4
        %v2033 = vrot.slane %v1974, 7
        %v2034 = vsel %vm1189, %v2032, %v2033
        %v2035 = vrot.slane %v1975, 7
        %v2036 = vrot.slane %v2035, 4
        %v2037 = vrot.slane %v1976, 7
        %v2038 = vsel %vm1189, %v2036, %v2037
        %v2039 = vrot.slane %v2037, 4
        %v2040 = vrot.slane %v1977, 7
        %v2041 = vsel %vm1189, %v2039, %v2040
        %v2042 = vrot.slane %v1978, 7
        %v2043 = vrot.slane %v2042, 4
        %v2044 = vrot.slane %v1979, 7
        %v2045 = vsel %vm1189, %v2043, %v2044
        %v2046 = vrot.slane %v2044, 4
        %v2047 = vrot.slane %v1980, 7
        %v2048 = vsel %vm1189, %v2046, %v2047
        %v2049 = vrot.slane %v1981, 7
        %v2050 = vrot.slane %v2049, 4
        %v2051 = vrot.slane %v1982, 7
        %v2052 = vsel %vm1189, %v2050, %v2051
        %v2053 = vrot.slane %v2051, 4
        %v2054 = vrot.slane %v1983, 7
        %v2055 = vsel %vm1189, %v2053, %v2054
        %v2056 = vrot.slane %v1984, 7
        %v2057 = vrot.slane %v2056, 4
        %v2058 = vrot.slane %v1985, 7
        %v2059 = vsel %vm1189, %v2057, %v2058
        %v2060 = vrot.slane %v2058, 4
        %v2061 = vrot.slane %v1986, 7
        %v2062 = vsel %vm1189, %v2060, %v2061
        %v2063 = vrot.slane %v1987, 7
        %v2064 = vrot.slane %v2063, 4
        %v2065 = vrot.slane %v1988, 7
        %v2066 = vsel %vm1189, %v2064, %v2065
        %v2067 = vrot.slane %v2065, 4
        %v2068 = vrot.slane %v1989, 7
        %v2069 = vsel %vm1189, %v2067, %v2068
        %s2070 = scalar_lea.vmem [#allocation9], 192
        %v2071 = vld [vmem:[%s2070] sm:$0xf]
        %v2072 = vld [vmem:[%s2070 + $0x4] sm:$0xf]
        %v2073 = vld [vmem:[%s2070 + $0x8] sm:$0xf]
        %v2074 = vld [vmem:[%s2070 + $0xc] sm:$0xf]
        %v2075 = vld [vmem:[%s2070 + $0x10] sm:$0xf]
        %v2076 = vld [vmem:[%s2070 + $0x14] sm:$0xf]
        %v2077 = vld [vmem:[%s2070 + $0x18] sm:$0xf]
        %v2078 = vld [vmem:[%s2070 + $0x1c] sm:$0xf]
        %v2079 = vld [vmem:[%s2070 + $0x20] sm:$0xf]
        %v2080 = vld [vmem:[%s2070 + $0x24] sm:$0xf]
        %v2081 = vld [vmem:[%s2070 + $0x28] sm:$0xf]
        %v2082 = vld [vmem:[%s2070 + $0x2c] sm:$0xf]
        %v2083 = vld [vmem:[%s2070 + $0x30] sm:$0xf]
        %v2084 = vld [vmem:[%s2070 + $0x34] sm:$0xf]
        %v2085 = vld [vmem:[%s2070 + $0x38] sm:$0xf]
        %v2086 = vld [vmem:[%s2070 + $0x3c] sm:$0xf]
        %v2087 = vunpack.c.l.b16 %v2017
        %v2088 = vunpack.c.l.b16 %v2020
        %v2089 = vunpack.c.l.b16 %v2024
        %v2090 = vunpack.c.l.b16 %v2027
        %v2091 = vunpack.c.l.b16 %v2031
        %v2092 = vunpack.c.l.b16 %v2034
        %v2093 = vunpack.c.l.b16 %v2038
        %v2094 = vunpack.c.l.b16 %v2041
        %v2095 = vunpack.c.l.b16 %v2045
        %v2096 = vunpack.c.l.b16 %v2048
        %v2097 = vunpack.c.l.b16 %v2052
        %v2098 = vunpack.c.l.b16 %v2055
        %v2099 = vunpack.c.l.b16 %v2059
        %v2100 = vunpack.c.l.b16 %v2062
        %v2101 = vunpack.c.l.b16 %v2066
        %v2102 = vunpack.c.l.b16 %v2069
        %v2103 = vpack.c.b16 %v2088, %v2087
        %v2104 = vpack.c.b16 %v2090, %v2089
        %v2105 = vpack.c.b16 %v2092, %v2091
        %v2106 = vpack.c.b16 %v2094, %v2093
        %v2107 = vpack.c.b16 %v2096, %v2095
        %v2108 = vpack.c.b16 %v2098, %v2097
        %v2109 = vpack.c.b16 %v2100, %v2099
        %v2110 = vpack.c.b16 %v2102, %v2101
        %v2135 = vunpack.c.l.b16 %v2071
        %v2136 = vunpack.c.l.b16 %v2072
        %v2137 = vunpack.c.l.b16 %v2073
        %v2138 = vunpack.c.l.b16 %v2074
        %v2139 = vunpack.c.l.b16 %v2075
        %v2140 = vunpack.c.l.b16 %v2076
        %v2141 = vunpack.c.l.b16 %v2077
        %v2142 = vunpack.c.l.b16 %v2078
        %v2143 = vunpack.c.l.b16 %v2079
        %v2144 = vunpack.c.l.b16 %v2080
        %v2145 = vunpack.c.l.b16 %v2081
        %v2146 = vunpack.c.l.b16 %v2082
        %v2147 = vunpack.c.l.b16 %v2083
        %v2148 = vunpack.c.l.b16 %v2084
        %v2149 = vunpack.c.l.b16 %v2085
        %v2150 = vunpack.c.l.b16 %v2086
        %v2151 = vpack.c.b16 %v2136, %v2135
        %v2152 = vpack.c.b16 %v2138, %v2137
        %v2153 = vpack.c.b16 %v2140, %v2139
        %v2154 = vpack.c.b16 %v2142, %v2141
        %v2155 = vpack.c.b16 %v2144, %v2143
        %v2156 = vpack.c.b16 %v2146, %v2145
        %v2157 = vpack.c.b16 %v2148, %v2147
        %v2158 = vpack.c.b16 %v2150, %v2149
        %2167 = vmatprep.subr.bf16.mxu0 0
        %2168 = vmatpush1.bf16.msra.mxu0 %v2151
        %2169 = vmatprep.subr.bf16.mxu0 0
        %2170 = vmatpush1.bf16.msra.mxu0 %v2152
        %2171 = vmatprep.subr.bf16.mxu0 0
        %2172 = vmatpush1.bf16.msra.mxu0 %v2153
        %2173 = vmatprep.subr.bf16.mxu0 0
        %2174 = vmatpush1.bf16.msra.mxu0 %v2154
        %2175 = vmatprep.subr.bf16.mxu0 0
        %2176 = vmatpush1.bf16.msra.mxu0 %v2155
        %2177 = vmatprep.subr.bf16.mxu0 0
        %2178 = vmatpush1.bf16.msra.mxu0 %v2156
        %2179 = vmatprep.subr.bf16.mxu0 0
        %2180 = vmatpush1.bf16.msra.mxu0 %v2157
        %2181 = vmatprep.subr.bf16.mxu0 0
        %2182 = vmatpush1.bf16.msra.mxu0 %v2158
        %2183 = vmatprep.subr.bf16.mxu0 0
        %2184 = vmatpush1.bf16.msra.mxu0 0
        %2185 = vmatprep.subr.bf16.mxu0 0
        %2186 = vmatpush1.bf16.msra.mxu0 0
        %2187 = vmatprep.subr.bf16.mxu0 0
        %2188 = vmatpush1.bf16.msra.mxu0 0
        %2189 = vmatprep.subr.bf16.mxu0 0
        %2190 = vmatpush1.bf16.msra.mxu0 0
        %2191 = vmatprep.subr.bf16.mxu0 0
        %2192 = vmatpush1.bf16.msra.mxu0 0
        %2193 = vmatprep.subr.bf16.mxu0 0
        %2194 = vmatpush1.bf16.msra.mxu0 0
        %2195 = vmatprep.subr.bf16.mxu0 0
        %2196 = vmatpush1.bf16.msra.mxu0 0
        %2197 = vmatprep.subr.bf16.mxu0 0
        %2198 = vmatpush1.bf16.msra.mxu0 0
        %2199 = vmatprep.mubr.bf16.mxu0 0
        %2200 = vmatmul.mubr.bf16.gmra.mrb[0].mxu0 %v2103
        %v2201 = vpop.f32.mrb[0].mxu0
        %v2202 = vadd.f32 0.0, %v2201
        %v2203 = vpop.f32.mrb[0].mxu0
        %v2204 = vpop.f32.mrb[0].mxu0
        %v2205 = vadd.f32 0.0, %v2204
        %v2206 = vpop.f32.mrb[0].mxu0
        %2207 = vmatprep.mubr.bf16.mxu0 0
        %2208 = vmatmul.mubr.bf16.gmra.mrb[0].mxu0 %v2104
        %v2209 = vpop.f32.mrb[0].mxu0
        %v2210 = vadd.f32 0.0, %v2209
        %v2211 = vpop.f32.mrb[0].mxu0
        %v2212 = vpop.f32.mrb[0].mxu0
        %v2213 = vadd.f32 0.0, %v2212
        %v2214 = vpop.f32.mrb[0].mxu0
        %2215 = vmatprep.mubr.bf16.mxu0 0
        %2216 = vmatmul.mubr.bf16.gmra.mrb[0].mxu0 %v2105
        %v2217 = vpop.f32.mrb[0].mxu0
        %v2218 = vadd.f32 0.0, %v2217
        %v2219 = vpop.f32.mrb[0].mxu0
        %v2220 = vpop.f32.mrb[0].mxu0
        %v2221 = vadd.f32 0.0, %v2220
        %v2222 = vpop.f32.mrb[0].mxu0
        %2223 = vmatprep.mubr.bf16.mxu0 0
        %2224 = vmatmul.mubr.bf16.gmra.mrb[0].mxu0 %v2106
        %v2225 = vpop.f32.mrb[0].mxu0
        %v2226 = vadd.f32 0.0, %v2225
        %v2227 = vpop.f32.mrb[0].mxu0
        %v2228 = vpop.f32.mrb[0].mxu0
        %v2229 = vadd.f32 0.0, %v2228
        %v2230 = vpop.f32.mrb[0].mxu0
        %2231 = vmatprep.mubr.bf16.mxu0 0
        %2232 = vmatmul.mubr.bf16.gmra.mrb[0].mxu0 %v2107
        %v2233 = vpop.f32.mrb[0].mxu0
        %v2234 = vadd.f32 0.0, %v2233
        %v2235 = vpop.f32.mrb[0].mxu0
        %v2236 = vpop.f32.mrb[0].mxu0
        %v2237 = vadd.f32 0.0, %v2236
        %v2238 = vpop.f32.mrb[0].mxu0
        %2239 = vmatprep.mubr.bf16.mxu0 0
        %2240 = vmatmul.mubr.bf16.gmra.mrb[0].mxu0 %v2108
        %v2241 = vpop.f32.mrb[0].mxu0
        %v2242 = vadd.f32 0.0, %v2241
        %v2243 = vpop.f32.mrb[0].mxu0
        %v2244 = vpop.f32.mrb[0].mxu0
        %v2245 = vadd.f32 0.0, %v2244
        %v2246 = vpop.f32.mrb[0].mxu0
        %2247 = vmatprep.mubr.bf16.mxu0 0
        %2248 = vmatmul.mubr.bf16.gmra.mrb[0].mxu0 %v2109
        %v2249 = vpop.f32.mrb[0].mxu0
        %v2250 = vadd.f32 0.0, %v2249
        %v2251 = vpop.f32.mrb[0].mxu0
        %v2252 = vpop.f32.mrb[0].mxu0
        %v2253 = vadd.f32 0.0, %v2252
        %v2254 = vpop.f32.mrb[0].mxu0
        %2255 = vmatprep.mubr.bf16.mxu0 0
        %2256 = vmatmul.mubr.bf16.gmra.mrb[0].mxu0 %v2110
        %v2257 = vpop.f32.mrb[0].mxu0
        %v2258 = vadd.f32 0.0, %v2257
        %v2259 = vpop.f32.mrb[0].mxu0
        %v2260 = vpop.f32.mrb[0].mxu0
        %v2261 = vadd.f32 0.0, %v2260
        %v2262 = vpop.f32.mrb[0].mxu0
        %2263 = vdwg.mxu0
        %v2264 = vadd.f32 %v1950, %v2202
        %v2265 = vadd.f32 %v1951, %v2205
        %v2266 = vadd.f32 %v1952, %v2210
        %v2267 = vadd.f32 %v1953, %v2213
        %v2268 = vadd.f32 %v1954, %v2218
        %v2269 = vadd.f32 %v1955, %v2221
        %v2270 = vadd.f32 %v1956, %v2226
        %v2271 = vadd.f32 %v1957, %v2229
        %v2272 = vadd.f32 %v1958, %v2234
        %v2273 = vadd.f32 %v1959, %v2237
        %v2274 = vadd.f32 %v1960, %v2242
        %v2275 = vadd.f32 %v1961, %v2245
        %v2276 = vadd.f32 %v1962, %v2250
        %v2277 = vadd.f32 %v1963, %v2253
        %v2278 = vadd.f32 %v1964, %v2258
        %v2279 = vadd.f32 %v1965, %v2261
        %v2280 = vld [vmem:[%s833 + $0xc] sm:$0xf]
        %v2281 = vld [vmem:[%s833 + $0x20] sm:$0xf]
        %v2282 = vld [vmem:[%s833 + $0x34] sm:$0xf]
        %v2283 = vld [vmem:[%s833 + $0x48] sm:$0xf]
        %v2284 = vld [vmem:[%s833 + $0x5c] sm:$0xf]
        %v2285 = vld [vmem:[%s833 + $0x70] sm:$0xf]
        %v2286 = vld [vmem:[%s833 + $0x84] sm:$0xf]
        %v2287 = vld [vmem:[%s833 + $0x98] sm:$0xf]
        %s2288 = scalar_lea.vmem [#allocation9], 256
        %v2289 = vld [vmem:[%s2288] sm:$0xf]
        %v2290 = vld [vmem:[%s2288 + $0x4] sm:$0xf]
        %v2291 = vld [vmem:[%s2288 + $0x8] sm:$0xf]
        %v2292 = vld [vmem:[%s2288 + $0xc] sm:$0xf]
        %v2293 = vld [vmem:[%s2288 + $0x10] sm:$0xf]
        %v2294 = vld [vmem:[%s2288 + $0x14] sm:$0xf]
        %v2295 = vld [vmem:[%s2288 + $0x18] sm:$0xf]
        %v2296 = vld [vmem:[%s2288 + $0x1c] sm:$0xf]
        %v2297 = vld [vmem:[%s2288 + $0x20] sm:$0xf]
        %v2298 = vld [vmem:[%s2288 + $0x24] sm:$0xf]
        %v2299 = vld [vmem:[%s2288 + $0x28] sm:$0xf]
        %v2300 = vld [vmem:[%s2288 + $0x2c] sm:$0xf]
        %v2301 = vld [vmem:[%s2288 + $0x30] sm:$0xf]
        %v2302 = vld [vmem:[%s2288 + $0x34] sm:$0xf]
        %v2303 = vld [vmem:[%s2288 + $0x38] sm:$0xf]
        %v2304 = vld [vmem:[%s2288 + $0x3c] sm:$0xf]
        %v2313 = vunpack.c.l.b16 %v1967
        %v2314 = vunpack.c.l.b16 %v2280
        %v2315 = vunpack.c.l.b16 %v1970
        %v2316 = vunpack.c.l.b16 %v2281
        %v2317 = vunpack.c.l.b16 %v1973
        %v2318 = vunpack.c.l.b16 %v2282
        %v2319 = vunpack.c.l.b16 %v1976
        %v2320 = vunpack.c.l.b16 %v2283
        %v2321 = vunpack.c.l.b16 %v1979
        %v2322 = vunpack.c.l.b16 %v2284
        %v2323 = vunpack.c.l.b16 %v1982
        %v2324 = vunpack.c.l.b16 %v2285
        %v2325 = vunpack.c.l.b16 %v1985
        %v2326 = vunpack.c.l.b16 %v2286
        %v2327 = vunpack.c.l.b16 %v1988
        %v2328 = vunpack.c.l.b16 %v2287
        %v2329 = vpack.c.b16 %v2314, %v2313
        %v2330 = vpack.c.b16 %v2316, %v2315
        %v2331 = vpack.c.b16 %v2318, %v2317
        %v2332 = vpack.c.b16 %v2320, %v2319
        %v2333 = vpack.c.b16 %v2322, %v2321
        %v2334 = vpack.c.b16 %v2324, %v2323
        %v2335 = vpack.c.b16 %v2326, %v2325
        %v2336 = vpack.c.b16 %v2328, %v2327
        %v2361 = vunpack.c.l.b16 %v2289
        %v2362 = vunpack.c.l.b16 %v2290
        %v2363 = vunpack.c.l.b16 %v2291
        %v2364 = vunpack.c.l.b16 %v2292
        %v2365 = vunpack.c.l.b16 %v2293
        %v2366 = vunpack.c.l.b16 %v2294
        %v2367 = vunpack.c.l.b16 %v2295
        %v2368 = vunpack.c.l.b16 %v2296
        %v2369 = vunpack.c.l.b16 %v2297
        %v2370 = vunpack.c.l.b16 %v2298
        %v2371 = vunpack.c.l.b16 %v2299
        %v2372 = vunpack.c.l.b16 %v2300
        %v2373 = vunpack.c.l.b16 %v2301
        %v2374 = vunpack.c.l.b16 %v2302
        %v2375 = vunpack.c.l.b16 %v2303
        %v2376 = vunpack.c.l.b16 %v2304
        %v2377 = vpack.c.b16 %v2362, %v2361
        %v2378 = vpack.c.b16 %v2364, %v2363
        %v2379 = vpack.c.b16 %v2366, %v2365
        %v2380 = vpack.c.b16 %v2368, %v2367
        %v2381 = vpack.c.b16 %v2370, %v2369
        %v2382 = vpack.c.b16 %v2372, %v2371
        %v2383 = vpack.c.b16 %v2374, %v2373
        %v2384 = vpack.c.b16 %v2376, %v2375
        %2393 = vmatprep.subr.bf16.mxu0 0
        %2394 = vmatpush1.bf16.msra.mxu0 %v2377
        %2395 = vmatprep.subr.bf16.mxu0 0
        %2396 = vmatpush1.bf16.msra.mxu0 %v2378
        %2397 = vmatprep.subr.bf16.mxu0 0
        %2398 = vmatpush1.bf16.msra.mxu0 %v2379
        %2399 = vmatprep.subr.bf16.mxu0 0
        %2400 = vmatpush1.bf16.msra.mxu0 %v2380
        %2401 = vmatprep.subr.bf16.mxu0 0
        %2402 = vmatpush1.bf16.msra.mxu0 %v2381
        %2403 = vmatprep.subr.bf16.mxu0 0
        %2404 = vmatpush1.bf16.msra.mxu0 %v2382
        %2405 = vmatprep.subr.bf16.mxu0 0
        %2406 = vmatpush1.bf16.msra.mxu0 %v2383
        %2407 = vmatprep.subr.bf16.mxu0 0
        %2408 = vmatpush1.bf16.msra.mxu0 %v2384
        %2409 = vmatprep.subr.bf16.mxu0 0
        %2410 = vmatpush1.bf16.msra.mxu0 0
        %2411 = vmatprep.subr.bf16.mxu0 0
        %2412 = vmatpush1.bf16.msra.mxu0 0
        %2413 = vmatprep.subr.bf16.mxu0 0
        %2414 = vmatpush1.bf16.msra.mxu0 0
        %2415 = vmatprep.subr.bf16.mxu0 0
        %2416 = vmatpush1.bf16.msra.mxu0 0
        %2417 = vmatprep.subr.bf16.mxu0 0
        %2418 = vmatpush1.bf16.msra.mxu0 0
        %2419 = vmatprep.subr.bf16.mxu0 0
        %2420 = vmatpush1.bf16.msra.mxu0 0
        %2421 = vmatprep.subr.bf16.mxu0 0
        %2422 = vmatpush1.bf16.msra.mxu0 0
        %2423 = vmatprep.subr.bf16.mxu0 0
        %2424 = vmatpush1.bf16.msra.mxu0 0
        %2425 = vmatprep.mubr.bf16.mxu0 0
        %2426 = vmatmul.mubr.bf16.gmra.mrb[0].mxu0 %v2329
        %v2427 = vpop.f32.mrb[0].mxu0
        %v2428 = vadd.f32 0.0, %v2427
        %v2429 = vpop.f32.mrb[0].mxu0
        %v2430 = vpop.f32.mrb[0].mxu0
        %v2431 = vadd.f32 0.0, %v2430
        %v2432 = vpop.f32.mrb[0].mxu0
        %2433 = vmatprep.mubr.bf16.mxu0 0
        %2434 = vmatmul.mubr.bf16.gmra.mrb[0].mxu0 %v2330
        %v2435 = vpop.f32.mrb[0].mxu0
        %v2436 = vadd.f32 0.0, %v2435
        %v2437 = vpop.f32.mrb[0].mxu0
        %v2438 = vpop.f32.mrb[0].mxu0
        %v2439 = vadd.f32 0.0, %v2438
        %v2440 = vpop.f32.mrb[0].mxu0
        %2441 = vmatprep.mubr.bf16.mxu0 0
        %2442 = vmatmul.mubr.bf16.gmra.mrb[0].mxu0 %v2331
        %v2443 = vpop.f32.mrb[0].mxu0
        %v2444 = vadd.f32 0.0, %v2443
        %v2445 = vpop.f32.mrb[0].mxu0
        %v2446 = vpop.f32.mrb[0].mxu0
        %v2447 = vadd.f32 0.0, %v2446
        %v2448 = vpop.f32.mrb[0].mxu0
        %2449 = vmatprep.mubr.bf16.mxu0 0
        %2450 = vmatmul.mubr.bf16.gmra.mrb[0].mxu0 %v2332
        %v2451 = vpop.f32.mrb[0].mxu0
        %v2452 = vadd.f32 0.0, %v2451
        %v2453 = vpop.f32.mrb[0].mxu0
        %v2454 = vpop.f32.mrb[0].mxu0
        %v2455 = vadd.f32 0.0, %v2454
        %v2456 = vpop.f32.mrb[0].mxu0
        %2457 = vmatprep.mubr.bf16.mxu0 0
        %2458 = vmatmul.mubr.bf16.gmra.mrb[0].mxu0 %v2333
        %v2459 = vpop.f32.mrb[0].mxu0
        %v2460 = vadd.f32 0.0, %v2459
        %v2461 = vpop.f32.mrb[0].mxu0
        %v2462 = vpop.f32.mrb[0].mxu0
        %v2463 = vadd.f32 0.0, %v2462
        %v2464 = vpop.f32.mrb[0].mxu0
        %2465 = vmatprep.mubr.bf16.mxu0 0
        %2466 = vmatmul.mubr.bf16.gmra.mrb[0].mxu0 %v2334
        %v2467 = vpop.f32.mrb[0].mxu0
        %v2468 = vadd.f32 0.0, %v2467
        %v2469 = vpop.f32.mrb[0].mxu0
        %v2470 = vpop.f32.mrb[0].mxu0
        %v2471 = vadd.f32 0.0, %v2470
        %v2472 = vpop.f32.mrb[0].mxu0
        %2473 = vmatprep.mubr.bf16.mxu0 0
        %2474 = vmatmul.mubr.bf16.gmra.mrb[0].mxu0 %v2335
        %v2475 = vpop.f32.mrb[0].mxu0
        %v2476 = vadd.f32 0.0, %v2475
        %v2477 = vpop.f32.mrb[0].mxu0
        %v2478 = vpop.f32.mrb[0].mxu0
        %v2479 = vadd.f32 0.0, %v2478
        %v2480 = vpop.f32.mrb[0].mxu0
        %2481 = vmatprep.mubr.bf16.mxu0 0
        %2482 = vmatmul.mubr.bf16.gmra.mrb[0].mxu0 %v2336
        %v2483 = vpop.f32.mrb[0].mxu0
        %v2484 = vadd.f32 0.0, %v2483
        %v2485 = vpop.f32.mrb[0].mxu0
        %v2486 = vpop.f32.mrb[0].mxu0
        %v2487 = vadd.f32 0.0, %v2486
        %v2488 = vpop.f32.mrb[0].mxu0
        %2489 = vdwg.mxu0
        %v2490 = vadd.f32 %v2264, %v2428
        %v2491 = vadd.f32 %v2265, %v2431
        %v2492 = vadd.f32 %v2266, %v2436
        %v2493 = vadd.f32 %v2267, %v2439
        %v2494 = vadd.f32 %v2268, %v2444
        %v2495 = vadd.f32 %v2269, %v2447
        %v2496 = vadd.f32 %v2270, %v2452
        %v2497 = vadd.f32 %v2271, %v2455
        %v2498 = vadd.f32 %v2272, %v2460
        %v2499 = vadd.f32 %v2273, %v2463
        %v2500 = vadd.f32 %v2274, %v2468
        %v2501 = vadd.f32 %v2275, %v2471
        %v2502 = vadd.f32 %v2276, %v2476
        %v2503 = vadd.f32 %v2277, %v2479
        %v2504 = vadd.f32 %v2278, %v2484
        %v2505 = vadd.f32 %v2279, %v2487
        %v2506 = vld [vmem:[%s833 + $0x8] sm:$0xe]
        %v2507 = vld [vmem:[%s833 + $0xc] sm:$0xf]
        %v2508 = vld [vmem:[%s833 + $0x10] sm:$0x1]
        %v2509 = vld [vmem:[%s833 + $0x1c] sm:$0xe]
        %v2510 = vld [vmem:[%s833 + $0x20] sm:$0xf]
        %v2511 = vld [vmem:[%s833 + $0x24] sm:$0x1]
        %v2512 = vld [vmem:[%s833 + $0x30] sm:$0xe]
        %v2513 = vld [vmem:[%s833 + $0x34] sm:$0xf]
        %v2514 = vld [vmem:[%s833 + $0x38] sm:$0x1]
        %v2515 = vld [vmem:[%s833 + $0x44] sm:$0xe]
        %v2516 = vld [vmem:[%s833 + $0x48] sm:$0xf]
        %v2517 = vld [vmem:[%s833 + $0x4c] sm:$0x1]
        %v2518 = vld [vmem:[%s833 + $0x58] sm:$0xe]
        %v2519 = vld [vmem:[%s833 + $0x5c] sm:$0xf]
        %v2520 = vld [vmem:[%s833 + $0x60] sm:$0x1]
        %v2521 = vld [vmem:[%s833 + $0x6c] sm:$0xe]
        %v2522 = vld [vmem:[%s833 + $0x70] sm:$0xf]
        %v2523 = vld [vmem:[%s833 + $0x74] sm:$0x1]
        %v2524 = vld [vmem:[%s833 + $0x80] sm:$0xe]
        %v2525 = vld [vmem:[%s833 + $0x84] sm:$0xf]
        %v2526 = vld [vmem:[%s833 + $0x88] sm:$0x1]
        %v2527 = vld [vmem:[%s833 + $0x94] sm:$0xe]
        %v2528 = vld [vmem:[%s833 + $0x98] sm:$0xf]
        %v2529 = vld [vmem:[%s833 + $0x9c] sm:$0x1]
        %v2554 = vrot.slane %v2506, 5
        %v2555 = vrot.slane %v2554, 4
        %v2556 = vrot.slane %v2507, 5
        %v2557 = vsel %vm1699, %v2555, %v2556
        %v2558 = vrot.slane %v2556, 4
        %v2559 = vrot.slane %v2508, 5
        %v2560 = vsel %vm1699, %v2558, %v2559
        %v2561 = vrot.slane %v2509, 5
        %v2562 = vrot.slane %v2561, 4
        %v2563 = vrot.slane %v2510, 5
        %v2564 = vsel %vm1699, %v2562, %v2563
        %v2565 = vrot.slane %v2563, 4
        %v2566 = vrot.slane %v2511, 5
        %v2567 = vsel %vm1699, %v2565, %v2566
        %v2568 = vrot.slane %v2512, 5
        %v2569 = vrot.slane %v2568, 4
        %v2570 = vrot.slane %v2513, 5
        %v2571 = vsel %vm1699, %v2569, %v2570
        %v2572 = vrot.slane %v2570, 4
        %v2573 = vrot.slane %v2514, 5
        %v2574 = vsel %vm1699, %v2572, %v2573
        %v2575 = vrot.slane %v2515, 5
        %v2576 = vrot.slane %v2575, 4
        %v2577 = vrot.slane %v2516, 5
        %v2578 = vsel %vm1699, %v2576, %v2577
        %v2579 = vrot.slane %v2577, 4
        %v2580 = vrot.slane %v2517, 5
        %v2581 = vsel %vm1699, %v2579, %v2580
        %v2582 = vrot.slane %v2518, 5
        %v2583 = vrot.slane %v2582, 4
        %v2584 = vrot.slane %v2519, 5
        %v2585 = vsel %vm1699, %v2583, %v2584
        %v2586 = vrot.slane %v2584, 4
        %v2587 = vrot.slane %v2520, 5
        %v2588 = vsel %vm1699, %v2586, %v2587
        %v2589 = vrot.slane %v2521, 5
        %v2590 = vrot.slane %v2589, 4
        %v2591 = vrot.slane %v2522, 5
        %v2592 = vsel %vm1699, %v2590, %v2591
        %v2593 = vrot.slane %v2591, 4
        %v2594 = vrot.slane %v2523, 5
        %v2595 = vsel %vm1699, %v2593, %v2594
        %v2596 = vrot.slane %v2524, 5
        %v2597 = vrot.slane %v2596, 4
        %v2598 = vrot.slane %v2525, 5
        %v2599 = vsel %vm1699, %v2597, %v2598
        %v2600 = vrot.slane %v2598, 4
        %v2601 = vrot.slane %v2526, 5
        %v2602 = vsel %vm1699, %v2600, %v2601
        %v2603 = vrot.slane %v2527, 5
        %v2604 = vrot.slane %v2603, 4
        %v2605 = vrot.slane %v2528, 5
        %v2606 = vsel %vm1699, %v2604, %v2605
        %v2607 = vrot.slane %v2605, 4
        %v2608 = vrot.slane %v2529, 5
        %v2609 = vsel %vm1699, %v2607, %v2608
        %s2610 = scalar_lea.vmem [#allocation9], 320
        %v2611 = vld [vmem:[%s2610] sm:$0xf]
        %v2612 = vld [vmem:[%s2610 + $0x4] sm:$0xf]
        %v2613 = vld [vmem:[%s2610 + $0x8] sm:$0xf]
        %v2614 = vld [vmem:[%s2610 + $0xc] sm:$0xf]
        %v2615 = vld [vmem:[%s2610 + $0x10] sm:$0xf]
        %v2616 = vld [vmem:[%s2610 + $0x14] sm:$0xf]
        %v2617 = vld [vmem:[%s2610 + $0x18] sm:$0xf]
        %v2618 = vld [vmem:[%s2610 + $0x1c] sm:$0xf]
        %v2619 = vld [vmem:[%s2610 + $0x20] sm:$0xf]
        %v2620 = vld [vmem:[%s2610 + $0x24] sm:$0xf]
        %v2621 = vld [vmem:[%s2610 + $0x28] sm:$0xf]
        %v2622 = vld [vmem:[%s2610 + $0x2c] sm:$0xf]
        %v2623 = vld [vmem:[%s2610 + $0x30] sm:$0xf]
        %v2624 = vld [vmem:[%s2610 + $0x34] sm:$0xf]
        %v2625 = vld [vmem:[%s2610 + $0x38] sm:$0xf]
        %v2626 = vld [vmem:[%s2610 + $0x3c] sm:$0xf]
        %v2627 = vunpack.c.l.b16 %v2557
        %v2628 = vunpack.c.l.b16 %v2560
        %v2629 = vunpack.c.l.b16 %v2564
        %v2630 = vunpack.c.l.b16 %v2567
        %v2631 = vunpack.c.l.b16 %v2571
        %v2632 = vunpack.c.l.b16 %v2574
        %v2633 = vunpack.c.l.b16 %v2578
        %v2634 = vunpack.c.l.b16 %v2581
        %v2635 = vunpack.c.l.b16 %v2585
        %v2636 = vunpack.c.l.b16 %v2588
        %v2637 = vunpack.c.l.b16 %v2592
        %v2638 = vunpack.c.l.b16 %v2595
        %v2639 = vunpack.c.l.b16 %v2599
        %v2640 = vunpack.c.l.b16 %v2602
        %v2641 = vunpack.c.l.b16 %v2606
        %v2642 = vunpack.c.l.b16 %v2609
        %v2643 = vpack.c.b16 %v2628, %v2627
        %v2644 = vpack.c.b16 %v2630, %v2629
        %v2645 = vpack.c.b16 %v2632, %v2631
        %v2646 = vpack.c.b16 %v2634, %v2633
        %v2647 = vpack.c.b16 %v2636, %v2635
        %v2648 = vpack.c.b16 %v2638, %v2637
        %v2649 = vpack.c.b16 %v2640, %v2639
        %v2650 = vpack.c.b16 %v2642, %v2641
        %v2675 = vunpack.c.l.b16 %v2611
        %v2676 = vunpack.c.l.b16 %v2612
        %v2677 = vunpack.c.l.b16 %v2613
        %v2678 = vunpack.c.l.b16 %v2614
        %v2679 = vunpack.c.l.b16 %v2615
        %v2680 = vunpack.c.l.b16 %v2616
        %v2681 = vunpack.c.l.b16 %v2617
        %v2682 = vunpack.c.l.b16 %v2618
        %v2683 = vunpack.c.l.b16 %v2619
        %v2684 = vunpack.c.l.b16 %v2620
        %v2685 = vunpack.c.l.b16 %v2621
        %v2686 = vunpack.c.l.b16 %v2622
        %v2687 = vunpack.c.l.b16 %v2623
        %v2688 = vunpack.c.l.b16 %v2624
        %v2689 = vunpack.c.l.b16 %v2625
        %v2690 = vunpack.c.l.b16 %v2626
        %v2691 = vpack.c.b16 %v2676, %v2675
        %v2692 = vpack.c.b16 %v2678, %v2677
        %v2693 = vpack.c.b16 %v2680, %v2679
        %v2694 = vpack.c.b16 %v2682, %v2681
        %v2695 = vpack.c.b16 %v2684, %v2683
        %v2696 = vpack.c.b16 %v2686, %v2685
        %v2697 = vpack.c.b16 %v2688, %v2687
        %v2698 = vpack.c.b16 %v2690, %v2689
        %2707 = vmatprep.subr.bf16.mxu0 0
        %2708 = vmatpush1.bf16.msra.mxu0 %v2691
        %2709 = vmatprep.subr.bf16.mxu0 0
        %2710 = vmatpush1.bf16.msra.mxu0 %v2692
        %2711 = vmatprep.subr.bf16.mxu0 0
        %2712 = vmatpush1.bf16.msra.mxu0 %v2693
        %2713 = vmatprep.subr.bf16.mxu0 0
        %2714 = vmatpush1.bf16.msra.mxu0 %v2694
        %2715 = vmatprep.subr.bf16.mxu0 0
        %2716 = vmatpush1.bf16.msra.mxu0 %v2695
        %2717 = vmatprep.subr.bf16.mxu0 0
        %2718 = vmatpush1.bf16.msra.mxu0 %v2696
        %2719 = vmatprep.subr.bf16.mxu0 0
        %2720 = vmatpush1.bf16.msra.mxu0 %v2697
        %2721 = vmatprep.subr.bf16.mxu0 0
        %2722 = vmatpush1.bf16.msra.mxu0 %v2698
        %2723 = vmatprep.subr.bf16.mxu0 0
        %2724 = vmatpush1.bf16.msra.mxu0 0
        %2725 = vmatprep.subr.bf16.mxu0 0
        %2726 = vmatpush1.bf16.msra.mxu0 0
        %2727 = vmatprep.subr.bf16.mxu0 0
        %2728 = vmatpush1.bf16.msra.mxu0 0
        %2729 = vmatprep.subr.bf16.mxu0 0
        %2730 = vmatpush1.bf16.msra.mxu0 0
        %2731 = vmatprep.subr.bf16.mxu0 0
        %2732 = vmatpush1.bf16.msra.mxu0 0
        %2733 = vmatprep.subr.bf16.mxu0 0
        %2734 = vmatpush1.bf16.msra.mxu0 0
        %2735 = vmatprep.subr.bf16.mxu0 0
        %2736 = vmatpush1.bf16.msra.mxu0 0
        %2737 = vmatprep.subr.bf16.mxu0 0
        %2738 = vmatpush1.bf16.msra.mxu0 0
        %2739 = vmatprep.mubr.bf16.mxu0 0
        %2740 = vmatmul.mubr.bf16.gmra.mrb[0].mxu0 %v2643
        %v2741 = vpop.f32.mrb[0].mxu0
        %v2742 = vadd.f32 0.0, %v2741
        %v2743 = vpop.f32.mrb[0].mxu0
        %v2744 = vpop.f32.mrb[0].mxu0
        %v2745 = vadd.f32 0.0, %v2744
        %v2746 = vpop.f32.mrb[0].mxu0
        %2747 = vmatprep.mubr.bf16.mxu0 0
        %2748 = vmatmul.mubr.bf16.gmra.mrb[0].mxu0 %v2644
        %v2749 = vpop.f32.mrb[0].mxu0
        %v2750 = vadd.f32 0.0, %v2749
        %v2751 = vpop.f32.mrb[0].mxu0
        %v2752 = vpop.f32.mrb[0].mxu0
        %v2753 = vadd.f32 0.0, %v2752
        %v2754 = vpop.f32.mrb[0].mxu0
        %2755 = vmatprep.mubr.bf16.mxu0 0
        %2756 = vmatmul.mubr.bf16.gmra.mrb[0].mxu0 %v2645
        %v2757 = vpop.f32.mrb[0].mxu0
        %v2758 = vadd.f32 0.0, %v2757
        %v2759 = vpop.f32.mrb[0].mxu0
        %v2760 = vpop.f32.mrb[0].mxu0
        %v2761 = vadd.f32 0.0, %v2760
        %v2762 = vpop.f32.mrb[0].mxu0
        %2763 = vmatprep.mubr.bf16.mxu0 0
        %2764 = vmatmul.mubr.bf16.gmra.mrb[0].mxu0 %v2646
        %v2765 = vpop.f32.mrb[0].mxu0
        %v2766 = vadd.f32 0.0, %v2765
        %v2767 = vpop.f32.mrb[0].mxu0
        %v2768 = vpop.f32.mrb[0].mxu0
        %v2769 = vadd.f32 0.0, %v2768
        %v2770 = vpop.f32.mrb[0].mxu0
        %2771 = vmatprep.mubr.bf16.mxu0 0
        %2772 = vmatmul.mubr.bf16.gmra.mrb[0].mxu0 %v2647
        %v2773 = vpop.f32.mrb[0].mxu0
        %v2774 = vadd.f32 0.0, %v2773
        %v2775 = vpop.f32.mrb[0].mxu0
        %v2776 = vpop.f32.mrb[0].mxu0
        %v2777 = vadd.f32 0.0, %v2776
        %v2778 = vpop.f32.mrb[0].mxu0
        %2779 = vmatprep.mubr.bf16.mxu0 0
        %2780 = vmatmul.mubr.bf16.gmra.mrb[0].mxu0 %v2648
        %v2781 = vpop.f32.mrb[0].mxu0
        %v2782 = vadd.f32 0.0, %v2781
        %v2783 = vpop.f32.mrb[0].mxu0
        %v2784 = vpop.f32.mrb[0].mxu0
        %v2785 = vadd.f32 0.0, %v2784
        %v2786 = vpop.f32.mrb[0].mxu0
        %2787 = vmatprep.mubr.bf16.mxu0 0
        %2788 = vmatmul.mubr.bf16.gmra.mrb[0].mxu0 %v2649
        %v2789 = vpop.f32.mrb[0].mxu0
        %v2790 = vadd.f32 0.0, %v2789
        %v2791 = vpop.f32.mrb[0].mxu0
        %v2792 = vpop.f32.mrb[0].mxu0
        %v2793 = vadd.f32 0.0, %v2792
        %v2794 = vpop.f32.mrb[0].mxu0
        %2795 = vmatprep.mubr.bf16.mxu0 0
        %2796 = vmatmul.mubr.bf16.gmra.mrb[0].mxu0 %v2650
        %v2797 = vpop.f32.mrb[0].mxu0
        %v2798 = vadd.f32 0.0, %v2797
        %v2799 = vpop.f32.mrb[0].mxu0
        %v2800 = vpop.f32.mrb[0].mxu0
        %v2801 = vadd.f32 0.0, %v2800
        %v2802 = vpop.f32.mrb[0].mxu0
        %2803 = vdwg.mxu0
        %v2804 = vadd.f32 %v2490, %v2742
        %v2805 = vadd.f32 %v2491, %v2745
        %v2806 = vadd.f32 %v2492, %v2750
        %v2807 = vadd.f32 %v2493, %v2753
        %v2808 = vadd.f32 %v2494, %v2758
        %v2809 = vadd.f32 %v2495, %v2761
        %v2810 = vadd.f32 %v2496, %v2766
        %v2811 = vadd.f32 %v2497, %v2769
        %v2812 = vadd.f32 %v2498, %v2774
        %v2813 = vadd.f32 %v2499, %v2777
        %v2814 = vadd.f32 %v2500, %v2782
        %v2815 = vadd.f32 %v2501, %v2785
        %v2816 = vadd.f32 %v2502, %v2790
        %v2817 = vadd.f32 %v2503, %v2793
        %v2818 = vadd.f32 %v2504, %v2798
        %v2819 = vadd.f32 %v2505, %v2801
        %s2820 = scalar_lea.vmem [#allocation2], 80
        %v2821 = vld [vmem:[%s2820 + $0x4] sm:$0x8]
        %v2822 = vld [vmem:[%s2820 + $0x8] sm:$0xf]
        %v2823 = vld [vmem:[%s2820 + $0xc] sm:$0x7]
        %v2824 = vld [vmem:[%s2820 + $0x18] sm:$0x8]
        %v2825 = vld [vmem:[%s2820 + $0x1c] sm:$0xf]
        %v2826 = vld [vmem:[%s2820 + $0x20] sm:$0x7]
        %v2827 = vld [vmem:[%s2820 + $0x2c] sm:$0x8]
        %v2828 = vld [vmem:[%s2820 + $0x30] sm:$0xf]
        %v2829 = vld [vmem:[%s2820 + $0x34] sm:$0x7]
        %v2830 = vld [vmem:[%s2820 + $0x40] sm:$0x8]
        %v2831 = vld [vmem:[%s2820 + $0x44] sm:$0xf]
        %v2832 = vld [vmem:[%s2820 + $0x48] sm:$0x7]
        %v2833 = vld [vmem:[%s2820 + $0x54] sm:$0x8]
        %v2834 = vld [vmem:[%s2820 + $0x58] sm:$0xf]
        %v2835 = vld [vmem:[%s2820 + $0x5c] sm:$0x7]
        %v2836 = vld [vmem:[%s2820 + $0x68] sm:$0x8]
        %v2837 = vld [vmem:[%s2820 + $0x6c] sm:$0xf]
        %v2838 = vld [vmem:[%s2820 + $0x70] sm:$0x7]
        %v2839 = vld [vmem:[%s2820 + $0x7c] sm:$0x8]
        %v2840 = vld [vmem:[%s2820 + $0x80] sm:$0xf]
        %v2841 = vld [vmem:[%s2820 + $0x84] sm:$0x7]
        %v2842 = vld [vmem:[%s2820 + $0x90] sm:$0x8]
        %v2843 = vld [vmem:[%s2820 + $0x94] sm:$0xf]
        %v2844 = vld [vmem:[%s2820 + $0x98] sm:$0x7]
        %v2869 = vrot.slane %v2821, 7
        %v2870 = vrot.slane %v2869, 4
        %v2871 = vrot.slane %v2822, 7
        %v2872 = vsel %vm1189, %v2870, %v2871
        %v2873 = vrot.slane %v2871, 4
        %v2874 = vrot.slane %v2823, 7
        %v2875 = vsel %vm1189, %v2873, %v2874
        %v2876 = vrot.slane %v2824, 7
        %v2877 = vrot.slane %v2876, 4
        %v2878 = vrot.slane %v2825, 7
        %v2879 = vsel %vm1189, %v2877, %v2878
        %v2880 = vrot.slane %v2878, 4
        %v2881 = vrot.slane %v2826, 7
        %v2882 = vsel %vm1189, %v2880, %v2881
        %v2883 = vrot.slane %v2827, 7
        %v2884 = vrot.slane %v2883, 4
        %v2885 = vrot.slane %v2828, 7
        %v2886 = vsel %vm1189, %v2884, %v2885
        %v2887 = vrot.slane %v2885, 4
        %v2888 = vrot.slane %v2829, 7
        %v2889 = vsel %vm1189, %v2887, %v2888
        %v2890 = vrot.slane %v2830, 7
        %v2891 = vrot.slane %v2890, 4
        %v2892 = vrot.slane %v2831, 7
        %v2893 = vsel %vm1189, %v2891, %v2892
        %v2894 = vrot.slane %v2892, 4
        %v2895 = vrot.slane %v2832, 7
        %v2896 = vsel %vm1189, %v2894, %v2895
        %v2897 = vrot.slane %v2833, 7
        %v2898 = vrot.slane %v2897, 4
        %v2899 = vrot.slane %v2834, 7
        %v2900 = vsel %vm1189, %v2898, %v2899
        %v2901 = vrot.slane %v2899, 4
        %v2902 = vrot.slane %v2835, 7
        %v2903 = vsel %vm1189, %v2901, %v2902
        %v2904 = vrot.slane %v2836, 7
        %v2905 = vrot.slane %v2904, 4
        %v2906 = vrot.slane %v2837, 7
        %v2907 = vsel %vm1189, %v2905, %v2906
        %v2908 = vrot.slane %v2906, 4
        %v2909 = vrot.slane %v2838, 7
        %v2910 = vsel %vm1189, %v2908, %v2909
        %v2911 = vrot.slane %v2839, 7
        %v2912 = vrot.slane %v2911, 4
        %v2913 = vrot.slane %v2840, 7
        %v2914 = vsel %vm1189, %v2912, %v2913
        %v2915 = vrot.slane %v2913, 4
        %v2916 = vrot.slane %v2841, 7
        %v2917 = vsel %vm1189, %v2915, %v2916
        %v2918 = vrot.slane %v2842, 7
        %v2919 = vrot.slane %v2918, 4
        %v2920 = vrot.slane %v2843, 7
        %v2921 = vsel %vm1189, %v2919, %v2920
        %v2922 = vrot.slane %v2920, 4
        %v2923 = vrot.slane %v2844, 7
        %v2924 = vsel %vm1189, %v2922, %v2923
        %s2925 = scalar_lea.vmem [#allocation9], 384
        %v2926 = vld [vmem:[%s2925] sm:$0xf]
        %v2927 = vld [vmem:[%s2925 + $0x4] sm:$0xf]
        %v2928 = vld [vmem:[%s2925 + $0x8] sm:$0xf]
        %v2929 = vld [vmem:[%s2925 + $0xc] sm:$0xf]
        %v2930 = vld [vmem:[%s2925 + $0x10] sm:$0xf]
        %v2931 = vld [vmem:[%s2925 + $0x14] sm:$0xf]
        %v2932 = vld [vmem:[%s2925 + $0x18] sm:$0xf]
        %v2933 = vld [vmem:[%s2925 + $0x1c] sm:$0xf]
        %v2934 = vld [vmem:[%s2925 + $0x20] sm:$0xf]
        %v2935 = vld [vmem:[%s2925 + $0x24] sm:$0xf]
        %v2936 = vld [vmem:[%s2925 + $0x28] sm:$0xf]
        %v2937 = vld [vmem:[%s2925 + $0x2c] sm:$0xf]
        %v2938 = vld [vmem:[%s2925 + $0x30] sm:$0xf]
        %v2939 = vld [vmem:[%s2925 + $0x34] sm:$0xf]
        %v2940 = vld [vmem:[%s2925 + $0x38] sm:$0xf]
        %v2941 = vld [vmem:[%s2925 + $0x3c] sm:$0xf]
        %v2942 = vunpack.c.l.b16 %v2872
        %v2943 = vunpack.c.l.b16 %v2875
        %v2944 = vunpack.c.l.b16 %v2879
        %v2945 = vunpack.c.l.b16 %v2882
        %v2946 = vunpack.c.l.b16 %v2886
        %v2947 = vunpack.c.l.b16 %v2889
        %v2948 = vunpack.c.l.b16 %v2893
        %v2949 = vunpack.c.l.b16 %v2896
        %v2950 = vunpack.c.l.b16 %v2900
        %v2951 = vunpack.c.l.b16 %v2903
        %v2952 = vunpack.c.l.b16 %v2907
        %v2953 = vunpack.c.l.b16 %v2910
        %v2954 = vunpack.c.l.b16 %v2914
        %v2955 = vunpack.c.l.b16 %v2917
        %v2956 = vunpack.c.l.b16 %v2921
        %v2957 = vunpack.c.l.b16 %v2924
        %v2958 = vpack.c.b16 %v2943, %v2942
        %v2959 = vpack.c.b16 %v2945, %v2944
        %v2960 = vpack.c.b16 %v2947, %v2946
        %v2961 = vpack.c.b16 %v2949, %v2948
        %v2962 = vpack.c.b16 %v2951, %v2950
        %v2963 = vpack.c.b16 %v2953, %v2952
        %v2964 = vpack.c.b16 %v2955, %v2954
        %v2965 = vpack.c.b16 %v2957, %v2956
        %v2990 = vunpack.c.l.b16 %v2926
        %v2991 = vunpack.c.l.b16 %v2927
        %v2992 = vunpack.c.l.b16 %v2928
        %v2993 = vunpack.c.l.b16 %v2929
        %v2994 = vunpack.c.l.b16 %v2930
        %v2995 = vunpack.c.l.b16 %v2931
        %v2996 = vunpack.c.l.b16 %v2932
        %v2997 = vunpack.c.l.b16 %v2933
        %v2998 = vunpack.c.l.b16 %v2934
        %v2999 = vunpack.c.l.b16 %v2935
        %v3000 = vunpack.c.l.b16 %v2936
        %v3001 = vunpack.c.l.b16 %v2937
        %v3002 = vunpack.c.l.b16 %v2938
        %v3003 = vunpack.c.l.b16 %v2939
        %v3004 = vunpack.c.l.b16 %v2940
        %v3005 = vunpack.c.l.b16 %v2941
        %v3006 = vpack.c.b16 %v2991, %v2990
        %v3007 = vpack.c.b16 %v2993, %v2992
        %v3008 = vpack.c.b16 %v2995, %v2994
        %v3009 = vpack.c.b16 %v2997, %v2996
        %v3010 = vpack.c.b16 %v2999, %v2998
        %v3011 = vpack.c.b16 %v3001, %v3000
        %v3012 = vpack.c.b16 %v3003, %v3002
        %v3013 = vpack.c.b16 %v3005, %v3004
        %3022 = vmatprep.subr.bf16.mxu0 0
        %3023 = vmatpush1.bf16.msra.mxu0 %v3006
        %3024 = vmatprep.subr.bf16.mxu0 0
        %3025 = vmatpush1.bf16.msra.mxu0 %v3007
        %3026 = vmatprep.subr.bf16.mxu0 0
        %3027 = vmatpush1.bf16.msra.mxu0 %v3008
        %3028 = vmatprep.subr.bf16.mxu0 0
        %3029 = vmatpush1.bf16.msra.mxu0 %v3009
        %3030 = vmatprep.subr.bf16.mxu0 0
        %3031 = vmatpush1.bf16.msra.mxu0 %v3010
        %3032 = vmatprep.subr.bf16.mxu0 0
        %3033 = vmatpush1.bf16.msra.mxu0 %v3011
        %3034 = vmatprep.subr.bf16.mxu0 0
        %3035 = vmatpush1.bf16.msra.mxu0 %v3012
        %3036 = vmatprep.subr.bf16.mxu0 0
        %3037 = vmatpush1.bf16.msra.mxu0 %v3013
        %3038 = vmatprep.subr.bf16.mxu0 0
        %3039 = vmatpush1.bf16.msra.mxu0 0
        %3040 = vmatprep.subr.bf16.mxu0 0
        %3041 = vmatpush1.bf16.msra.mxu0 0
        %3042 = vmatprep.subr.bf16.mxu0 0
        %3043 = vmatpush1.bf16.msra.mxu0 0
        %3044 = vmatprep.subr.bf16.mxu0 0
        %3045 = vmatpush1.bf16.msra.mxu0 0
        %3046 = vmatprep.subr.bf16.mxu0 0
        %3047 = vmatpush1.bf16.msra.mxu0 0
        %3048 = vmatprep.subr.bf16.mxu0 0
        %3049 = vmatpush1.bf16.msra.mxu0 0
        %3050 = vmatprep.subr.bf16.mxu0 0
        %3051 = vmatpush1.bf16.msra.mxu0 0
        %3052 = vmatprep.subr.bf16.mxu0 0
        %3053 = vmatpush1.bf16.msra.mxu0 0
        %3054 = vmatprep.mubr.bf16.mxu0 0
        %3055 = vmatmul.mubr.bf16.gmra.mrb[0].mxu0 %v2958
        %v3056 = vpop.f32.mrb[0].mxu0
        %v3057 = vadd.f32 0.0, %v3056
        %v3058 = vpop.f32.mrb[0].mxu0
        %v3059 = vpop.f32.mrb[0].mxu0
        %v3060 = vadd.f32 0.0, %v3059
        %v3061 = vpop.f32.mrb[0].mxu0
        %3062 = vmatprep.mubr.bf16.mxu0 0
        %3063 = vmatmul.mubr.bf16.gmra.mrb[0].mxu0 %v2959
        %v3064 = vpop.f32.mrb[0].mxu0
        %v3065 = vadd.f32 0.0, %v3064
        %v3066 = vpop.f32.mrb[0].mxu0
        %v3067 = vpop.f32.mrb[0].mxu0
        %v3068 = vadd.f32 0.0, %v3067
        %v3069 = vpop.f32.mrb[0].mxu0
        %3070 = vmatprep.mubr.bf16.mxu0 0
        %3071 = vmatmul.mubr.bf16.gmra.mrb[0].mxu0 %v2960
        %v3072 = vpop.f32.mrb[0].mxu0
        %v3073 = vadd.f32 0.0, %v3072
        %v3074 = vpop.f32.mrb[0].mxu0
        %v3075 = vpop.f32.mrb[0].mxu0
        %v3076 = vadd.f32 0.0, %v3075
        %v3077 = vpop.f32.mrb[0].mxu0
        %3078 = vmatprep.mubr.bf16.mxu0 0
        %3079 = vmatmul.mubr.bf16.gmra.mrb[0].mxu0 %v2961
        %v3080 = vpop.f32.mrb[0].mxu0
        %v3081 = vadd.f32 0.0, %v3080
        %v3082 = vpop.f32.mrb[0].mxu0
        %v3083 = vpop.f32.mrb[0].mxu0
        %v3084 = vadd.f32 0.0, %v3083
        %v3085 = vpop.f32.mrb[0].mxu0
        %3086 = vmatprep.mubr.bf16.mxu0 0
        %3087 = vmatmul.mubr.bf16.gmra.mrb[0].mxu0 %v2962
        %v3088 = vpop.f32.mrb[0].mxu0
        %v3089 = vadd.f32 0.0, %v3088
        %v3090 = vpop.f32.mrb[0].mxu0
        %v3091 = vpop.f32.mrb[0].mxu0
        %v3092 = vadd.f32 0.0, %v3091
        %v3093 = vpop.f32.mrb[0].mxu0
        %3094 = vmatprep.mubr.bf16.mxu0 0
        %3095 = vmatmul.mubr.bf16.gmra.mrb[0].mxu0 %v2963
        %v3096 = vpop.f32.mrb[0].mxu0
        %v3097 = vadd.f32 0.0, %v3096
        %v3098 = vpop.f32.mrb[0].mxu0
        %v3099 = vpop.f32.mrb[0].mxu0
        %v3100 = vadd.f32 0.0, %v3099
        %v3101 = vpop.f32.mrb[0].mxu0
        %3102 = vmatprep.mubr.bf16.mxu0 0
        %3103 = vmatmul.mubr.bf16.gmra.mrb[0].mxu0 %v2964
        %v3104 = vpop.f32.mrb[0].mxu0
        %v3105 = vadd.f32 0.0, %v3104
        %v3106 = vpop.f32.mrb[0].mxu0
        %v3107 = vpop.f32.mrb[0].mxu0
        %v3108 = vadd.f32 0.0, %v3107
        %v3109 = vpop.f32.mrb[0].mxu0
        %3110 = vmatprep.mubr.bf16.mxu0 0
        %3111 = vmatmul.mubr.bf16.gmra.mrb[0].mxu0 %v2965
        %v3112 = vpop.f32.mrb[0].mxu0
        %v3113 = vadd.f32 0.0, %v3112
        %v3114 = vpop.f32.mrb[0].mxu0
        %v3115 = vpop.f32.mrb[0].mxu0
        %v3116 = vadd.f32 0.0, %v3115
        %v3117 = vpop.f32.mrb[0].mxu0
        %3118 = vdwg.mxu0
        %v3119 = vadd.f32 %v2804, %v3057
        %v3120 = vadd.f32 %v2805, %v3060
        %v3121 = vadd.f32 %v2806, %v3065
        %v3122 = vadd.f32 %v2807, %v3068
        %v3123 = vadd.f32 %v2808, %v3073
        %v3124 = vadd.f32 %v2809, %v3076
        %v3125 = vadd.f32 %v2810, %v3081
        %v3126 = vadd.f32 %v2811, %v3084
        %v3127 = vadd.f32 %v2812, %v3089
        %v3128 = vadd.f32 %v2813, %v3092
        %v3129 = vadd.f32 %v2814, %v3097
        %v3130 = vadd.f32 %v2815, %v3100
        %v3131 = vadd.f32 %v2816, %v3105
        %v3132 = vadd.f32 %v2817, %v3108
        %v3133 = vadd.f32 %v2818, %v3113
        %v3134 = vadd.f32 %v2819, %v3116
        %v3135 = vld [vmem:[%s2820 + $0xc] sm:$0xf]
        %v3136 = vld [vmem:[%s2820 + $0x20] sm:$0xf]
        %v3137 = vld [vmem:[%s2820 + $0x34] sm:$0xf]
        %v3138 = vld [vmem:[%s2820 + $0x48] sm:$0xf]
        %v3139 = vld [vmem:[%s2820 + $0x5c] sm:$0xf]
        %v3140 = vld [vmem:[%s2820 + $0x70] sm:$0xf]
        %v3141 = vld [vmem:[%s2820 + $0x84] sm:$0xf]
        %v3142 = vld [vmem:[%s2820 + $0x98] sm:$0xf]
        %s3143 = scalar_lea.vmem [#allocation9], 448
        %v3144 = vld [vmem:[%s3143] sm:$0xf]
        %v3145 = vld [vmem:[%s3143 + $0x4] sm:$0xf]
        %v3146 = vld [vmem:[%s3143 + $0x8] sm:$0xf]
        %v3147 = vld [vmem:[%s3143 + $0xc] sm:$0xf]
        %v3148 = vld [vmem:[%s3143 + $0x10] sm:$0xf]
        %v3149 = vld [vmem:[%s3143 + $0x14] sm:$0xf]
        %v3150 = vld [vmem:[%s3143 + $0x18] sm:$0xf]
        %v3151 = vld [vmem:[%s3143 + $0x1c] sm:$0xf]
        %v3152 = vld [vmem:[%s3143 + $0x20] sm:$0xf]
        %v3153 = vld [vmem:[%s3143 + $0x24] sm:$0xf]
        %v3154 = vld [vmem:[%s3143 + $0x28] sm:$0xf]
        %v3155 = vld [vmem:[%s3143 + $0x2c] sm:$0xf]
        %v3156 = vld [vmem:[%s3143 + $0x30] sm:$0xf]
        %v3157 = vld [vmem:[%s3143 + $0x34] sm:$0xf]
        %v3158 = vld [vmem:[%s3143 + $0x38] sm:$0xf]
        %v3159 = vld [vmem:[%s3143 + $0x3c] sm:$0xf]
        %v3168 = vunpack.c.l.b16 %v2822
        %v3169 = vunpack.c.l.b16 %v3135
        %v3170 = vunpack.c.l.b16 %v2825
        %v3171 = vunpack.c.l.b16 %v3136
        %v3172 = vunpack.c.l.b16 %v2828
        %v3173 = vunpack.c.l.b16 %v3137
        %v3174 = vunpack.c.l.b16 %v2831
        %v3175 = vunpack.c.l.b16 %v3138
        %v3176 = vunpack.c.l.b16 %v2834
        %v3177 = vunpack.c.l.b16 %v3139
        %v3178 = vunpack.c.l.b16 %v2837
        %v3179 = vunpack.c.l.b16 %v3140
        %v3180 = vunpack.c.l.b16 %v2840
        %v3181 = vunpack.c.l.b16 %v3141
        %v3182 = vunpack.c.l.b16 %v2843
        %v3183 = vunpack.c.l.b16 %v3142
        %v3184 = vpack.c.b16 %v3169, %v3168
        %v3185 = vpack.c.b16 %v3171, %v3170
        %v3186 = vpack.c.b16 %v3173, %v3172
        %v3187 = vpack.c.b16 %v3175, %v3174
        %v3188 = vpack.c.b16 %v3177, %v3176
        %v3189 = vpack.c.b16 %v3179, %v3178
        %v3190 = vpack.c.b16 %v3181, %v3180
        %v3191 = vpack.c.b16 %v3183, %v3182
        %v3216 = vunpack.c.l.b16 %v3144
        %v3217 = vunpack.c.l.b16 %v3145
        %v3218 = vunpack.c.l.b16 %v3146
        %v3219 = vunpack.c.l.b16 %v3147
        %v3220 = vunpack.c.l.b16 %v3148
        %v3221 = vunpack.c.l.b16 %v3149
        %v3222 = vunpack.c.l.b16 %v3150
        %v3223 = vunpack.c.l.b16 %v3151
        %v3224 = vunpack.c.l.b16 %v3152
        %v3225 = vunpack.c.l.b16 %v3153
        %v3226 = vunpack.c.l.b16 %v3154
        %v3227 = vunpack.c.l.b16 %v3155
        %v3228 = vunpack.c.l.b16 %v3156
        %v3229 = vunpack.c.l.b16 %v3157
        %v3230 = vunpack.c.l.b16 %v3158
        %v3231 = vunpack.c.l.b16 %v3159
        %v3232 = vpack.c.b16 %v3217, %v3216
        %v3233 = vpack.c.b16 %v3219, %v3218
        %v3234 = vpack.c.b16 %v3221, %v3220
        %v3235 = vpack.c.b16 %v3223, %v3222
        %v3236 = vpack.c.b16 %v3225, %v3224
        %v3237 = vpack.c.b16 %v3227, %v3226
        %v3238 = vpack.c.b16 %v3229, %v3228
        %v3239 = vpack.c.b16 %v3231, %v3230
        %3248 = vmatprep.subr.bf16.mxu0 0
        %3249 = vmatpush1.bf16.msra.mxu0 %v3232
        %3250 = vmatprep.subr.bf16.mxu0 0
        %3251 = vmatpush1.bf16.msra.mxu0 %v3233
        %3252 = vmatprep.subr.bf16.mxu0 0
        %3253 = vmatpush1.bf16.msra.mxu0 %v3234
        %3254 = vmatprep.subr.bf16.mxu0 0
        %3255 = vmatpush1.bf16.msra.mxu0 %v3235
        %3256 = vmatprep.subr.bf16.mxu0 0
        %3257 = vmatpush1.bf16.msra.mxu0 %v3236
        %3258 = vmatprep.subr.bf16.mxu0 0
        %3259 = vmatpush1.bf16.msra.mxu0 %v3237
        %3260 = vmatprep.subr.bf16.mxu0 0
        %3261 = vmatpush1.bf16.msra.mxu0 %v3238
        %3262 = vmatprep.subr.bf16.mxu0 0
        %3263 = vmatpush1.bf16.msra.mxu0 %v3239
        %3264 = vmatprep.subr.bf16.mxu0 0
        %3265 = vmatpush1.bf16.msra.mxu0 0
        %3266 = vmatprep.subr.bf16.mxu0 0
        %3267 = vmatpush1.bf16.msra.mxu0 0
        %3268 = vmatprep.subr.bf16.mxu0 0
        %3269 = vmatpush1.bf16.msra.mxu0 0
        %3270 = vmatprep.subr.bf16.mxu0 0
        %3271 = vmatpush1.bf16.msra.mxu0 0
        %3272 = vmatprep.subr.bf16.mxu0 0
        %3273 = vmatpush1.bf16.msra.mxu0 0
        %3274 = vmatprep.subr.bf16.mxu0 0
        %3275 = vmatpush1.bf16.msra.mxu0 0
        %3276 = vmatprep.subr.bf16.mxu0 0
        %3277 = vmatpush1.bf16.msra.mxu0 0
        %3278 = vmatprep.subr.bf16.mxu0 0
        %3279 = vmatpush1.bf16.msra.mxu0 0
        %3280 = vmatprep.mubr.bf16.mxu0 0
        %3281 = vmatmul.mubr.bf16.gmra.mrb[0].mxu0 %v3184
        %v3282 = vpop.f32.mrb[0].mxu0
        %v3283 = vadd.f32 0.0, %v3282
        %v3284 = vpop.f32.mrb[0].mxu0
        %v3285 = vpop.f32.mrb[0].mxu0
        %v3286 = vadd.f32 0.0, %v3285
        %v3287 = vpop.f32.mrb[0].mxu0
        %3288 = vmatprep.mubr.bf16.mxu0 0
        %3289 = vmatmul.mubr.bf16.gmra.mrb[0].mxu0 %v3185
        %v3290 = vpop.f32.mrb[0].mxu0
        %v3291 = vadd.f32 0.0, %v3290
        %v3292 = vpop.f32.mrb[0].mxu0
        %v3293 = vpop.f32.mrb[0].mxu0
        %v3294 = vadd.f32 0.0, %v3293
        %v3295 = vpop.f32.mrb[0].mxu0
        %3296 = vmatprep.mubr.bf16.mxu0 0
        %3297 = vmatmul.mubr.bf16.gmra.mrb[0].mxu0 %v3186
        %v3298 = vpop.f32.mrb[0].mxu0
        %v3299 = vadd.f32 0.0, %v3298
        %v3300 = vpop.f32.mrb[0].mxu0
        %v3301 = vpop.f32.mrb[0].mxu0
        %v3302 = vadd.f32 0.0, %v3301
        %v3303 = vpop.f32.mrb[0].mxu0
        %3304 = vmatprep.mubr.bf16.mxu0 0
        %3305 = vmatmul.mubr.bf16.gmra.mrb[0].mxu0 %v3187
        %v3306 = vpop.f32.mrb[0].mxu0
        %v3307 = vadd.f32 0.0, %v3306
        %v3308 = vpop.f32.mrb[0].mxu0
        %v3309 = vpop.f32.mrb[0].mxu0
        %v3310 = vadd.f32 0.0, %v3309
        %v3311 = vpop.f32.mrb[0].mxu0
        %3312 = vmatprep.mubr.bf16.mxu0 0
        %3313 = vmatmul.mubr.bf16.gmra.mrb[0].mxu0 %v3188
        %v3314 = vpop.f32.mrb[0].mxu0
        %v3315 = vadd.f32 0.0, %v3314
        %v3316 = vpop.f32.mrb[0].mxu0
        %v3317 = vpop.f32.mrb[0].mxu0
        %v3318 = vadd.f32 0.0, %v3317
        %v3319 = vpop.f32.mrb[0].mxu0
        %3320 = vmatprep.mubr.bf16.mxu0 0
        %3321 = vmatmul.mubr.bf16.gmra.mrb[0].mxu0 %v3189
        %v3322 = vpop.f32.mrb[0].mxu0
        %v3323 = vadd.f32 0.0, %v3322
        %v3324 = vpop.f32.mrb[0].mxu0
        %v3325 = vpop.f32.mrb[0].mxu0
        %v3326 = vadd.f32 0.0, %v3325
        %v3327 = vpop.f32.mrb[0].mxu0
        %3328 = vmatprep.mubr.bf16.mxu0 0
        %3329 = vmatmul.mubr.bf16.gmra.mrb[0].mxu0 %v3190
        %v3330 = vpop.f32.mrb[0].mxu0
        %v3331 = vadd.f32 0.0, %v3330
        %v3332 = vpop.f32.mrb[0].mxu0
        %v3333 = vpop.f32.mrb[0].mxu0
        %v3334 = vadd.f32 0.0, %v3333
        %v3335 = vpop.f32.mrb[0].mxu0
        %3336 = vmatprep.mubr.bf16.mxu0 0
        %3337 = vmatmul.mubr.bf16.gmra.mrb[0].mxu0 %v3191
        %v3338 = vpop.f32.mrb[0].mxu0
        %v3339 = vadd.f32 0.0, %v3338
        %v3340 = vpop.f32.mrb[0].mxu0
        %v3341 = vpop.f32.mrb[0].mxu0
        %v3342 = vadd.f32 0.0, %v3341
        %v3343 = vpop.f32.mrb[0].mxu0
        %3344 = vdwg.mxu0
        %v3345 = vadd.f32 %v3119, %v3283
        %v3346 = vadd.f32 %v3120, %v3286
        %v3347 = vadd.f32 %v3121, %v3291
        %v3348 = vadd.f32 %v3122, %v3294
        %v3349 = vadd.f32 %v3123, %v3299
        %v3350 = vadd.f32 %v3124, %v3302
        %v3351 = vadd.f32 %v3125, %v3307
        %v3352 = vadd.f32 %v3126, %v3310
        %v3353 = vadd.f32 %v3127, %v3315
        %v3354 = vadd.f32 %v3128, %v3318
        %v3355 = vadd.f32 %v3129, %v3323
        %v3356 = vadd.f32 %v3130, %v3326
        %v3357 = vadd.f32 %v3131, %v3331
        %v3358 = vadd.f32 %v3132, %v3334
        %v3359 = vadd.f32 %v3133, %v3339
        %v3360 = vadd.f32 %v3134, %v3342
        %v3361 = vld [vmem:[%s2820 + $0x8] sm:$0xe]
        %v3362 = vld [vmem:[%s2820 + $0xc] sm:$0xf]
        %v3363 = vld [vmem:[%s2820 + $0x10] sm:$0x1]
        %v3364 = vld [vmem:[%s2820 + $0x1c] sm:$0xe]
        %v3365 = vld [vmem:[%s2820 + $0x20] sm:$0xf]
        %v3366 = vld [vmem:[%s2820 + $0x24] sm:$0x1]
        %v3367 = vld [vmem:[%s2820 + $0x30] sm:$0xe]
        %v3368 = vld [vmem:[%s2820 + $0x34] sm:$0xf]
        %v3369 = vld [vmem:[%s2820 + $0x38] sm:$0x1]
        %v3370 = vld [vmem:[%s2820 + $0x44] sm:$0xe]
        %v3371 = vld [vmem:[%s2820 + $0x48] sm:$0xf]
        %v3372 = vld [vmem:[%s2820 + $0x4c] sm:$0x1]
        %v3373 = vld [vmem:[%s2820 + $0x58] sm:$0xe]
        %v3374 = vld [vmem:[%s2820 + $0x5c] sm:$0xf]
        %v3375 = vld [vmem:[%s2820 + $0x60] sm:$0x1]
        %v3376 = vld [vmem:[%s2820 + $0x6c] sm:$0xe]
        %v3377 = vld [vmem:[%s2820 + $0x70] sm:$0xf]
        %v3378 = vld [vmem:[%s2820 + $0x74] sm:$0x1]
        %v3379 = vld [vmem:[%s2820 + $0x80] sm:$0xe]
        %v3380 = vld [vmem:[%s2820 + $0x84] sm:$0xf]
        %v3381 = vld [vmem:[%s2820 + $0x88] sm:$0x1]
        %v3382 = vld [vmem:[%s2820 + $0x94] sm:$0xe]
        %v3383 = vld [vmem:[%s2820 + $0x98] sm:$0xf]
        %v3384 = vld [vmem:[%s2820 + $0x9c] sm:$0x1]
        %v3409 = vrot.slane %v3361, 5
        %v3410 = vrot.slane %v3409, 4
        %v3411 = vrot.slane %v3362, 5
        %v3412 = vsel %vm1699, %v3410, %v3411
        %v3413 = vrot.slane %v3411, 4
        %v3414 = vrot.slane %v3363, 5
        %v3415 = vsel %vm1699, %v3413, %v3414
        %v3416 = vrot.slane %v3364, 5
        %v3417 = vrot.slane %v3416, 4
        %v3418 = vrot.slane %v3365, 5
        %v3419 = vsel %vm1699, %v3417, %v3418
        %v3420 = vrot.slane %v3418, 4
        %v3421 = vrot.slane %v3366, 5
        %v3422 = vsel %vm1699, %v3420, %v3421
        %v3423 = vrot.slane %v3367, 5
        %v3424 = vrot.slane %v3423, 4
        %v3425 = vrot.slane %v3368, 5
        %v3426 = vsel %vm1699, %v3424, %v3425
        %v3427 = vrot.slane %v3425, 4
        %v3428 = vrot.slane %v3369, 5
        %v3429 = vsel %vm1699, %v3427, %v3428
        %v3430 = vrot.slane %v3370, 5
        %v3431 = vrot.slane %v3430, 4
        %v3432 = vrot.slane %v3371, 5
        %v3433 = vsel %vm1699, %v3431, %v3432
        %v3434 = vrot.slane %v3432, 4
        %v3435 = vrot.slane %v3372, 5
        %v3436 = vsel %vm1699, %v3434, %v3435
        %v3437 = vrot.slane %v3373, 5
        %v3438 = vrot.slane %v3437, 4
        %v3439 = vrot.slane %v3374, 5
        %v3440 = vsel %vm1699, %v3438, %v3439
        %v3441 = vrot.slane %v3439, 4
        %v3442 = vrot.slane %v3375, 5
        %v3443 = vsel %vm1699, %v3441, %v3442
        %v3444 = vrot.slane %v3376, 5
        %v3445 = vrot.slane %v3444, 4
        %v3446 = vrot.slane %v3377, 5
        %v3447 = vsel %vm1699, %v3445, %v3446
        %v3448 = vrot.slane %v3446, 4
        %v3449 = vrot.slane %v3378, 5
        %v3450 = vsel %vm1699, %v3448, %v3449
        %v3451 = vrot.slane %v3379, 5
        %v3452 = vrot.slane %v3451, 4
        %v3453 = vrot.slane %v3380, 5
        %v3454 = vsel %vm1699, %v3452, %v3453
        %v3455 = vrot.slane %v3453, 4
        %v3456 = vrot.slane %v3381, 5
        %v3457 = vsel %vm1699, %v3455, %v3456
        %v3458 = vrot.slane %v3382, 5
        %v3459 = vrot.slane %v3458, 4
        %v3460 = vrot.slane %v3383, 5
        %v3461 = vsel %vm1699, %v3459, %v3460
        %v3462 = vrot.slane %v3460, 4
        %v3463 = vrot.slane %v3384, 5
        %v3464 = vsel %vm1699, %v3462, %v3463
        %s3465 = scalar_lea.vmem [#allocation9], 512
        %v3466 = vld [vmem:[%s3465] sm:$0xf]
        %v3467 = vld [vmem:[%s3465 + $0x4] sm:$0xf]
        %v3468 = vld [vmem:[%s3465 + $0x8] sm:$0xf]
        %v3469 = vld [vmem:[%s3465 + $0xc] sm:$0xf]
        %v3470 = vld [vmem:[%s3465 + $0x10] sm:$0xf]
        %v3471 = vld [vmem:[%s3465 + $0x14] sm:$0xf]
        %v3472 = vld [vmem:[%s3465 + $0x18] sm:$0xf]
        %v3473 = vld [vmem:[%s3465 + $0x1c] sm:$0xf]
        %v3474 = vld [vmem:[%s3465 + $0x20] sm:$0xf]
        %v3475 = vld [vmem:[%s3465 + $0x24] sm:$0xf]
        %v3476 = vld [vmem:[%s3465 + $0x28] sm:$0xf]
        %v3477 = vld [vmem:[%s3465 + $0x2c] sm:$0xf]
        %v3478 = vld [vmem:[%s3465 + $0x30] sm:$0xf]
        %v3479 = vld [vmem:[%s3465 + $0x34] sm:$0xf]
        %v3480 = vld [vmem:[%s3465 + $0x38] sm:$0xf]
        %v3481 = vld [vmem:[%s3465 + $0x3c] sm:$0xf]
        %v3482 = vunpack.c.l.b16 %v3412
        %v3483 = vunpack.c.l.b16 %v3415
        %v3484 = vunpack.c.l.b16 %v3419
        %v3485 = vunpack.c.l.b16 %v3422
        %v3486 = vunpack.c.l.b16 %v3426
        %v3487 = vunpack.c.l.b16 %v3429
        %v3488 = vunpack.c.l.b16 %v3433
        %v3489 = vunpack.c.l.b16 %v3436
        %v3490 = vunpack.c.l.b16 %v3440
        %v3491 = vunpack.c.l.b16 %v3443
        %v3492 = vunpack.c.l.b16 %v3447
        %v3493 = vunpack.c.l.b16 %v3450
        %v3494 = vunpack.c.l.b16 %v3454
        %v3495 = vunpack.c.l.b16 %v3457
        %v3496 = vunpack.c.l.b16 %v3461
        %v3497 = vunpack.c.l.b16 %v3464
        %v3498 = vpack.c.b16 %v3483, %v3482
        %v3499 = vpack.c.b16 %v3485, %v3484
        %v3500 = vpack.c.b16 %v3487, %v3486
        %v3501 = vpack.c.b16 %v3489, %v3488
        %v3502 = vpack.c.b16 %v3491, %v3490
        %v3503 = vpack.c.b16 %v3493, %v3492
        %v3504 = vpack.c.b16 %v3495, %v3494
        %v3505 = vpack.c.b16 %v3497, %v3496
        %v3530 = vunpack.c.l.b16 %v3466
        %v3531 = vunpack.c.l.b16 %v3467
        %v3532 = vunpack.c.l.b16 %v3468
        %v3533 = vunpack.c.l.b16 %v3469
        %v3534 = vunpack.c.l.b16 %v3470
        %v3535 = vunpack.c.l.b16 %v3471
        %v3536 = vunpack.c.l.b16 %v3472
        %v3537 = vunpack.c.l.b16 %v3473
        %v3538 = vunpack.c.l.b16 %v3474
        %v3539 = vunpack.c.l.b16 %v3475
        %v3540 = vunpack.c.l.b16 %v3476
        %v3541 = vunpack.c.l.b16 %v3477
        %v3542 = vunpack.c.l.b16 %v3478
        %v3543 = vunpack.c.l.b16 %v3479
        %v3544 = vunpack.c.l.b16 %v3480
        %v3545 = vunpack.c.l.b16 %v3481
        %v3546 = vpack.c.b16 %v3531, %v3530
        %v3547 = vpack.c.b16 %v3533, %v3532
        %v3548 = vpack.c.b16 %v3535, %v3534
        %v3549 = vpack.c.b16 %v3537, %v3536
        %v3550 = vpack.c.b16 %v3539, %v3538
        %v3551 = vpack.c.b16 %v3541, %v3540
        %v3552 = vpack.c.b16 %v3543, %v3542
        %v3553 = vpack.c.b16 %v3545, %v3544
        %3562 = vmatprep.subr.bf16.mxu0 0
        %3563 = vmatpush1.bf16.msra.mxu0 %v3546
        %3564 = vmatprep.subr.bf16.mxu0 0
        %3565 = vmatpush1.bf16.msra.mxu0 %v3547
        %3566 = vmatprep.subr.bf16.mxu0 0
        %3567 = vmatpush1.bf16.msra.mxu0 %v3548
        %3568 = vmatprep.subr.bf16.mxu0 0
        %3569 = vmatpush1.bf16.msra.mxu0 %v3549
        %3570 = vmatprep.subr.bf16.mxu0 0
        %3571 = vmatpush1.bf16.msra.mxu0 %v3550
        %3572 = vmatprep.subr.bf16.mxu0 0
        %3573 = vmatpush1.bf16.msra.mxu0 %v3551
        %3574 = vmatprep.subr.bf16.mxu0 0
        %3575 = vmatpush1.bf16.msra.mxu0 %v3552
        %3576 = vmatprep.subr.bf16.mxu0 0
        %3577 = vmatpush1.bf16.msra.mxu0 %v3553
        %3578 = vmatprep.subr.bf16.mxu0 0
        %3579 = vmatpush1.bf16.msra.mxu0 0
        %3580 = vmatprep.subr.bf16.mxu0 0
        %3581 = vmatpush1.bf16.msra.mxu0 0
        %3582 = vmatprep.subr.bf16.mxu0 0
        %3583 = vmatpush1.bf16.msra.mxu0 0
        %3584 = vmatprep.subr.bf16.mxu0 0
        %3585 = vmatpush1.bf16.msra.mxu0 0
        %3586 = vmatprep.subr.bf16.mxu0 0
        %3587 = vmatpush1.bf16.msra.mxu0 0
        %3588 = vmatprep.subr.bf16.mxu0 0
        %3589 = vmatpush1.bf16.msra.mxu0 0
        %3590 = vmatprep.subr.bf16.mxu0 0
        %3591 = vmatpush1.bf16.msra.mxu0 0
        %3592 = vmatprep.subr.bf16.mxu0 0
        %3593 = vmatpush1.bf16.msra.mxu0 0
        %3594 = vmatprep.mubr.bf16.mxu0 0
        %3595 = vmatmul.mubr.bf16.gmra.mrb[0].mxu0 %v3498
        %v3596 = vpop.f32.mrb[0].mxu0
        %v3597 = vadd.f32 0.0, %v3596
        %v3598 = vpop.f32.mrb[0].mxu0
        %v3599 = vpop.f32.mrb[0].mxu0
        %v3600 = vadd.f32 0.0, %v3599
        %v3601 = vpop.f32.mrb[0].mxu0
        %3602 = vmatprep.mubr.bf16.mxu0 0
        %3603 = vmatmul.mubr.bf16.gmra.mrb[0].mxu0 %v3499
        %v3604 = vpop.f32.mrb[0].mxu0
        %v3605 = vadd.f32 0.0, %v3604
        %v3606 = vpop.f32.mrb[0].mxu0
        %v3607 = vpop.f32.mrb[0].mxu0
        %v3608 = vadd.f32 0.0, %v3607
        %v3609 = vpop.f32.mrb[0].mxu0
        %3610 = vmatprep.mubr.bf16.mxu0 0
        %3611 = vmatmul.mubr.bf16.gmra.mrb[0].mxu0 %v3500
        %v3612 = vpop.f32.mrb[0].mxu0
        %v3613 = vadd.f32 0.0, %v3612
        %v3614 = vpop.f32.mrb[0].mxu0
        %v3615 = vpop.f32.mrb[0].mxu0
        %v3616 = vadd.f32 0.0, %v3615
        %v3617 = vpop.f32.mrb[0].mxu0
        %3618 = vmatprep.mubr.bf16.mxu0 0
        %3619 = vmatmul.mubr.bf16.gmra.mrb[0].mxu0 %v3501
        %v3620 = vpop.f32.mrb[0].mxu0
        %v3621 = vadd.f32 0.0, %v3620
        %v3622 = vpop.f32.mrb[0].mxu0
        %v3623 = vpop.f32.mrb[0].mxu0
        %v3624 = vadd.f32 0.0, %v3623
        %v3625 = vpop.f32.mrb[0].mxu0
        %3626 = vmatprep.mubr.bf16.mxu0 0
        %3627 = vmatmul.mubr.bf16.gmra.mrb[0].mxu0 %v3502
        %v3628 = vpop.f32.mrb[0].mxu0
        %v3629 = vadd.f32 0.0, %v3628
        %v3630 = vpop.f32.mrb[0].mxu0
        %v3631 = vpop.f32.mrb[0].mxu0
        %v3632 = vadd.f32 0.0, %v3631
        %v3633 = vpop.f32.mrb[0].mxu0
        %3634 = vmatprep.mubr.bf16.mxu0 0
        %3635 = vmatmul.mubr.bf16.gmra.mrb[0].mxu0 %v3503
        %v3636 = vpop.f32.mrb[0].mxu0
        %v3637 = vadd.f32 0.0, %v3636
        %v3638 = vpop.f32.mrb[0].mxu0
        %v3639 = vpop.f32.mrb[0].mxu0
        %v3640 = vadd.f32 0.0, %v3639
        %v3641 = vpop.f32.mrb[0].mxu0
        %3642 = vmatprep.mubr.bf16.mxu0 0
        %3643 = vmatmul.mubr.bf16.gmra.mrb[0].mxu0 %v3504
        %v3644 = vpop.f32.mrb[0].mxu0
        %v3645 = vadd.f32 0.0, %v3644
        %v3646 = vpop.f32.mrb[0].mxu0
        %v3647 = vpop.f32.mrb[0].mxu0
        %v3648 = vadd.f32 0.0, %v3647
        %v3649 = vpop.f32.mrb[0].mxu0
        %3650 = vmatprep.mubr.bf16.mxu0 0
        %3651 = vmatmul.mubr.bf16.gmra.mrb[0].mxu0 %v3505
        %v3652 = vpop.f32.mrb[0].mxu0
        %v3653 = vadd.f32 0.0, %v3652
        %v3654 = vpop.f32.mrb[0].mxu0
        %v3655 = vpop.f32.mrb[0].mxu0
        %v3656 = vadd.f32 0.0, %v3655
        %v3657 = vpop.f32.mrb[0].mxu0
        %3658 = vdwg.mxu0
        %v3659 = vadd.f32 %v3345, %v3597
        %v3660 = vadd.f32 %v3346, %v3600
        %v3661 = vadd.f32 %v3347, %v3605
        %v3662 = vadd.f32 %v3348, %v3608
        %v3663 = vadd.f32 %v3349, %v3613
        %v3664 = vadd.f32 %v3350, %v3616
        %v3665 = vadd.f32 %v3351, %v3621
        %v3666 = vadd.f32 %v3352, %v3624
        %v3667 = vadd.f32 %v3353, %v3629
        %v3668 = vadd.f32 %v3354, %v3632
        %v3669 = vadd.f32 %v3355, %v3637
        %v3670 = vadd.f32 %v3356, %v3640
        %v3671 = vadd.f32 %v3357, %v3645
        %v3672 = vadd.f32 %v3358, %v3648
        %v3673 = vadd.f32 %v3359, %v3653
        %v3674 = vadd.f32 %v3360, %v3656
        %v3675 = vld [vmem:[%s5] sm:$0x1]
        %v3677 = vlaneseq
        %v3678 = vshrl.u32 %v3677, 7
        %v3679 = vsub.s32 0, %v3678
        %v3680 = vrot.slane %v3675, %v3679
        %v3682 = vadd.f32 %v3659, %v3680
        %v3683 = vadd.f32 %v3660, %v3680
        %v3684 = vadd.f32 %v3661, %v3680
        %v3685 = vadd.f32 %v3662, %v3680
        %v3686 = vadd.f32 %v3663, %v3680
        %v3687 = vadd.f32 %v3664, %v3680
        %v3688 = vadd.f32 %v3665, %v3680
        %v3689 = vadd.f32 %v3666, %v3680
        %v3690 = vadd.f32 %v3667, %v3680
        %v3691 = vadd.f32 %v3668, %v3680
        %v3692 = vadd.f32 %v3669, %v3680
        %v3693 = vadd.f32 %v3670, %v3680
        %v3694 = vadd.f32 %v3671, %v3680
        %v3695 = vadd.f32 %v3672, %v3680
        %v3696 = vadd.f32 %v3673, %v3680
        %v3697 = vadd.f32 %v3674, %v3680
        %v3698 = vmax.f32 %v3682, 0.0
        %v3699 = vmax.f32 %v3683, 0.0
        %v3700 = vmax.f32 %v3684, 0.0
        %v3701 = vmax.f32 %v3685, 0.0
        %v3702 = vmax.f32 %v3686, 0.0
        %v3703 = vmax.f32 %v3687, 0.0
        %v3704 = vmax.f32 %v3688, 0.0
        %v3705 = vmax.f32 %v3689, 0.0
        %v3706 = vmax.f32 %v3690, 0.0
        %v3707 = vmax.f32 %v3691, 0.0
        %v3708 = vmax.f32 %v3692, 0.0
        %v3709 = vmax.f32 %v3693, 0.0
        %v3710 = vmax.f32 %v3694, 0.0
        %v3711 = vmax.f32 %v3695, 0.0
        %v3712 = vmax.f32 %v3696, 0.0
        %v3713 = vmax.f32 %v3697, 0.0
        %v3714 = vpack.c.bf16 %v3699, %v3698
        %v3715 = vpack.c.bf16 %v3701, %v3700
        %v3716 = vpack.c.bf16 %v3703, %v3702
        %v3717 = vpack.c.bf16 %v3705, %v3704
        %v3718 = vpack.c.bf16 %v3707, %v3706
        %v3719 = vpack.c.bf16 %v3709, %v3708
        %v3720 = vpack.c.bf16 %v3711, %v3710
        %v3721 = vpack.c.bf16 %v3713, %v3712
        %v3722 = vld [vmem:[#allocation11] sm:$0xff]
        %v3723 = vld [vmem:[#allocation11 + $0x8] sm:$0xff]
        %v3724 = vld [vmem:[#allocation11 + $0x10] sm:$0xff]
        %v3725 = vld [vmem:[#allocation11 + $0x18] sm:$0xff]
        %v3726 = vld [vmem:[#allocation11 + $0x20] sm:$0xff]
        %v3727 = vld [vmem:[#allocation11 + $0x28] sm:$0xff]
        %v3728 = vld [vmem:[#allocation11 + $0x30] sm:$0xff]
        %v3729 = vld [vmem:[#allocation11 + $0x38] sm:$0xff]
        %v3730 = vld [vmem:[#allocation11 + $0x40] sm:$0xff]
        %v3731 = vld [vmem:[#allocation11 + $0x48] sm:$0xff]
        %v3732 = vld [vmem:[#allocation11 + $0x50] sm:$0xff]
        %v3733 = vld [vmem:[#allocation11 + $0x58] sm:$0xff]
        %v3734 = vld [vmem:[#allocation11 + $0x60] sm:$0xff]
        %v3735 = vld [vmem:[#allocation11 + $0x68] sm:$0xff]
        %v3736 = vld [vmem:[#allocation11 + $0x70] sm:$0xff]
        %v3737 = vld [vmem:[#allocation11 + $0x78] sm:$0xff]
        %v3738 = vld [vmem:[%s7] sm:$0x3]
        %v3740 = vlaneseq
        %v3741 = vshrl.u32 %v3740, 7
        %v3742 = vsub.s32 0, %v3741
        %v3743 = vrot.slane %v3738, %v3742
        %v3744 = vlaneseq
        %v3745 = vshrl.u32 %v3744, 7
        %v3746 = vsub.s32 1, %v3745
        %v3747 = vrot.slane %v3738, %v3746
        %v3766 = vunpack.c.l.b16 %v3722
        %v3767 = vunpack.c.h.b16 %v3722
        %v3768 = vunpack.c.l.b16 %v3723
        %v3769 = vunpack.c.h.b16 %v3723
        %v3770 = vunpack.c.l.b16 %v3724
        %v3771 = vunpack.c.h.b16 %v3724
        %v3772 = vunpack.c.l.b16 %v3725
        %v3773 = vunpack.c.h.b16 %v3725
        %v3774 = vunpack.c.l.b16 %v3726
        %v3775 = vunpack.c.h.b16 %v3726
        %v3776 = vunpack.c.l.b16 %v3727
        %v3777 = vunpack.c.h.b16 %v3727
        %v3778 = vunpack.c.l.b16 %v3728
        %v3779 = vunpack.c.h.b16 %v3728
        %v3780 = vunpack.c.l.b16 %v3729
        %v3781 = vunpack.c.h.b16 %v3729
        %v3782 = vunpack.c.l.b16 %v3730
        %v3783 = vunpack.c.h.b16 %v3730
        %v3784 = vunpack.c.l.b16 %v3731
        %v3785 = vunpack.c.h.b16 %v3731
        %v3786 = vunpack.c.l.b16 %v3732
        %v3787 = vunpack.c.h.b16 %v3732
        %v3788 = vunpack.c.l.b16 %v3733
        %v3789 = vunpack.c.h.b16 %v3733
        %v3790 = vunpack.c.l.b16 %v3734
        %v3791 = vunpack.c.h.b16 %v3734
        %v3792 = vunpack.c.l.b16 %v3735
        %v3793 = vunpack.c.h.b16 %v3735
        %v3794 = vunpack.c.l.b16 %v3736
        %v3795 = vunpack.c.h.b16 %v3736
        %v3796 = vunpack.c.l.b16 %v3737
        %v3797 = vunpack.c.h.b16 %v3737
        %v3798 = vpack.c.b16 %v3768, %v3766
        %v3799 = vpack.c.b16 %v3769, %v3767
        %v3800 = vpack.c.b16 %v3772, %v3770
        %v3801 = vpack.c.b16 %v3773, %v3771
        %v3802 = vpack.c.b16 %v3776, %v3774
        %v3803 = vpack.c.b16 %v3777, %v3775
        %v3804 = vpack.c.b16 %v3780, %v3778
        %v3805 = vpack.c.b16 %v3781, %v3779
        %v3806 = vpack.c.b16 %v3784, %v3782
        %v3807 = vpack.c.b16 %v3785, %v3783
        %v3808 = vpack.c.b16 %v3788, %v3786
        %v3809 = vpack.c.b16 %v3789, %v3787
        %v3810 = vpack.c.b16 %v3792, %v3790
        %v3811 = vpack.c.b16 %v3793, %v3791
        %v3812 = vpack.c.b16 %v3796, %v3794
        %v3813 = vpack.c.b16 %v3797, %v3795
        %3830 = vmatprep.subr.bf16.mxu0 %v3799
        %3831 = vmatpush1.bf16.msra.mxu0 %v3798
        %3832 = vmatprep.subr.bf16.mxu0 %v3801
        %3833 = vmatpush1.bf16.msra.mxu0 %v3800
        %3834 = vmatprep.subr.bf16.mxu0 %v3803
        %3835 = vmatpush1.bf16.msra.mxu0 %v3802
        %3836 = vmatprep.subr.bf16.mxu0 %v3805
        %3837 = vmatpush1.bf16.msra.mxu0 %v3804
        %3838 = vmatprep.subr.bf16.mxu0 %v3807
        %3839 = vmatpush1.bf16.msra.mxu0 %v3806
        %3840 = vmatprep.subr.bf16.mxu0 %v3809
        %3841 = vmatpush1.bf16.msra.mxu0 %v3808
        %3842 = vmatprep.subr.bf16.mxu0 %v3811
        %3843 = vmatpush1.bf16.msra.mxu0 %v3810
        %3844 = vmatprep.subr.bf16.mxu0 %v3813
        %3845 = vmatpush1.bf16.msra.mxu0 %v3812
        %3846 = vmatprep.subr.bf16.mxu0 0
        %3847 = vmatpush1.bf16.msra.mxu0 0
        %3848 = vmatprep.subr.bf16.mxu0 0
        %3849 = vmatpush1.bf16.msra.mxu0 0
        %3850 = vmatprep.subr.bf16.mxu0 0
        %3851 = vmatpush1.bf16.msra.mxu0 0
        %3852 = vmatprep.subr.bf16.mxu0 0
        %3853 = vmatpush1.bf16.msra.mxu0 0
        %3854 = vmatprep.subr.bf16.mxu0 0
        %3855 = vmatpush1.bf16.msra.mxu0 0
        %3856 = vmatprep.subr.bf16.mxu0 0
        %3857 = vmatpush1.bf16.msra.mxu0 0
        %3858 = vmatprep.subr.bf16.mxu0 0
        %3859 = vmatpush1.bf16.msra.mxu0 0
        %3860 = vmatprep.subr.bf16.mxu0 0
        %3861 = vmatpush1.bf16.msra.mxu0 0
        %3862 = vmatprep.mubr.bf16.mxu0 0
        %3863 = vmatmul.mubr.bf16.gmra.mrb[0].mxu0 %v3714
        %v3864 = vpop.f32.mrb[0].mxu0
        %v3865 = vadd.f32 %v3743, %v3864
        %v3866 = vpop.f32.mrb[0].mxu0
        %v3867 = vadd.f32 %v3747, %v3866
        %v3868 = vpop.f32.mrb[0].mxu0
        %v3869 = vadd.f32 %v3743, %v3868
        %v3870 = vpop.f32.mrb[0].mxu0
        %v3871 = vadd.f32 %v3747, %v3870
        %3872 = vmatprep.mubr.bf16.mxu0 0
        %3873 = vmatmul.mubr.bf16.gmra.mrb[0].mxu0 %v3715
        %v3874 = vpop.f32.mrb[0].mxu0
        %v3875 = vadd.f32 %v3743, %v3874
        %v3876 = vpop.f32.mrb[0].mxu0
        %v3877 = vadd.f32 %v3747, %v3876
        %v3878 = vpop.f32.mrb[0].mxu0
        %v3879 = vadd.f32 %v3743, %v3878
        %v3880 = vpop.f32.mrb[0].mxu0
        %v3881 = vadd.f32 %v3747, %v3880
        %3882 = vmatprep.mubr.bf16.mxu0 0
        %3883 = vmatmul.mubr.bf16.gmra.mrb[0].mxu0 %v3716
        %v3884 = vpop.f32.mrb[0].mxu0
        %v3885 = vadd.f32 %v3743, %v3884
        %v3886 = vpop.f32.mrb[0].mxu0
        %v3887 = vadd.f32 %v3747, %v3886
        %v3888 = vpop.f32.mrb[0].mxu0
        %v3889 = vadd.f32 %v3743, %v3888
        %v3890 = vpop.f32.mrb[0].mxu0
        %v3891 = vadd.f32 %v3747, %v3890
        %3892 = vmatprep.mubr.bf16.mxu0 0
        %3893 = vmatmul.mubr.bf16.gmra.mrb[0].mxu0 %v3717
        %v3894 = vpop.f32.mrb[0].mxu0
        %v3895 = vadd.f32 %v3743, %v3894
        %v3896 = vpop.f32.mrb[0].mxu0
        %v3897 = vadd.f32 %v3747, %v3896
        %v3898 = vpop.f32.mrb[0].mxu0
        %v3899 = vadd.f32 %v3743, %v3898
        %v3900 = vpop.f32.mrb[0].mxu0
        %v3901 = vadd.f32 %v3747, %v3900
        %3902 = vmatprep.mubr.bf16.mxu0 0
        %3903 = vmatmul.mubr.bf16.gmra.mrb[0].mxu0 %v3718
        %v3904 = vpop.f32.mrb[0].mxu0
        %v3905 = vadd.f32 %v3743, %v3904
        %v3906 = vpop.f32.mrb[0].mxu0
        %v3907 = vadd.f32 %v3747, %v3906
        %v3908 = vpop.f32.mrb[0].mxu0
        %v3909 = vadd.f32 %v3743, %v3908
        %v3910 = vpop.f32.mrb[0].mxu0
        %v3911 = vadd.f32 %v3747, %v3910
        %3912 = vmatprep.mubr.bf16.mxu0 0
        %3913 = vmatmul.mubr.bf16.gmra.mrb[0].mxu0 %v3719
        %v3914 = vpop.f32.mrb[0].mxu0
        %v3915 = vadd.f32 %v3743, %v3914
        %v3916 = vpop.f32.mrb[0].mxu0
        %v3917 = vadd.f32 %v3747, %v3916
        %v3918 = vpop.f32.mrb[0].mxu0
        %v3919 = vadd.f32 %v3743, %v3918
        %v3920 = vpop.f32.mrb[0].mxu0
        %v3921 = vadd.f32 %v3747, %v3920
        %3922 = vmatprep.mubr.bf16.mxu0 0
        %3923 = vmatmul.mubr.bf16.gmra.mrb[0].mxu0 %v3720
        %v3924 = vpop.f32.mrb[0].mxu0
        %v3925 = vadd.f32 %v3743, %v3924
        %v3926 = vpop.f32.mrb[0].mxu0
        %v3927 = vadd.f32 %v3747, %v3926
        %v3928 = vpop.f32.mrb[0].mxu0
        %v3929 = vadd.f32 %v3743, %v3928
        %v3930 = vpop.f32.mrb[0].mxu0
        %v3931 = vadd.f32 %v3747, %v3930
        %3932 = vmatprep.mubr.bf16.mxu0 0
        %3933 = vmatmul.mubr.bf16.gmra.mrb[0].mxu0 %v3721
        %v3934 = vpop.f32.mrb[0].mxu0
        %v3935 = vadd.f32 %v3743, %v3934
        %v3936 = vpop.f32.mrb[0].mxu0
        %v3937 = vadd.f32 %v3747, %v3936
        %v3938 = vpop.f32.mrb[0].mxu0
        %v3939 = vadd.f32 %v3743, %v3938
        %v3940 = vpop.f32.mrb[0].mxu0
        %v3941 = vadd.f32 %v3747, %v3940
        %3942 = vdwg.mxu0
        %v3943 = vmax.f32 %v3865, 0.0
        %v3944 = vmax.f32 %v3867, 0.0
        %v3945 = vmax.f32 %v3869, 0.0
        %v3946 = vmax.f32 %v3871, 0.0
        %v3947 = vmax.f32 %v3875, 0.0
        %v3948 = vmax.f32 %v3877, 0.0
        %v3949 = vmax.f32 %v3879, 0.0
        %v3950 = vmax.f32 %v3881, 0.0
        %v3951 = vmax.f32 %v3885, 0.0
        %v3952 = vmax.f32 %v3887, 0.0
        %v3953 = vmax.f32 %v3889, 0.0
        %v3954 = vmax.f32 %v3891, 0.0
        %v3955 = vmax.f32 %v3895, 0.0
        %v3956 = vmax.f32 %v3897, 0.0
        %v3957 = vmax.f32 %v3899, 0.0
        %v3958 = vmax.f32 %v3901, 0.0
        %v3959 = vmax.f32 %v3905, 0.0
        %v3960 = vmax.f32 %v3907, 0.0
        %v3961 = vmax.f32 %v3909, 0.0
        %v3962 = vmax.f32 %v3911, 0.0
        %v3963 = vmax.f32 %v3915, 0.0
        %v3964 = vmax.f32 %v3917, 0.0
        %v3965 = vmax.f32 %v3919, 0.0
        %v3966 = vmax.f32 %v3921, 0.0
        %v3967 = vmax.f32 %v3925, 0.0
        %v3968 = vmax.f32 %v3927, 0.0
        %v3969 = vmax.f32 %v3929, 0.0
        %v3970 = vmax.f32 %v3931, 0.0
        %v3971 = vmax.f32 %v3935, 0.0
        %v3972 = vmax.f32 %v3937, 0.0
        %v3973 = vmax.f32 %v3939, 0.0
        %v3974 = vmax.f32 %v3941, 0.0
        %v3975 = vadd.f32 %v3943, %v473
        %v3976 = vadd.f32 %v3944, %v474
        %v3977 = vadd.f32 %v3945, %v475
        %v3978 = vadd.f32 %v3946, %v476
        %v3979 = vadd.f32 %v3947, %v477
        %v3980 = vadd.f32 %v3948, %v478
        %v3981 = vadd.f32 %v3949, %v479
        %v3982 = vadd.f32 %v3950, %v480
        %v3983 = vadd.f32 %v3951, %v481
        %v3984 = vadd.f32 %v3952, %v482
        %v3985 = vadd.f32 %v3953, %v483
        %v3986 = vadd.f32 %v3954, %v484
        %v3987 = vadd.f32 %v3955, %v485
        %v3988 = vadd.f32 %v3956, %v486
        %v3989 = vadd.f32 %v3957, %v487
        %v3990 = vadd.f32 %v3958, %v488
        %v3991 = vadd.f32 %v3959, %v489
        %v3992 = vadd.f32 %v3960, %v490
        %v3993 = vadd.f32 %v3961, %v491
        %v3994 = vadd.f32 %v3962, %v492
        %v3995 = vadd.f32 %v3963, %v493
        %v3996 = vadd.f32 %v3964, %v494
        %v3997 = vadd.f32 %v3965, %v495
        %v3998 = vadd.f32 %v3966, %v496
        %v3999 = vadd.f32 %v3967, %v497
        %v4000 = vadd.f32 %v3968, %v498
        %v4001 = vadd.f32 %v3969, %v499
        %v4002 = vadd.f32 %v3970, %v500
        %v4003 = vadd.f32 %v3971, %v501
        %v4004 = vadd.f32 %v3972, %v502
        %v4005 = vadd.f32 %v3973, %v503
        %v4006 = vadd.f32 %v3974, %v504
        %v4007 = vmax.f32 %v3975, 0.0
        %v4008 = vmax.f32 %v3976, 0.0
        %v4009 = vmax.f32 %v3977, 0.0
        %v4010 = vmax.f32 %v3978, 0.0
        %v4011 = vmax.f32 %v3979, 0.0
        %v4012 = vmax.f32 %v3980, 0.0
        %v4013 = vmax.f32 %v3981, 0.0
        %v4014 = vmax.f32 %v3982, 0.0
        %v4015 = vmax.f32 %v3983, 0.0
        %v4016 = vmax.f32 %v3984, 0.0
        %v4017 = vmax.f32 %v3985, 0.0
        %v4018 = vmax.f32 %v3986, 0.0
        %v4019 = vmax.f32 %v3987, 0.0
        %v4020 = vmax.f32 %v3988, 0.0
        %v4021 = vmax.f32 %v3989, 0.0
        %v4022 = vmax.f32 %v3990, 0.0
        %v4023 = vmax.f32 %v3991, 0.0
        %v4024 = vmax.f32 %v3992, 0.0
        %v4025 = vmax.f32 %v3993, 0.0
        %v4026 = vmax.f32 %v3994, 0.0
        %v4027 = vmax.f32 %v3995, 0.0
        %v4028 = vmax.f32 %v3996, 0.0
        %v4029 = vmax.f32 %v3997, 0.0
        %v4030 = vmax.f32 %v3998, 0.0
        %v4031 = vmax.f32 %v3999, 0.0
        %v4032 = vmax.f32 %v4000, 0.0
        %v4033 = vmax.f32 %v4001, 0.0
        %v4034 = vmax.f32 %v4002, 0.0
        %v4035 = vmax.f32 %v4003, 0.0
        %v4036 = vmax.f32 %v4004, 0.0
        %v4037 = vmax.f32 %v4005, 0.0
        %v4038 = vmax.f32 %v4006, 0.0
        %4039 = vst [vmem:[%s431] sm:$0xff] %v4007
        %4040 = vst [vmem:[%s431 + $0x8] sm:$0xff] %v4008
        %4041 = vst [vmem:[%s431 + $0x10] sm:$0xff] %v4009
        %4042 = vst [vmem:[%s431 + $0x18] sm:$0xff] %v4010
        %4043 = vst [vmem:[%s431 + $0x20] sm:$0xff] %v4011
        %4044 = vst [vmem:[%s431 + $0x28] sm:$0xff] %v4012
        %4045 = vst [vmem:[%s431 + $0x30] sm:$0xff] %v4013
        %4046 = vst [vmem:[%s431 + $0x38] sm:$0xff] %v4014
        %4047 = vst [vmem:[%s431 + $0x40] sm:$0xff] %v4015
        %4048 = vst [vmem:[%s431 + $0x48] sm:$0xff] %v4016
        %4049 = vst [vmem:[%s431 + $0x50] sm:$0xff] %v4017
        %4050 = vst [vmem:[%s431 + $0x58] sm:$0xff] %v4018
        %4051 = vst [vmem:[%s431 + $0x60] sm:$0xff] %v4019
        %4052 = vst [vmem:[%s431 + $0x68] sm:$0xff] %v4020
        %4053 = vst [vmem:[%s431 + $0x70] sm:$0xff] %v4021
        %4054 = vst [vmem:[%s431 + $0x78] sm:$0xff] %v4022
        %4055 = vst [vmem:[%s431 + $0x80] sm:$0xff] %v4023
        %4056 = vst [vmem:[%s431 + $0x88] sm:$0xff] %v4024
        %4057 = vst [vmem:[%s431 + $0x90] sm:$0xff] %v4025
        %4058 = vst [vmem:[%s431 + $0x98] sm:$0xff] %v4026
        %4059 = vst [vmem:[%s431 + $0xa0] sm:$0xff] %v4027
        %4060 = vst [vmem:[%s431 + $0xa8] sm:$0xff] %v4028
        %4061 = vst [vmem:[%s431 + $0xb0] sm:$0xff] %v4029
        %4062 = vst [vmem:[%s431 + $0xb8] sm:$0xff] %v4030
        %4063 = vst [vmem:[%s431 + $0xc0] sm:$0xff] %v4031
        %4064 = vst [vmem:[%s431 + $0xc8] sm:$0xff] %v4032
        %4065 = vst [vmem:[%s431 + $0xd0] sm:$0xff] %v4033
        %4066 = vst [vmem:[%s431 + $0xd8] sm:$0xff] %v4034
        %4067 = vst [vmem:[%s431 + $0xe0] sm:$0xff] %v4035
        %4068 = vst [vmem:[%s431 + $0xe8] sm:$0xff] %v4036
        %4069 = vst [vmem:[%s431 + $0xf0] sm:$0xff] %v4037
        %4070 = vst [vmem:[%s431 + $0xf8] sm:$0xff] %v4038
        %s4071 = sand.u32 %s235, 1
        %s4072 = scalar_lea.sflag [#allocation5], %s4071
        %s4073 = sand.u32 %s235, 1
        %s4074 = smul.addr %s4073, 256
        %s4075 = scalar_lea.vmem [#allocation12], %s4074
        // Predicated region
        $region81: #{tpu_custom_call.1} parent=51 // pred_check
          %p4076 = pneg %p245
        $region82: #{tpu_custom_call.1} parent=51 // pred_check_branch
          %4078 = sbr.rel (%p4076) target = $region84
        $region83: #{tpu_custom_call.1} parent=51 // pred_region
          %s4079 = smul.u32 8, %s34
          %s4081 = ssub.s32 4096, 4096
          %4082 = vsyncadd %s4072, %s4081
          %s4083 = smul.addr %s4079, 4
          %s4084 = smul.addr %s33, 64
          %s4085 = sadd.s32 %s4083, %s4084
          %s4086 = smul.addr %s4085, 128
          %s4087 = scalar_lea.hbm %s8, %s4086
          %s4088 = sshll.u32 %s4075, 4
          %s4089 = int_to_ptr.vmem [resolvable:$true] %s4088
          %4094 = dma.vmem_to_hbm [thread:$0]  %s4089, 4096, %s4087, %s4072, 256, 256, 16
        $region84: #{tpu_custom_call.1} parent=51 // pred_fallthru
          _
      $region52: #{tpu_custom_call.1} parent=5 // pred_fallthru
        _
      %p4095 = scmp.le.s32.totalorder 2, %s24
      // Predicated region
      $region85: #{tpu_custom_call.1} parent=5 // pred_check
        %p4096 = pneg %p4095
      $region86: #{tpu_custom_call.1} parent=5 // pred_check_branch
        %4098 = sbr.rel (%p4096) target = $region88
      $region87: #{tpu_custom_call.1} parent=5 // pred_region
        %s4099 = ssub.s32 %s24, 2
        // Predicated region
        $region89: #{tpu_custom_call.1} parent=87 // pred_check
          %p4100 = pneg %p251
        $region90: #{tpu_custom_call.1} parent=87 // pred_check_branch
          %4102 = sbr.rel (%p4100) target = $region92
        $region91: #{tpu_custom_call.1} parent=87 // pred_region
          %s4103 = sand.u32 %s236, 1
          %s4104 = scalar_lea.sflag [#allocation5], %s4103
          %s4105 = sand.u32 %s236, 1
          %s4106 = smul.addr %s4105, 256
          %s4107 = scalar_lea.vmem [#allocation12], %s4106
          %4108 = dma.done %s4104, 4096
        $region92: #{tpu_custom_call.1} parent=87 // pred_fallthru
          _
      $region88: #{tpu_custom_call.1} parent=5 // pred_fallthru
        _
    $region6: #{tpu_custom_call.1} parent=1 // loop_footer
      %s28 = sadd.s32 1, %s24
    $region7: #{tpu_custom_call.1} parent=1 // loop_footer_branch
      %23 = sbr.rel target = $region3
    $region8: #{tpu_custom_call.1} parent=1 // loop_exit
      _
    %4109 = vsyncpa [#allocation4], 1
    %s4110 = scalar_lea.sflag [#allocation4], 1
    %4111 = vsyncpa %s4110, 1
    %4112 = vsyncpa [#allocation7], 1
    %s4113 = scalar_lea.sflag [#allocation7], 1
    %4114 = vsyncpa %s4113, 1
    %4115 = vsyncpa [#allocation10], 1
    %4116 = vsyncpa [#allocation5], 1
    %s4117 = scalar_lea.sflag [#allocation5], 1
    %4118 = vsyncpa %s4117, 1

</llo_original>
